<compile_context>
chip_gen: v7x
topology: tpu7x:2x2x1
jax: 0.10.0
libtpu: 0.0.40
codegen_flags: <defaults>
</compile_context>

<pallas_src>
import jax
import jax.numpy as jnp
from jax.experimental import pallas as pl
from jax.experimental.pallas import tpu as pltpu

LANE = 128
SUBLANE = 8


def _round_up(x, m):
    return (x + m - 1) // m * m


def _round_down(x, m):
    return (x // m) * m


def _vmem_budget_bytes():
    """~80% of per-core VMEM; conservative 64 MiB capacity fallback (v7x-safe)."""
    cap = 64 * 2 ** 20
    try:
        info = pltpu.get_tpu_info()
        cap = int(getattr(info, "vmem_capacity_bytes", cap)) or cap
    except Exception:
        pass
    return int(0.8 * cap)


def _make_fused_kernel(num_layers, freq_count, compute_dtype):
    """Fused kernel: args are x_ref, (coef_ref, bias_ref) * L, out_ref."""

    def kernel(x_ref, *refs):
        out_ref = refs[-1]
        h = x_ref[...].astype(jnp.float32)                       # (TB, D_in_pad)
        for layer in range(num_layers):
            coef_ref = refs[2 * layer]                           # (2F*D_in_pad, D_out_pad)
            bias_ref = refs[2 * layer + 1]                       # (1, D_out_pad) f32
            d_in = coef_ref.shape[0] // (2 * freq_count)

            # sin/cos evaluated once (EUP); harmonics via Chebyshev recurrence (VPU).
            s1 = jnp.sin(h)
            c1 = jnp.cos(h)
            t = c1 + c1                                          # 2*cos(x)
            sk, ck = s1, c1
            sk_m1 = ck_m1 = None
            acc = None
            for k in range(freq_count):
                w_sin = coef_ref[pl.ds(k * d_in, d_in), :]
                w_cos = coef_ref[pl.ds((freq_count + k) * d_in, d_in), :]
                part = jnp.dot(sk.astype(compute_dtype), w_sin,
                               preferred_element_type=jnp.float32)
                part = part + jnp.dot(ck.astype(compute_dtype), w_cos,
                                      preferred_element_type=jnp.float32)
                acc = part if acc is None else acc + part
                if k + 1 < freq_count:
                    if k == 0:
                        s_next = t * sk
                        c_next = t * ck - 1.0
                    else:
                        s_next = t * sk - sk_m1
                        c_next = t * ck - ck_m1
                    sk_m1, ck_m1 = sk, ck
                    sk, ck = s_next, c_next
            h = acc + bias_ref[...]                              # folded constant basis
        out_ref[...] = h.astype(out_ref.dtype)

    return kernel


def fourier_kan_forward(x, coefs_flat, biases, freq_count, out_features, *,
                        compute_dtype=jnp.bfloat16, batch_tile=1024):
    """x: (B, D_in0) f32. coefs_flat[l]: (2F*D_in_pad, D_out_pad) compute_dtype.
    biases[l]: (1, D_out_pad) f32. Returns (B, out_features) f32."""
    batch, d_in0 = x.shape
    num_layers = len(coefs_flat)
    d_in0_pad = coefs_flat[0].shape[0] // (2 * freq_count)
    d_out_pad = coefs_flat[-1].shape[1]

    # ---- VMEM-budgeted batch tile ----------------------------------------
    budget = _vmem_budget_bytes()
    weight_bytes = sum(c.size * c.dtype.itemsize + b.size * b.dtype.itemsize
                       for c, b in zip(coefs_flat, biases))
    max_din = max(c.shape[0] // (2 * freq_count) for c in coefs_flat)
    max_dout = max(c.shape[1] for c in coefs_flat)
    # per-row bytes: double-buffered I/O tiles + in-kernel f32/bf16 temporaries.
    per_row = 4 * (12 * max_din + 3 * max_dout) + 2 * 4 * d_in0_pad + 2 * 4 * d_out_pad
    tb_vmem = max(SUBLANE,
                  _round_down(max(budget - 2 * weight_bytes, per_row) // per_row, SUBLANE))

    b8 = _round_up(batch, SUBLANE)
    tb = max(SUBLANE, _round_down(int(batch_tile), SUBLANE))     # sanitize caller value
    tb = min(tb, tb_vmem, b8)
    if b8 >= 2 * SUBLANE:
        # >=2 grid steps so both TensorCores on v7x get work on the parallel axis.
        tb = min(tb, max(SUBLANE, _round_down(b8 // 2, SUBLANE)))
    tb = max(SUBLANE, tb)
    b_pad = _round_up(batch, tb)

    pad_feat = d_in0_pad - d_in0
    if b_pad != batch or pad_feat:
        x = jnp.pad(x, ((0, b_pad - batch), (0, pad_feat)))      # zeros -> exact
    grid = (b_pad // tb,)

    kernel = _make_fused_kernel(num_layers, freq_count, compute_dtype)
    out_specs = pl.BlockSpec((tb, d_out_pad), lambda b: (b, 0))
    out_shape = jax.ShapeDtypeStruct((b_pad, d_out_pad), jnp.float32)
    operands = [x]
    for coef, bias in zip(coefs_flat, biases):
        operands.extend([coef, bias])

    def build_specs(single_buffer_weights):
        w_kwargs = {}
        if single_buffer_weights:
            # Constant index_map blocks never change -> no point double-buffering.
            w_kwargs = dict(pipeline_mode=pl.Buffered(1))
        specs = [pl.BlockSpec((tb, d_in0_pad), lambda b: (b, 0))]
        for coef, bias in zip(coefs_flat, biases):
            specs.append(pl.BlockSpec(coef.shape, lambda b: (0, 0), **w_kwargs))
            specs.append(pl.BlockSpec(bias.shape, lambda b: (0, 0), **w_kwargs))
        return specs

    def run(single_buffer_weights):
        return pl.pallas_call(
            kernel,
            grid=grid,
            in_specs=build_specs(single_buffer_weights),
            out_specs=out_specs,
            out_shape=out_shape,
            compiler_params=pltpu.CompilerParams(
                dimension_semantics=("parallel",),
                vmem_limit_bytes=budget),
        )(*operands)

    try:
        out = run(True)
    except Exception:
        # pipeline_mode / Buffered(1) not supported on this jax version:
        # fall back to default (double-buffered) weight blocks.
        out = run(False)
    return out[:batch, :out_features]


def _fourier_layer_ref(x, coef):
    """Pure-JAX f32 replica of CustomFourierLayer.forward (PyTorch semantics)."""
    freq_count = (coef.shape[-1] - 1) // 2
    sin_vals = jnp.stack([jnp.sin((k + 1.0) * x) for k in range(freq_count)], axis=2)
    cos_vals = jnp.stack([jnp.cos((k + 1.0) * x) for k in range(freq_count)], axis=2)
    ones = jnp.ones((x.shape[0], x.shape[1], 1), x.dtype)
    values = jnp.concatenate([sin_vals, cos_vals, ones], axis=2)  # (B, D_in, 2F+1)
    return jnp.einsum('oim,bim->bo', coef, values)                # (B, D_out)


class FourierKAN:
    """JAX/Pallas FourierKAN: fused chain of CustomFourierLayer kernels."""

    def __init__(self, layer_sizes, frequency_count=3, key=None,
                 compute_dtype=jnp.bfloat16):
        assert frequency_count >= 1
        if key is None:
            key = jax.random.PRNGKey(0)
        self.layer_sizes = list(layer_sizes)
        self.frequency_count = frequency_count
        self.compute_dtype = compute_dtype

        self.coefs = []       # original PyTorch layout (D_out, D_in, 2F+1), f32
        self.coefs_flat = []  # kernel layout (2F*D_in_pad, D_out_pad), compute_dtype
        self.biases = []      # folded constant basis, (1, D_out_pad), f32
        two_f = 2 * frequency_count
        for i in range(1, len(layer_sizes)):
            d_in, d_out = layer_sizes[i - 1], layer_sizes[i]
            key, sub = jax.random.split(key)
            # torch.randn(out, in, 2F+1) * 0.1  (deterministic synthetic init)
            coef = 0.1 * jax.random.normal(
                sub, (d_out, d_in, two_f + 1), dtype=jnp.float32)
            self.coefs.append(coef)

            d_in_p = _round_up(d_in, LANE)
            d_out_p = _round_up(d_out, LANE)
            # Harmonic-major re-layout, zero-padded to lane multiples (exact).
            w = jnp.transpose(coef[:, :, :two_f], (2, 1, 0))      # (2F, D_in, D_out)
            w = jnp.pad(w, ((0, 0), (0, d_in_p - d_in), (0, d_out_p - d_out)))
            flat = w.reshape(two_f * d_in_p, d_out_p).astype(compute_dtype)
            bias = jnp.sum(coef[:, :, two_f], axis=1)             # (D_out,)
            bias = jnp.pad(bias, (0, d_out_p - d_out)).reshape(1, d_out_p)
            self.coefs_flat.append(flat)
            self.biases.append(bias.astype(jnp.float32))

    def __call__(self, x, batch_tile=1024):
        return fourier_kan_forward(x, self.coefs_flat, self.biases,
                                   self.frequency_count,
                                   out_features=self.layer_sizes[-1],
                                   compute_dtype=self.compute_dtype,
                                   batch_tile=batch_tile)

    def reference(self, x):
        for coef in self.coefs:
            x = _fourier_layer_ref(x, coef)
        return x


if __name__ == "__main__":
    key = jax.random.PRNGKey(0)
    key_x, key_p = jax.random.split(key)

    layer_sizes = [16, 32, 8]
    frequency_count = 3
    batch = 4

    x = jax.random.normal(key_x, (batch, layer_sizes[0]), dtype=jnp.float32)

    # Default path: bf16 MXU operands, f32 accumulation (loose tolerance).
    model = FourierKAN(layer_sizes, frequency_count, key=key_p)
    out = jax.block_until_ready(model(x))
    ref = jax.block_until_ready(model.reference(x))
    assert out.shape == (batch, layer_sizes[-1])
    assert jnp.allclose(out, ref, atol=5e-2, rtol=5e-2), (out, ref)

    # Full-precision path: f32 operands (tight tolerance).
    model_f32 = FourierKAN(layer_sizes, frequency_count, key=key_p,
                           compute_dtype=jnp.float32)
    out_f32 = jax.block_until_ready(model_f32(x))
    assert jnp.allclose(out_f32, ref, atol=2e-3, rtol=2e-3), (out_f32, ref)

    print("KERNEL_OK")
</pallas_src>

<mosaic_0001>
module attributes {stable_mosaic.version = 11 : i64} {
  func.func @kernel(%arg0: i32, %arg1: memref<8x128xf32, #tpu.memory_space<vmem>>, %arg2: memref<768x128xbf16, #tpu.memory_space<vmem>>, %arg3: memref<1x128xf32, #tpu.memory_space<vmem>>, %arg4: memref<768x128xbf16, #tpu.memory_space<vmem>>, %arg5: memref<1x128xf32, #tpu.memory_space<vmem>>, %arg6: memref<8x128xf32, #tpu.memory_space<vmem>>) attributes {dimension_semantics = [#tpu.dimension_semantics<parallel>], iteration_bounds = array<i64: 1>, scalar_prefetch = 0 : i64, scratch_operands = 0 : i64, tpu.core_type = #tpu.core_type<tc>, window_params = [{transform_indices = @transform_0, window_bounds = array<i64: 8, 128>}, {pipeline_mode = #tpu.pipeline_mode<synchronous>, transform_indices = @transform_1, window_bounds = array<i64: 768, 128>}, {pipeline_mode = #tpu.pipeline_mode<synchronous>, transform_indices = @transform_2, window_bounds = array<i64: 1, 128>}, {pipeline_mode = #tpu.pipeline_mode<synchronous>, transform_indices = @transform_3, window_bounds = array<i64: 768, 128>}, {pipeline_mode = #tpu.pipeline_mode<synchronous>, transform_indices = @transform_4, window_bounds = array<i64: 1, 128>}, {transform_indices = @transform_5, window_bounds = array<i64: 8, 128>}]} {
    %c0 = arith.constant 0 : index
    %c0_0 = arith.constant 0 : index
    %0 = vector.load %arg1[%c0, %c0_0] : memref<8x128xf32, #tpu.memory_space<vmem>>, vector<8x128xf32>
    %1 = math.sin %0 : vector<8x128xf32>
    %2 = math.cos %0 : vector<8x128xf32>
    %3 = arith.addf %2, %2 : vector<8x128xf32>
    %c0_1 = arith.constant 0 : index
    %c0_2 = arith.constant 0 : index
    %4 = vector.load %arg2[%c0_1, %c0_2] : memref<768x128xbf16, #tpu.memory_space<vmem>>, vector<128x128xbf16>
    %c384 = arith.constant 384 : index
    %c0_3 = arith.constant 0 : index
    %5 = vector.load %arg2[%c384, %c0_3] : memref<768x128xbf16, #tpu.memory_space<vmem>>, vector<128x128xbf16>
    %6 = arith.truncf %1 : vector<8x128xf32> to vector<8x128xbf16>
    %cst = arith.constant dense<0.000000e+00> : vector<8x128xf32>
    %7 = tpu.matmul %6, %4, %cst {dimension_numbers = #tpu.dot_dimension_numbers<[1], [0], [0], [1], [0, 0, 1, 1], [], []>} : vector<8x128xbf16>, vector<128x128xbf16>, vector<8x128xf32> -> vector<8x128xf32>
    %8 = arith.truncf %2 : vector<8x128xf32> to vector<8x128xbf16>
    %cst_4 = arith.constant dense<0.000000e+00> : vector<8x128xf32>
    %9 = tpu.matmul %8, %5, %cst_4 {dimension_numbers = #tpu.dot_dimension_numbers<[1], [0], [0], [1], [0, 0, 1, 1], [], []>} : vector<8x128xbf16>, vector<128x128xbf16>, vector<8x128xf32> -> vector<8x128xf32>
    %10 = arith.addf %7, %9 : vector<8x128xf32>
    %11 = arith.mulf %3, %1 : vector<8x128xf32>
    %12 = arith.mulf %3, %2 : vector<8x128xf32>
    %cst_5 = arith.constant 1.000000e+00 : f32
    %13 = vector.broadcast %cst_5 : f32 to vector<8x128xf32>
    %14 = arith.subf %12, %13 : vector<8x128xf32>
    %c128 = arith.constant 128 : index
    %c0_6 = arith.constant 0 : index
    %15 = vector.load %arg2[%c128, %c0_6] : memref<768x128xbf16, #tpu.memory_space<vmem>>, vector<128x128xbf16>
    %c512 = arith.constant 512 : index
    %c0_7 = arith.constant 0 : index
    %16 = vector.load %arg2[%c512, %c0_7] : memref<768x128xbf16, #tpu.memory_space<vmem>>, vector<128x128xbf16>
    %17 = arith.truncf %11 : vector<8x128xf32> to vector<8x128xbf16>
    %cst_8 = arith.constant dense<0.000000e+00> : vector<8x128xf32>
    %18 = tpu.matmul %17, %15, %cst_8 {dimension_numbers = #tpu.dot_dimension_numbers<[1], [0], [0], [1], [0, 0, 1, 1], [], []>} : vector<8x128xbf16>, vector<128x128xbf16>, vector<8x128xf32> -> vector<8x128xf32>
    %19 = arith.truncf %14 : vector<8x128xf32> to vector<8x128xbf16>
    %cst_9 = arith.constant dense<0.000000e+00> : vector<8x128xf32>
    %20 = tpu.matmul %19, %16, %cst_9 {dimension_numbers = #tpu.dot_dimension_numbers<[1], [0], [0], [1], [0, 0, 1, 1], [], []>} : vector<8x128xbf16>, vector<128x128xbf16>, vector<8x128xf32> -> vector<8x128xf32>
    %21 = arith.addf %18, %20 : vector<8x128xf32>
    %22 = arith.addf %10, %21 : vector<8x128xf32>
    %23 = arith.mulf %3, %11 : vector<8x128xf32>
    %24 = arith.subf %23, %1 : vector<8x128xf32>
    %25 = arith.mulf %3, %14 : vector<8x128xf32>
    %26 = arith.subf %25, %2 : vector<8x128xf32>
    %c256 = arith.constant 256 : index
    %c0_10 = arith.constant 0 : index
    %27 = vector.load %arg2[%c256, %c0_10] : memref<768x128xbf16, #tpu.memory_space<vmem>>, vector<128x128xbf16>
    %c640 = arith.constant 640 : index
    %c0_11 = arith.constant 0 : index
    %28 = vector.load %arg2[%c640, %c0_11] : memref<768x128xbf16, #tpu.memory_space<vmem>>, vector<128x128xbf16>
    %29 = arith.truncf %24 : vector<8x128xf32> to vector<8x128xbf16>
    %cst_12 = arith.constant dense<0.000000e+00> : vector<8x128xf32>
    %30 = tpu.matmul %29, %27, %cst_12 {dimension_numbers = #tpu.dot_dimension_numbers<[1], [0], [0], [1], [0, 0, 1, 1], [], []>} : vector<8x128xbf16>, vector<128x128xbf16>, vector<8x128xf32> -> vector<8x128xf32>
    %31 = arith.truncf %26 : vector<8x128xf32> to vector<8x128xbf16>
    %cst_13 = arith.constant dense<0.000000e+00> : vector<8x128xf32>
    %32 = tpu.matmul %31, %28, %cst_13 {dimension_numbers = #tpu.dot_dimension_numbers<[1], [0], [0], [1], [0, 0, 1, 1], [], []>} : vector<8x128xbf16>, vector<128x128xbf16>, vector<8x128xf32> -> vector<8x128xf32>
    %33 = arith.addf %30, %32 : vector<8x128xf32>
    %34 = arith.addf %22, %33 : vector<8x128xf32>
    %c0_14 = arith.constant 0 : index
    %c0_15 = arith.constant 0 : index
    %35 = vector.load %arg3[%c0_14, %c0_15] : memref<1x128xf32, #tpu.memory_space<vmem>>, vector<1x128xf32>
    %36 = vector.broadcast %35 : vector<1x128xf32> to vector<8x128xf32>
    %37 = arith.addf %34, %36 : vector<8x128xf32>
    %38 = math.sin %37 : vector<8x128xf32>
    %39 = math.cos %37 : vector<8x128xf32>
    %40 = arith.addf %39, %39 : vector<8x128xf32>
    %c0_16 = arith.constant 0 : index
    %c0_17 = arith.constant 0 : index
    %41 = vector.load %arg4[%c0_16, %c0_17] : memref<768x128xbf16, #tpu.memory_space<vmem>>, vector<128x128xbf16>
    %c384_18 = arith.constant 384 : index
    %c0_19 = arith.constant 0 : index
    %42 = vector.load %arg4[%c384_18, %c0_19] : memref<768x128xbf16, #tpu.memory_space<vmem>>, vector<128x128xbf16>
    %43 = arith.truncf %38 : vector<8x128xf32> to vector<8x128xbf16>
    %cst_20 = arith.constant dense<0.000000e+00> : vector<8x128xf32>
    %44 = tpu.matmul %43, %41, %cst_20 {dimension_numbers = #tpu.dot_dimension_numbers<[1], [0], [0], [1], [0, 0, 1, 1], [], []>} : vector<8x128xbf16>, vector<128x128xbf16>, vector<8x128xf32> -> vector<8x128xf32>
    %45 = arith.truncf %39 : vector<8x128xf32> to vector<8x128xbf16>
    %cst_21 = arith.constant dense<0.000000e+00> : vector<8x128xf32>
    %46 = tpu.matmul %45, %42, %cst_21 {dimension_numbers = #tpu.dot_dimension_numbers<[1], [0], [0], [1], [0, 0, 1, 1], [], []>} : vector<8x128xbf16>, vector<128x128xbf16>, vector<8x128xf32> -> vector<8x128xf32>
    %47 = arith.addf %44, %46 : vector<8x128xf32>
    %48 = arith.mulf %40, %38 : vector<8x128xf32>
    %49 = arith.mulf %40, %39 : vector<8x128xf32>
    %cst_22 = arith.constant 1.000000e+00 : f32
    %50 = vector.broadcast %cst_22 : f32 to vector<8x128xf32>
    %51 = arith.subf %49, %50 : vector<8x128xf32>
    %c128_23 = arith.constant 128 : index
    %c0_24 = arith.constant 0 : index
    %52 = vector.load %arg4[%c128_23, %c0_24] : memref<768x128xbf16, #tpu.memory_space<vmem>>, vector<128x128xbf16>
    %c512_25 = arith.constant 512 : index
    %c0_26 = arith.constant 0 : index
    %53 = vector.load %arg4[%c512_25, %c0_26] : memref<768x128xbf16, #tpu.memory_space<vmem>>, vector<128x128xbf16>
    %54 = arith.truncf %48 : vector<8x128xf32> to vector<8x128xbf16>
    %cst_27 = arith.constant dense<0.000000e+00> : vector<8x128xf32>
    %55 = tpu.matmul %54, %52, %cst_27 {dimension_numbers = #tpu.dot_dimension_numbers<[1], [0], [0], [1], [0, 0, 1, 1], [], []>} : vector<8x128xbf16>, vector<128x128xbf16>, vector<8x128xf32> -> vector<8x128xf32>
    %56 = arith.truncf %51 : vector<8x128xf32> to vector<8x128xbf16>
    %cst_28 = arith.constant dense<0.000000e+00> : vector<8x128xf32>
    %57 = tpu.matmul %56, %53, %cst_28 {dimension_numbers = #tpu.dot_dimension_numbers<[1], [0], [0], [1], [0, 0, 1, 1], [], []>} : vector<8x128xbf16>, vector<128x128xbf16>, vector<8x128xf32> -> vector<8x128xf32>
    %58 = arith.addf %55, %57 : vector<8x128xf32>
    %59 = arith.addf %47, %58 : vector<8x128xf32>
    %60 = arith.mulf %40, %48 : vector<8x128xf32>
    %61 = arith.subf %60, %38 : vector<8x128xf32>
    %62 = arith.mulf %40, %51 : vector<8x128xf32>
    %63 = arith.subf %62, %39 : vector<8x128xf32>
    %c256_29 = arith.constant 256 : index
    %c0_30 = arith.constant 0 : index
    %64 = vector.load %arg4[%c256_29, %c0_30] : memref<768x128xbf16, #tpu.memory_space<vmem>>, vector<128x128xbf16>
    %c640_31 = arith.constant 640 : index
    %c0_32 = arith.constant 0 : index
    %65 = vector.load %arg4[%c640_31, %c0_32] : memref<768x128xbf16, #tpu.memory_space<vmem>>, vector<128x128xbf16>
    %66 = arith.truncf %61 : vector<8x128xf32> to vector<8x128xbf16>
    %cst_33 = arith.constant dense<0.000000e+00> : vector<8x128xf32>
    %67 = tpu.matmul %66, %64, %cst_33 {dimension_numbers = #tpu.dot_dimension_numbers<[1], [0], [0], [1], [0, 0, 1, 1], [], []>} : vector<8x128xbf16>, vector<128x128xbf16>, vector<8x128xf32> -> vector<8x128xf32>
    %68 = arith.truncf %63 : vector<8x128xf32> to vector<8x128xbf16>
    %cst_34 = arith.constant dense<0.000000e+00> : vector<8x128xf32>
    %69 = tpu.matmul %68, %65, %cst_34 {dimension_numbers = #tpu.dot_dimension_numbers<[1], [0], [0], [1], [0, 0, 1, 1], [], []>} : vector<8x128xbf16>, vector<128x128xbf16>, vector<8x128xf32> -> vector<8x128xf32>
    %70 = arith.addf %67, %69 : vector<8x128xf32>
    %71 = arith.addf %59, %70 : vector<8x128xf32>
    %c0_35 = arith.constant 0 : index
    %c0_36 = arith.constant 0 : index
    %72 = vector.load %arg5[%c0_35, %c0_36] : memref<1x128xf32, #tpu.memory_space<vmem>>, vector<1x128xf32>
    %73 = vector.broadcast %72 : vector<1x128xf32> to vector<8x128xf32>
    %74 = arith.addf %71, %73 : vector<8x128xf32>
    %c0_37 = arith.constant 0 : index
    %c0_38 = arith.constant 0 : index
    %75 = vector.load %arg6[%c0_37, %c0_38] : memref<8x128xf32, #tpu.memory_space<vmem>>, vector<8x128xf32>
    tpu.vector_store %arg6[%c0_37, %c0_38], %74 {strides = array<i32>} : memref<8x128xf32, #tpu.memory_space<vmem>>, vector<8x128xf32>,
    return
  }
  func.func @transform_0(%arg0: i32) -> (i32, i32) {
    %c0_i32 = arith.constant 0 : i32
    %c0_i32_0 = arith.constant 0 : i32
    return %arg0, %c0_i32 : i32, i32
  }
  func.func @transform_1(%arg0: i32) -> (i32, i32) {
    %c0_i32 = arith.constant 0 : i32
    %c0_i32_0 = arith.constant 0 : i32
    %c0_i32_1 = arith.constant 0 : i32
    return %c0_i32, %c0_i32_0 : i32, i32
  }
  func.func @transform_2(%arg0: i32) -> (i32, i32) {
    %c0_i32 = arith.constant 0 : i32
    %c0_i32_0 = arith.constant 0 : i32
    %c0_i32_1 = arith.constant 0 : i32
    return %c0_i32, %c0_i32_0 : i32, i32
  }
  func.func @transform_3(%arg0: i32) -> (i32, i32) {
    %c0_i32 = arith.constant 0 : i32
    %c0_i32_0 = arith.constant 0 : i32
    %c0_i32_1 = arith.constant 0 : i32
    return %c0_i32, %c0_i32_0 : i32, i32
  }
  func.func @transform_4(%arg0: i32) -> (i32, i32) {
    %c0_i32 = arith.constant 0 : i32
    %c0_i32_0 = arith.constant 0 : i32
    %c0_i32_1 = arith.constant 0 : i32
    return %c0_i32, %c0_i32_0 : i32, i32
  }
  func.func @transform_5(%arg0: i32) -> (i32, i32) {
    %c0_i32 = arith.constant 0 : i32
    %c0_i32_0 = arith.constant 0 : i32
    return %arg0, %c0_i32 : i32, i32
  }
}

module attributes {stable_mosaic.version = 11 : i64} {
  func.func @kernel(%arg0: i32, %arg1: memref<8x128xf32, #tpu.memory_space<vmem>>, %arg2: memref<768x128xbf16, #tpu.memory_space<vmem>>, %arg3: memref<1x128xf32, #tpu.memory_space<vmem>>, %arg4: memref<768x128xbf16, #tpu.memory_space<vmem>>, %arg5: memref<1x128xf32, #tpu.memory_space<vmem>>, %arg6: memref<8x128xf32, #tpu.memory_space<vmem>>) attributes {dimension_semantics = [#tpu.dimension_semantics<parallel>], iteration_bounds = array<i64: 1>, scalar_prefetch = 0 : i64, scratch_operands = 0 : i64, tpu.core_type = #tpu.core_type<tc>, window_params = [{transform_indices = @transform_0, window_bounds = array<i64: 8, 128>}, {pipeline_mode = #tpu.pipeline_mode<synchronous>, transform_indices = @transform_1, window_bounds = array<i64: 768, 128>}, {pipeline_mode = #tpu.pipeline_mode<synchronous>, transform_indices = @transform_2, window_bounds = array<i64: 1, 128>}, {pipeline_mode = #tpu.pipeline_mode<synchronous>, transform_indices = @transform_3, window_bounds = array<i64: 768, 128>}, {pipeline_mode = #tpu.pipeline_mode<synchronous>, transform_indices = @transform_4, window_bounds = array<i64: 1, 128>}, {transform_indices = @transform_5, window_bounds = array<i64: 8, 128>}]} {
    %c0 = arith.constant 0 : index
    %c0_0 = arith.constant 0 : index
    %0 = vector.load %arg1[%c0, %c0_0] : memref<8x128xf32, #tpu.memory_space<vmem>>, vector<8x128xf32>
    %1 = math.sin %0 : vector<8x128xf32>
    %2 = math.cos %0 : vector<8x128xf32>
    %3 = arith.addf %2, %2 : vector<8x128xf32>
    %c0_1 = arith.constant 0 : index
    %c0_2 = arith.constant 0 : index
    %4 = vector.load %arg2[%c0_1, %c0_2] : memref<768x128xbf16, #tpu.memory_space<vmem>>, vector<128x128xbf16>
    %c384 = arith.constant 384 : index
    %c0_3 = arith.constant 0 : index
    %5 = vector.load %arg2[%c384, %c0_3] : memref<768x128xbf16, #tpu.memory_space<vmem>>, vector<128x128xbf16>
    %6 = arith.truncf %1 : vector<8x128xf32> to vector<8x128xbf16>
    %cst = arith.constant dense<0.000000e+00> : vector<8x128xf32>
    %7 = tpu.matmul %6, %4, %cst {dimension_numbers = #tpu.dot_dimension_numbers<[1], [0], [0], [1], [0, 0, 1, 1], [], []>} : vector<8x128xbf16>, vector<128x128xbf16>, vector<8x128xf32> -> vector<8x128xf32>
    %8 = arith.truncf %2 : vector<8x128xf32> to vector<8x128xbf16>
    %cst_4 = arith.constant dense<0.000000e+00> : vector<8x128xf32>
    %9 = tpu.matmul %8, %5, %cst_4 {dimension_numbers = #tpu.dot_dimension_numbers<[1], [0], [0], [1], [0, 0, 1, 1], [], []>} : vector<8x128xbf16>, vector<128x128xbf16>, vector<8x128xf32> -> vector<8x128xf32>
    %10 = arith.addf %7, %9 : vector<8x128xf32>
    %11 = arith.mulf %3, %1 : vector<8x128xf32>
    %12 = arith.mulf %3, %2 : vector<8x128xf32>
    %cst_5 = arith.constant 1.000000e+00 : f32
    %13 = vector.broadcast %cst_5 : f32 to vector<8x128xf32>
    %14 = arith.subf %12, %13 : vector<8x128xf32>
    %c128 = arith.constant 128 : index
    %c0_6 = arith.constant 0 : index
    %15 = vector.load %arg2[%c128, %c0_6] : memref<768x128xbf16, #tpu.memory_space<vmem>>, vector<128x128xbf16>
    %c512 = arith.constant 512 : index
    %c0_7 = arith.constant 0 : index
    %16 = vector.load %arg2[%c512, %c0_7] : memref<768x128xbf16, #tpu.memory_space<vmem>>, vector<128x128xbf16>
    %17 = arith.truncf %11 : vector<8x128xf32> to vector<8x128xbf16>
    %cst_8 = arith.constant dense<0.000000e+00> : vector<8x128xf32>
    %18 = tpu.matmul %17, %15, %cst_8 {dimension_numbers = #tpu.dot_dimension_numbers<[1], [0], [0], [1], [0, 0, 1, 1], [], []>} : vector<8x128xbf16>, vector<128x128xbf16>, vector<8x128xf32> -> vector<8x128xf32>
    %19 = arith.truncf %14 : vector<8x128xf32> to vector<8x128xbf16>
    %cst_9 = arith.constant dense<0.000000e+00> : vector<8x128xf32>
    %20 = tpu.matmul %19, %16, %cst_9 {dimension_numbers = #tpu.dot_dimension_numbers<[1], [0], [0], [1], [0, 0, 1, 1], [], []>} : vector<8x128xbf16>, vector<128x128xbf16>, vector<8x128xf32> -> vector<8x128xf32>
    %21 = arith.addf %18, %20 : vector<8x128xf32>
    %22 = arith.addf %10, %21 : vector<8x128xf32>
    %23 = arith.mulf %3, %11 : vector<8x128xf32>
    %24 = arith.subf %23, %1 : vector<8x128xf32>
    %25 = arith.mulf %3, %14 : vector<8x128xf32>
    %26 = arith.subf %25, %2 : vector<8x128xf32>
    %c256 = arith.constant 256 : index
    %c0_10 = arith.constant 0 : index
    %27 = vector.load %arg2[%c256, %c0_10] : memref<768x128xbf16, #tpu.memory_space<vmem>>, vector<128x128xbf16>
    %c640 = arith.constant 640 : index
    %c0_11 = arith.constant 0 : index
    %28 = vector.load %arg2[%c640, %c0_11] : memref<768x128xbf16, #tpu.memory_space<vmem>>, vector<128x128xbf16>
    %29 = arith.truncf %24 : vector<8x128xf32> to vector<8x128xbf16>
    %cst_12 = arith.constant dense<0.000000e+00> : vector<8x128xf32>
    %30 = tpu.matmul %29, %27, %cst_12 {dimension_numbers = #tpu.dot_dimension_numbers<[1], [0], [0], [1], [0, 0, 1, 1], [], []>} : vector<8x128xbf16>, vector<128x128xbf16>, vector<8x128xf32> -> vector<8x128xf32>
    %31 = arith.truncf %26 : vector<8x128xf32> to vector<8x128xbf16>
    %cst_13 = arith.constant dense<0.000000e+00> : vector<8x128xf32>
    %32 = tpu.matmul %31, %28, %cst_13 {dimension_numbers = #tpu.dot_dimension_numbers<[1], [0], [0], [1], [0, 0, 1, 1], [], []>} : vector<8x128xbf16>, vector<128x128xbf16>, vector<8x128xf32> -> vector<8x128xf32>
    %33 = arith.addf %30, %32 : vector<8x128xf32>
    %34 = arith.addf %22, %33 : vector<8x128xf32>
    %c0_14 = arith.constant 0 : index
    %c0_15 = arith.constant 0 : index
    %35 = vector.load %arg3[%c0_14, %c0_15] : memref<1x128xf32, #tpu.memory_space<vmem>>, vector<1x128xf32>
    %36 = vector.broadcast %35 : vector<1x128xf32> to vector<8x128xf32>
    %37 = arith.addf %34, %36 : vector<8x128xf32>
    %38 = math.sin %37 : vector<8x128xf32>
    %39 = math.cos %37 : vector<8x128xf32>
    %40 = arith.addf %39, %39 : vector<8x128xf32>
    %c0_16 = arith.constant 0 : index
    %c0_17 = arith.constant 0 : index
    %41 = vector.load %arg4[%c0_16, %c0_17] : memref<768x128xbf16, #tpu.memory_space<vmem>>, vector<128x128xbf16>
    %c384_18 = arith.constant 384 : index
    %c0_19 = arith.constant 0 : index
    %42 = vector.load %arg4[%c384_18, %c0_19] : memref<768x128xbf16, #tpu.memory_space<vmem>>, vector<128x128xbf16>
    %43 = arith.truncf %38 : vector<8x128xf32> to vector<8x128xbf16>
    %cst_20 = arith.constant dense<0.000000e+00> : vector<8x128xf32>
    %44 = tpu.matmul %43, %41, %cst_20 {dimension_numbers = #tpu.dot_dimension_numbers<[1], [0], [0], [1], [0, 0, 1, 1], [], []>} : vector<8x128xbf16>, vector<128x128xbf16>, vector<8x128xf32> -> vector<8x128xf32>
    %45 = arith.truncf %39 : vector<8x128xf32> to vector<8x128xbf16>
    %cst_21 = arith.constant dense<0.000000e+00> : vector<8x128xf32>
    %46 = tpu.matmul %45, %42, %cst_21 {dimension_numbers = #tpu.dot_dimension_numbers<[1], [0], [0], [1], [0, 0, 1, 1], [], []>} : vector<8x128xbf16>, vector<128x128xbf16>, vector<8x128xf32> -> vector<8x128xf32>
    %47 = arith.addf %44, %46 : vector<8x128xf32>
    %48 = arith.mulf %40, %38 : vector<8x128xf32>
    %49 = arith.mulf %40, %39 : vector<8x128xf32>
    %cst_22 = arith.constant 1.000000e+00 : f32
    %50 = vector.broadcast %cst_22 : f32 to vector<8x128xf32>
    %51 = arith.subf %49, %50 : vector<8x128xf32>
    %c128_23 = arith.constant 128 : index
    %c0_24 = arith.constant 0 : index
    %52 = vector.load %arg4[%c128_23, %c0_24] : memref<768x128xbf16, #tpu.memory_space<vmem>>, vector<128x128xbf16>
    %c512_25 = arith.constant 512 : index
    %c0_26 = arith.constant 0 : index
    %53 = vector.load %arg4[%c512_25, %c0_26] : memref<768x128xbf16, #tpu.memory_space<vmem>>, vector<128x128xbf16>
    %54 = arith.truncf %48 : vector<8x128xf32> to vector<8x128xbf16>
    %cst_27 = arith.constant dense<0.000000e+00> : vector<8x128xf32>
    %55 = tpu.matmul %54, %52, %cst_27 {dimension_numbers = #tpu.dot_dimension_numbers<[1], [0], [0], [1], [0, 0, 1, 1], [], []>} : vector<8x128xbf16>, vector<128x128xbf16>, vector<8x128xf32> -> vector<8x128xf32>
    %56 = arith.truncf %51 : vector<8x128xf32> to vector<8x128xbf16>
    %cst_28 = arith.constant dense<0.000000e+00> : vector<8x128xf32>
    %57 = tpu.matmul %56, %53, %cst_28 {dimension_numbers = #tpu.dot_dimension_numbers<[1], [0], [0], [1], [0, 0, 1, 1], [], []>} : vector<8x128xbf16>, vector<128x128xbf16>, vector<8x128xf32> -> vector<8x128xf32>
    %58 = arith.addf %55, %57 : vector<8x128xf32>
    %59 = arith.addf %47, %58 : vector<8x128xf32>
    %60 = arith.mulf %40, %48 : vector<8x128xf32>
    %61 = arith.subf %60, %38 : vector<8x128xf32>
    %62 = arith.mulf %40, %51 : vector<8x128xf32>
    %63 = arith.subf %62, %39 : vector<8x128xf32>
    %c256_29 = arith.constant 256 : index
    %c0_30 = arith.constant 0 : index
    %64 = vector.load %arg4[%c256_29, %c0_30] : memref<768x128xbf16, #tpu.memory_space<vmem>>, vector<128x128xbf16>
    %c640_31 = arith.constant 640 : index
    %c0_32 = arith.constant 0 : index
    %65 = vector.load %arg4[%c640_31, %c0_32] : memref<768x128xbf16, #tpu.memory_space<vmem>>, vector<128x128xbf16>
    %66 = arith.truncf %61 : vector<8x128xf32> to vector<8x128xbf16>
    %cst_33 = arith.constant dense<0.000000e+00> : vector<8x128xf32>
    %67 = tpu.matmul %66, %64, %cst_33 {dimension_numbers = #tpu.dot_dimension_numbers<[1], [0], [0], [1], [0, 0, 1, 1], [], []>} : vector<8x128xbf16>, vector<128x128xbf16>, vector<8x128xf32> -> vector<8x128xf32>
    %68 = arith.truncf %63 : vector<8x128xf32> to vector<8x128xbf16>
    %cst_34 = arith.constant dense<0.000000e+00> : vector<8x128xf32>
    %69 = tpu.matmul %68, %65, %cst_34 {dimension_numbers = #tpu.dot_dimension_numbers<[1], [0], [0], [1], [0, 0, 1, 1], [], []>} : vector<8x128xbf16>, vector<128x128xbf16>, vector<8x128xf32> -> vector<8x128xf32>
    %70 = arith.addf %67, %69 : vector<8x128xf32>
    %71 = arith.addf %59, %70 : vector<8x128xf32>
    %c0_35 = arith.constant 0 : index
    %c0_36 = arith.constant 0 : index
    %72 = vector.load %arg5[%c0_35, %c0_36] : memref<1x128xf32, #tpu.memory_space<vmem>>, vector<1x128xf32>
    %73 = vector.broadcast %72 : vector<1x128xf32> to vector<8x128xf32>
    %74 = arith.addf %71, %73 : vector<8x128xf32>
    %c0_37 = arith.constant 0 : index
    %c0_38 = arith.constant 0 : index
    %75 = vector.load %arg6[%c0_37, %c0_38] : memref<8x128xf32, #tpu.memory_space<vmem>>, vector<8x128xf32>
    tpu.vector_store %arg6[%c0_37, %c0_38], %74 {strides = array<i32>} : memref<8x128xf32, #tpu.memory_space<vmem>>, vector<8x128xf32>,
    return
  }
  func.func @transform_0(%arg0: i32) -> (i32, i32) {
    %c0_i32 = arith.constant 0 : i32
    %c0_i32_0 = arith.constant 0 : i32
    return %arg0, %c0_i32 : i32, i32
  }
  func.func @transform_1(%arg0: i32) -> (i32, i32) {
    %c0_i32 = arith.constant 0 : i32
    %c0_i32_0 = arith.constant 0 : i32
    %c0_i32_1 = arith.constant 0 : i32
    return %c0_i32, %c0_i32_0 : i32, i32
  }
  func.func @transform_2(%arg0: i32) -> (i32, i32) {
    %c0_i32 = arith.constant 0 : i32
    %c0_i32_0 = arith.constant 0 : i32
    %c0_i32_1 = arith.constant 0 : i32
    return %c0_i32, %c0_i32_0 : i32, i32
  }
  func.func @transform_3(%arg0: i32) -> (i32, i32) {
    %c0_i32 = arith.constant 0 : i32
    %c0_i32_0 = arith.constant 0 : i32
    %c0_i32_1 = arith.constant 0 : i32
    return %c0_i32, %c0_i32_0 : i32, i32
  }
  func.func @transform_4(%arg0: i32) -> (i32, i32) {
    %c0_i32 = arith.constant 0 : i32
    %c0_i32_0 = arith.constant 0 : i32
    %c0_i32_1 = arith.constant 0 : i32
    return %c0_i32, %c0_i32_0 : i32, i32
  }
  func.func @transform_5(%arg0: i32) -> (i32, i32) {
    %c0_i32 = arith.constant 0 : i32
    %c0_i32_0 = arith.constant 0 : i32
    return %arg0, %c0_i32 : i32, i32
  }
}

</mosaic_0001>

<llo_original>
// kernel: tpu_custom_call.1
$region0: #{tpu_custom_call.1}
  #allocation0 [shape = 'u32[]', space=smem, size = 0x4, offset = 0x4, fixed_abs, tag = 'smem constant byte address 0x4 - core index']
  #allocation1 [shape = 'u32[144,128]{1,0:T(1,128)}', space=vmem, size = 0x12000, scoped, tag = 'internal scratch']
  %s0 = inlined_call_operand.hbm [shape: f32[8,128], index: 0, kind: input, shape index: {}]
  %s1 = inlined_call_operand.hbm [shape: bf16[768,128], index: 1, kind: input, shape index: {}]
  %s2 = inlined_call_operand.vmem [shape: f32[1,128], index: 2, kind: input, shape index: {}]
  %s3 = inlined_call_operand.hbm [shape: bf16[768,128], index: 3, kind: input, shape index: {}]
  %s4 = inlined_call_operand.vmem [shape: f32[1,128], index: 4, kind: input, shape index: {}]
  %s5 = inlined_call_operand.hbm [shape: f32[8,128], index: 5, kind: output, shape index: {}]
  %s6 = sld [smem:[#allocation0]]
  $region42: #{tpu_custom_call.1} parent=0
    _
  %s8 = ssub.s32 1, %s6
  %s9 = scalar_select 0, %s8, %s6
  $region1: #{tpu_custom_call.1} parent=0
    #allocation2 [shape = 'u8[4096]{0}', space=vmem, size = 0x1000, scoped, tag = 'input window, operand 0, single buffered']
    #allocation3 [shape = 's32[1]{0}', space=sflag, size = 0x4, scoped, tag = 'scoped memory for tpu_custom_call.1']
    #allocation4 [shape = 's32[1]{0}', space=sflag, size = 0x4, scoped, tag = 'scoped memory for tpu_custom_call.1']
    #allocation5 [shape = 'u8[196608]{0}', space=vmem, size = 0x30000, scoped, tag = 'input window, operand 1, single buffered']
    #allocation6 [shape = 's32[1]{0}', space=sflag, size = 0x4, scoped, tag = 'scoped memory for tpu_custom_call.1']
    #allocation7 [shape = 'u8[196608]{0}', space=vmem, size = 0x30000, scoped, tag = 'input window, operand 3, single buffered']
    #allocation8 [shape = 'u8[4096]{0}', space=vmem, size = 0x1000, scoped, tag = 'output window, operand 0, single buffered']
    %10 = vsyncpa [#allocation3], 0
    %11 = vsyncpa [#allocation6], 0
    %12 = vsyncpa [#allocation4], 0
    // Predicated region
    $region2: #{tpu_custom_call.1} parent=1 // pred_check
      _
    $region3: #{tpu_custom_call.1} parent=1 // pred_check_branch
      %14 = sbr.rel (0) target = $region5
    $region4: #{tpu_custom_call.1} parent=1 // pred_region
      %s16 = ssub.s32 128, 128
      %17 = vsyncadd [#allocation3], %s16
      %s19 = sshll.u32 [#allocation2], 4
      %s20 = int_to_ptr.vmem [resolvable:$true] %s19
      %22 = dma.hbm_to_vmem [thread:$0]  %s0, 128, %s20, [#allocation3]
    $region5: #{tpu_custom_call.1} parent=1 // pred_fallthru
      _
    // Predicated region
    $region6: #{tpu_custom_call.1} parent=1 // pred_check
      _
    $region7: #{tpu_custom_call.1} parent=1 // pred_check_branch
      %24 = sbr.rel (0) target = $region9
    $region8: #{tpu_custom_call.1} parent=1 // pred_region
      %s26 = ssub.s32 6144, 6144
      %27 = vsyncadd [#allocation6], %s26
      %s28 = sshll.u32 [#allocation5], 4
      %s29 = int_to_ptr.vmem [resolvable:$true] %s28
      %34 = dma.hbm_to_vmem [thread:$0]  %s1, 6144, %s29, [#allocation6], 64, 64, 4
    $region9: #{tpu_custom_call.1} parent=1 // pred_fallthru
      _
    // Predicated region
    $region10: #{tpu_custom_call.1} parent=1 // pred_check
      _
    $region11: #{tpu_custom_call.1} parent=1 // pred_check_branch
      %36 = sbr.rel (0) target = $region13
    $region12: #{tpu_custom_call.1} parent=1 // pred_region
      _
    $region13: #{tpu_custom_call.1} parent=1 // pred_fallthru
      _
    // Predicated region
    $region14: #{tpu_custom_call.1} parent=1 // pred_check
      _
    $region15: #{tpu_custom_call.1} parent=1 // pred_check_branch
      %38 = sbr.rel (0) target = $region17
    $region16: #{tpu_custom_call.1} parent=1 // pred_region
      %s40 = ssub.s32 6144, 6144
      %41 = vsyncadd [#allocation6], %s40
      %s42 = sshll.u32 [#allocation7], 4
      %s43 = int_to_ptr.vmem [resolvable:$true] %s42
      %48 = dma.hbm_to_vmem [thread:$0]  %s3, 6144, %s43, [#allocation6], 64, 64, 4
    $region17: #{tpu_custom_call.1} parent=1 // pred_fallthru
      _
    // Predicated region
    $region18: #{tpu_custom_call.1} parent=1 // pred_check
      _
    $region19: #{tpu_custom_call.1} parent=1 // pred_check_branch
      %50 = sbr.rel (0) target = $region21
    $region20: #{tpu_custom_call.1} parent=1 // pred_region
      _
    $region21: #{tpu_custom_call.1} parent=1 // pred_fallthru
      _
    // Predicated region
    $region22: #{tpu_custom_call.1} parent=1 // pred_check
      _
    $region23: #{tpu_custom_call.1} parent=1 // pred_check_branch
      %52 = sbr.rel (0) target = $region25
    $region24: #{tpu_custom_call.1} parent=1 // pred_region
      %53 = dma.done [#allocation3], 128
    $region25: #{tpu_custom_call.1} parent=1 // pred_fallthru
      _
    // Predicated region
    $region26: #{tpu_custom_call.1} parent=1 // pred_check
      _
    $region27: #{tpu_custom_call.1} parent=1 // pred_check_branch
      %55 = sbr.rel (0) target = $region29
    $region28: #{tpu_custom_call.1} parent=1 // pred_region
      %56 = dma.done [#allocation6], 6144
    $region29: #{tpu_custom_call.1} parent=1 // pred_fallthru
      _
    // Predicated region
    $region30: #{tpu_custom_call.1} parent=1 // pred_check
      _
    $region31: #{tpu_custom_call.1} parent=1 // pred_check_branch
      %58 = sbr.rel (0) target = $region33
    $region32: #{tpu_custom_call.1} parent=1 // pred_region
      %59 = dma.done [#allocation6], 6144
    $region33: #{tpu_custom_call.1} parent=1 // pred_fallthru
      _
    %v61 = vld [vmem:[#allocation2] sm:$0xff]
    %v62 = vand.u32 2147483647, %v61
    %vm63 = vcmp.le.f32.partialorder %v62, 0.7853982
    %vm64 = vcmp.lt.s32.totalorder %v61, 0
    %v65 = vand.u32 %v61, 2139095040
    %v66 = vshrl.u32 %v65, 23
    %v67 = vsub.s32 %v66, 127
    %v68 = vand.u32 2147483647, %v61
    %v69 = vand.u32 %v68, 8388607
    %v70 = vor.u32 %v69, 8388608
    %v71 = vsub.s32 0, %v70
    %v72 = vadd.s32 %v67, 1
    %vm73 = vcmp.gt.s32.totalorder %v72, 0
    %v74 = vsel %vm73, %v72, 0
    %v75 = vshrl.u32 %v74, 5
    %v76 = vand.u32 %v74, 31
    %v77 = vsub.s32 32, %v76
    %v78 = vshrl.u32 683565275, %v77
    %v79 = vshll.u32 683565275, %v76
    %v80 = vshrl.u32 2475754826, %v77
    %v81 = vor.u32 %v79, %v80
    %v82 = vshll.u32 2475754826, %v76
    %v83 = vshrl.u32 2131351028, %v77
    %v84 = vor.u32 %v82, %v83
    %v85 = vshll.u32 2131351028, %v76
    %v86 = vshrl.u32 2102212464, %v77
    %v87 = vor.u32 %v85, %v86
    %v88 = vshll.u32 2102212464, %v76
    %v89 = vshrl.u32 920167782, %v77
    %v90 = vor.u32 %v88, %v89
    %v91 = vshll.u32 920167782, %v76
    %v92 = vshrl.u32 1326507024, %v77
    %v93 = vor.u32 %v91, %v92
    %vm94 = vcmp.lt.s32.totalorder %v75, 1
    %vm95 = vcmp.lt.s32.totalorder %v75, 2
    %vm96 = vcmp.lt.s32.totalorder %v75, 3
    %vm97 = vcmp.lt.s32.totalorder %v75, 4
    %v98 = vsel %vm94, %v78, %v81
    %v99 = vsel %vm97, %v87, 2102212464
    %v100 = vsel %vm96, %v84, %v99
    %v101 = vsel %vm95, %v98, %v100
    %v102 = vsel %vm94, %v81, %v84
    %v103 = vsel %vm97, %v90, 920167782
    %v104 = vsel %vm96, %v87, %v103
    %v105 = vsel %vm95, %v102, %v104
    %v106 = vsel %vm94, %v84, %v87
    %v107 = vsel %vm97, %v93, 1326507024
    %v108 = vsel %vm96, %v90, %v107
    %v109 = vsel %vm95, %v106, %v108
    %v110 = vshll.u32 %v70, 8
    %v111 = vmul.u32.u64.compose %v110, %v109
    %v112 = vextract.low.u32 %v111
    %v113 = vextract.high.u32 %v111
    %v114 = vmul.u32.u64.compose %v110, %v105
    %v115 = vextract.low.u32 %v114
    %v116 = vextract.high.u32 %v114
    %v117 = vmul.u32 %v110, %v101
    %v118 = vadd.s32 %v113, %v115
    %vm119 = vc.u32 %v113, %v115
    %v120 = vadd.s32 %v116, 1
    %v121 = vsel %vm119, %v120, %v116
    %v122 = vadd.s32 %v117, %v121
    %v123 = vadd.s32 %v122, 536870912
    %v124 = vshrl.u32 %v123, 30
    %v125 = vshll.u32 %v124, 30
    %v126 = vsub.s32 %v122, %v125
    %vm127 = vcmp.lt.s32.totalorder %v126, 0
    %v128 = vsub.s32 0, %v126
    %v129 = vsel %vm127, %v128, %v126
    %v130 = vclz %v129
    %v131 = vsub.s32 %v130, 2
    %vm132 = vcmp.gt.s32.totalorder 0, %v131
    %v133 = vsel %vm132, 0, %v131
    %v134 = vsub.s32 32, %v133
    %v135 = vshll.u32 %v126, %v133
    %v136 = vshrl.u32 %v118, %v134
    %v137 = vor.u32 %v135, %v136
    %v138 = vsub.s32 4294967266, %v133
    %v139 = vadd.s32 %v138, 127
    %v140 = vshll.u32 %v139, 23
    %v141 = vor.u32 4788187, %v140
    %v142 = vand.u32 2147483647, %v141
    %v144 = vcvt.s32.f32 %v137
    %v145 = vmul.f32 %v144, %v142
    %v146 = vxor.u32 %v145, 2147483648
    %v147 = vsel %vm64, %v146, %v145
    %v148 = vsub.s32 4, %v124
    %v149 = vsel %vm64, %v148, %v124
    %v150 = vsel %vm63, %v61, %v147
    %v151 = vsel %vm63, 0, %v149
    %v152 = vcosq.f32.pop %v150
    %v153 = vsinq.f32.pop %v150
    %vm154 = vweird.f32 %v61
    %v155 = vadd.s32 %v151, 3
    %v156 = vand.u32 %v155, 3
    %vm157 = vcmp.lt.s32.totalorder %v156, 2
    %vm158 = vcmp.eq.s32.totalorder %v156, 0
    %v159 = vxor.u32 %v153, 2147483648
    %v160 = vsel %vm158, %v152, %v159
    %vm161 = vcmp.eq.s32.totalorder %v156, 2
    %v162 = vxor.u32 %v152, 2147483648
    %v163 = vsel %vm161, %v162, %v153
    %v164 = vsel %vm157, %v160, %v163
    %v165 = vsel %vm154, nan, %v164
    %v166 = vand.u32 2147483647, %v61
    %vm167 = vcmp.le.f32.partialorder %v166, 0.7853982
    %vm168 = vcmp.lt.s32.totalorder %v61, 0
    %v169 = vand.u32 %v61, 2139095040
    %v170 = vshrl.u32 %v169, 23
    %v171 = vsub.s32 %v170, 127
    %v172 = vand.u32 2147483647, %v61
    %v173 = vand.u32 %v172, 8388607
    %v174 = vor.u32 %v173, 8388608
    %v175 = vsub.s32 0, %v174
    %v176 = vadd.s32 %v171, 1
    %vm177 = vcmp.gt.s32.totalorder %v176, 0
    %v178 = vsel %vm177, %v176, 0
    %v179 = vshrl.u32 %v178, 5
    %v180 = vand.u32 %v178, 31
    %v181 = vsub.s32 32, %v180
    %v182 = vshrl.u32 683565275, %v181
    %v183 = vshll.u32 683565275, %v180
    %v184 = vshrl.u32 2475754826, %v181
    %v185 = vor.u32 %v183, %v184
    %v186 = vshll.u32 2475754826, %v180
    %v187 = vshrl.u32 2131351028, %v181
    %v188 = vor.u32 %v186, %v187
    %v189 = vshll.u32 2131351028, %v180
    %v190 = vshrl.u32 2102212464, %v181
    %v191 = vor.u32 %v189, %v190
    %v192 = vshll.u32 2102212464, %v180
    %v193 = vshrl.u32 920167782, %v181
    %v194 = vor.u32 %v192, %v193
    %v195 = vshll.u32 920167782, %v180
    %v196 = vshrl.u32 1326507024, %v181
    %v197 = vor.u32 %v195, %v196
    %vm198 = vcmp.lt.s32.totalorder %v179, 1
    %vm199 = vcmp.lt.s32.totalorder %v179, 2
    %vm200 = vcmp.lt.s32.totalorder %v179, 3
    %vm201 = vcmp.lt.s32.totalorder %v179, 4
    %v202 = vsel %vm198, %v182, %v185
    %v203 = vsel %vm201, %v191, 2102212464
    %v204 = vsel %vm200, %v188, %v203
    %v205 = vsel %vm199, %v202, %v204
    %v206 = vsel %vm198, %v185, %v188
    %v207 = vsel %vm201, %v194, 920167782
    %v208 = vsel %vm200, %v191, %v207
    %v209 = vsel %vm199, %v206, %v208
    %v210 = vsel %vm198, %v188, %v191
    %v211 = vsel %vm201, %v197, 1326507024
    %v212 = vsel %vm200, %v194, %v211
    %v213 = vsel %vm199, %v210, %v212
    %v214 = vshll.u32 %v174, 8
    %v215 = vmul.u32.u64.compose %v214, %v213
    %v216 = vextract.low.u32 %v215
    %v217 = vextract.high.u32 %v215
    %v218 = vmul.u32.u64.compose %v214, %v209
    %v219 = vextract.low.u32 %v218
    %v220 = vextract.high.u32 %v218
    %v221 = vmul.u32 %v214, %v205
    %v222 = vadd.s32 %v217, %v219
    %vm223 = vc.u32 %v217, %v219
    %v224 = vadd.s32 %v220, 1
    %v225 = vsel %vm223, %v224, %v220
    %v226 = vadd.s32 %v221, %v225
    %v227 = vadd.s32 %v226, 536870912
    %v228 = vshrl.u32 %v227, 30
    %v229 = vshll.u32 %v228, 30
    %v230 = vsub.s32 %v226, %v229
    %vm231 = vcmp.lt.s32.totalorder %v230, 0
    %v232 = vsub.s32 0, %v230
    %v233 = vsel %vm231, %v232, %v230
    %v234 = vclz %v233
    %v235 = vsub.s32 %v234, 2
    %vm236 = vcmp.gt.s32.totalorder 0, %v235
    %v237 = vsel %vm236, 0, %v235
    %v238 = vsub.s32 32, %v237
    %v239 = vshll.u32 %v230, %v237
    %v240 = vshrl.u32 %v222, %v238
    %v241 = vor.u32 %v239, %v240
    %v242 = vsub.s32 4294967266, %v237
    %v243 = vadd.s32 %v242, 127
    %v244 = vshll.u32 %v243, 23
    %v245 = vor.u32 4788187, %v244
    %v246 = vand.u32 2147483647, %v245
    %v248 = vcvt.s32.f32 %v241
    %v249 = vmul.f32 %v248, %v246
    %v250 = vxor.u32 %v249, 2147483648
    %v251 = vsel %vm168, %v250, %v249
    %v252 = vsub.s32 4, %v228
    %v253 = vsel %vm168, %v252, %v228
    %v254 = vsel %vm167, %v61, %v251
    %v255 = vsel %vm167, 0, %v253
    %v256 = vcosq.f32.pop %v254
    %v257 = vsinq.f32.pop %v254
    %vm258 = vweird.f32 %v61
    %v259 = vand.u32 %v255, 3
    %vm260 = vcmp.lt.s32.totalorder %v259, 2
    %vm261 = vcmp.eq.s32.totalorder %v259, 0
    %v262 = vxor.u32 %v257, 2147483648
    %v263 = vsel %vm261, %v256, %v262
    %vm264 = vcmp.eq.s32.totalorder %v259, 2
    %v265 = vxor.u32 %v256, 2147483648
    %v266 = vsel %vm264, %v265, %v257
    %v267 = vsel %vm260, %v263, %v266
    %v268 = vsel %vm258, nan, %v267
    %v269 = vadd.f32 %v268, %v268
    %v270 = vld [vmem:[#allocation5] sm:$0xf]
    %v271 = vld [vmem:[#allocation5 + $0x4] sm:$0xf]
    %v272 = vld [vmem:[#allocation5 + $0x8] sm:$0xf]
    %v273 = vld [vmem:[#allocation5 + $0xc] sm:$0xf]
    %v274 = vld [vmem:[#allocation5 + $0x10] sm:$0xf]
    %v275 = vld [vmem:[#allocation5 + $0x14] sm:$0xf]
    %v276 = vld [vmem:[#allocation5 + $0x18] sm:$0xf]
    %v277 = vld [vmem:[#allocation5 + $0x1c] sm:$0xf]
    %v278 = vld [vmem:[#allocation5 + $0x20] sm:$0xf]
    %v279 = vld [vmem:[#allocation5 + $0x24] sm:$0xf]
    %v280 = vld [vmem:[#allocation5 + $0x28] sm:$0xf]
    %v281 = vld [vmem:[#allocation5 + $0x2c] sm:$0xf]
    %v282 = vld [vmem:[#allocation5 + $0x30] sm:$0xf]
    %v283 = vld [vmem:[#allocation5 + $0x34] sm:$0xf]
    %v284 = vld [vmem:[#allocation5 + $0x38] sm:$0xf]
    %v285 = vld [vmem:[#allocation5 + $0x3c] sm:$0xf]
    %v286 = vld [vmem:[#allocation5 + $0xc0] sm:$0xf]
    %v287 = vld [vmem:[#allocation5 + $0xc4] sm:$0xf]
    %v288 = vld [vmem:[#allocation5 + $0xc8] sm:$0xf]
    %v289 = vld [vmem:[#allocation5 + $0xcc] sm:$0xf]
    %v290 = vld [vmem:[#allocation5 + $0xd0] sm:$0xf]
    %v291 = vld [vmem:[#allocation5 + $0xd4] sm:$0xf]
    %v292 = vld [vmem:[#allocation5 + $0xd8] sm:$0xf]
    %v293 = vld [vmem:[#allocation5 + $0xdc] sm:$0xf]
    %v294 = vld [vmem:[#allocation5 + $0xe0] sm:$0xf]
    %v295 = vld [vmem:[#allocation5 + $0xe4] sm:$0xf]
    %v296 = vld [vmem:[#allocation5 + $0xe8] sm:$0xf]
    %v297 = vld [vmem:[#allocation5 + $0xec] sm:$0xf]
    %v298 = vld [vmem:[#allocation5 + $0xf0] sm:$0xf]
    %v299 = vld [vmem:[#allocation5 + $0xf4] sm:$0xf]
    %v300 = vld [vmem:[#allocation5 + $0xf8] sm:$0xf]
    %v301 = vld [vmem:[#allocation5 + $0xfc] sm:$0xf]
    %v302 = vpack.c.bf16 %v165, %v165
    %v303 = vpack.c.bf16 %v268, %v268
    %v320 = vunpack.c.l.b16 %v286
    %v321 = vunpack.c.l.b16 %v287
    %v322 = vunpack.c.l.b16 %v288
    %v323 = vunpack.c.l.b16 %v289
    %v324 = vunpack.c.l.b16 %v290
    %v325 = vunpack.c.l.b16 %v291
    %v326 = vunpack.c.l.b16 %v292
    %v327 = vunpack.c.l.b16 %v293
    %v328 = vunpack.c.l.b16 %v294
    %v329 = vunpack.c.l.b16 %v295
    %v330 = vunpack.c.l.b16 %v296
    %v331 = vunpack.c.l.b16 %v297
    %v332 = vunpack.c.l.b16 %v298
    %v333 = vunpack.c.l.b16 %v299
    %v334 = vunpack.c.l.b16 %v300
    %v335 = vunpack.c.l.b16 %v301
    %v336 = vpack.c.b16 %v321, %v320
    %v337 = vpack.c.b16 %v323, %v322
    %v338 = vpack.c.b16 %v325, %v324
    %v339 = vpack.c.b16 %v327, %v326
    %v340 = vpack.c.b16 %v329, %v328
    %v341 = vpack.c.b16 %v331, %v330
    %v342 = vpack.c.b16 %v333, %v332
    %v343 = vpack.c.b16 %v335, %v334
    %352 = vmatprep.subr.bf16.mxu0 0
    %353 = vmatpush1.bf16.msra.mxu0 %v336
    %354 = vmatprep.subr.bf16.mxu0 0
    %355 = vmatpush1.bf16.msra.mxu0 %v337
    %356 = vmatprep.subr.bf16.mxu0 0
    %357 = vmatpush1.bf16.msra.mxu0 %v338
    %358 = vmatprep.subr.bf16.mxu0 0
    %359 = vmatpush1.bf16.msra.mxu0 %v339
    %360 = vmatprep.subr.bf16.mxu0 0
    %361 = vmatpush1.bf16.msra.mxu0 %v340
    %362 = vmatprep.subr.bf16.mxu0 0
    %363 = vmatpush1.bf16.msra.mxu0 %v341
    %364 = vmatprep.subr.bf16.mxu0 0
    %365 = vmatpush1.bf16.msra.mxu0 %v342
    %366 = vmatprep.subr.bf16.mxu0 0
    %367 = vmatpush1.bf16.msra.mxu0 %v343
    %368 = vmatprep.subr.bf16.mxu0 0
    %369 = vmatpush1.bf16.msra.mxu0 0
    %370 = vmatprep.subr.bf16.mxu0 0
    %371 = vmatpush1.bf16.msra.mxu0 0
    %372 = vmatprep.subr.bf16.mxu0 0
    %373 = vmatpush1.bf16.msra.mxu0 0
    %374 = vmatprep.subr.bf16.mxu0 0
    %375 = vmatpush1.bf16.msra.mxu0 0
    %376 = vmatprep.subr.bf16.mxu0 0
    %377 = vmatpush1.bf16.msra.mxu0 0
    %378 = vmatprep.subr.bf16.mxu0 0
    %379 = vmatpush1.bf16.msra.mxu0 0
    %380 = vmatprep.subr.bf16.mxu0 0
    %381 = vmatpush1.bf16.msra.mxu0 0
    %382 = vmatprep.subr.bf16.mxu0 0
    %383 = vmatpush1.bf16.msra.mxu0 0
    %384 = vmatprep.mubr.bf16.mxu0 0
    %385 = vmatmul.mubr.bf16.gmra.mrb[0].mxu0 %v303
    %v386 = vpop.f32.mrb[0].mxu0
    %v387 = vadd.f32 0.0, %v386
    %v388 = vpop.f32.mrb[0].mxu0
    %v389 = vpop.f32.mrb[0].mxu0
    %v390 = vpop.f32.mrb[0].mxu0
    %391 = vdwg.mxu0
    %v408 = vunpack.c.l.b16 %v270
    %v409 = vunpack.c.l.b16 %v271
    %v410 = vunpack.c.l.b16 %v272
    %v411 = vunpack.c.l.b16 %v273
    %v412 = vunpack.c.l.b16 %v274
    %v413 = vunpack.c.l.b16 %v275
    %v414 = vunpack.c.l.b16 %v276
    %v415 = vunpack.c.l.b16 %v277
    %v416 = vunpack.c.l.b16 %v278
    %v417 = vunpack.c.l.b16 %v279
    %v418 = vunpack.c.l.b16 %v280
    %v419 = vunpack.c.l.b16 %v281
    %v420 = vunpack.c.l.b16 %v282
    %v421 = vunpack.c.l.b16 %v283
    %v422 = vunpack.c.l.b16 %v284
    %v423 = vunpack.c.l.b16 %v285
    %v424 = vpack.c.b16 %v409, %v408
    %v425 = vpack.c.b16 %v411, %v410
    %v426 = vpack.c.b16 %v413, %v412
    %v427 = vpack.c.b16 %v415, %v414
    %v428 = vpack.c.b16 %v417, %v416
    %v429 = vpack.c.b16 %v419, %v418
    %v430 = vpack.c.b16 %v421, %v420
    %v431 = vpack.c.b16 %v423, %v422
    %440 = vmatprep.subr.bf16.mxu0 0
    %441 = vmatpush1.bf16.msra.mxu0 %v424
    %442 = vmatprep.subr.bf16.mxu0 0
    %443 = vmatpush1.bf16.msra.mxu0 %v425
    %444 = vmatprep.subr.bf16.mxu0 0
    %445 = vmatpush1.bf16.msra.mxu0 %v426
    %446 = vmatprep.subr.bf16.mxu0 0
    %447 = vmatpush1.bf16.msra.mxu0 %v427
    %448 = vmatprep.subr.bf16.mxu0 0
    %449 = vmatpush1.bf16.msra.mxu0 %v428
    %450 = vmatprep.subr.bf16.mxu0 0
    %451 = vmatpush1.bf16.msra.mxu0 %v429
    %452 = vmatprep.subr.bf16.mxu0 0
    %453 = vmatpush1.bf16.msra.mxu0 %v430
    %454 = vmatprep.subr.bf16.mxu0 0
    %455 = vmatpush1.bf16.msra.mxu0 %v431
    %456 = vmatprep.subr.bf16.mxu0 0
    %457 = vmatpush1.bf16.msra.mxu0 0
    %458 = vmatprep.subr.bf16.mxu0 0
    %459 = vmatpush1.bf16.msra.mxu0 0
    %460 = vmatprep.subr.bf16.mxu0 0
    %461 = vmatpush1.bf16.msra.mxu0 0
    %462 = vmatprep.subr.bf16.mxu0 0
    %463 = vmatpush1.bf16.msra.mxu0 0
    %464 = vmatprep.subr.bf16.mxu0 0
    %465 = vmatpush1.bf16.msra.mxu0 0
    %466 = vmatprep.subr.bf16.mxu0 0
    %467 = vmatpush1.bf16.msra.mxu0 0
    %468 = vmatprep.subr.bf16.mxu0 0
    %469 = vmatpush1.bf16.msra.mxu0 0
    %470 = vmatprep.subr.bf16.mxu0 0
    %471 = vmatpush1.bf16.msra.mxu0 0
    %472 = vmatprep.mubr.bf16.mxu0 0
    %473 = vmatmul.mubr.bf16.gmra.mrb[0].mxu0 %v302
    %v474 = vpop.f32.mrb[0].mxu0
    %v475 = vadd.f32 %v387, %v474
    %v476 = vpop.f32.mrb[0].mxu0
    %v477 = vpop.f32.mrb[0].mxu0
    %v478 = vpop.f32.mrb[0].mxu0
    %479 = vdwg.mxu0
    %v480 = vmul.f32 %v269, %v165
    %v481 = vmul.f32 %v269, %v268
    %v482 = vsub.f32 %v481, 1.0
    %v483 = vld [vmem:[#allocation5 + $0x40] sm:$0xf]
    %v484 = vld [vmem:[#allocation5 + $0x44] sm:$0xf]
    %v485 = vld [vmem:[#allocation5 + $0x48] sm:$0xf]
    %v486 = vld [vmem:[#allocation5 + $0x4c] sm:$0xf]
    %v487 = vld [vmem:[#allocation5 + $0x50] sm:$0xf]
    %v488 = vld [vmem:[#allocation5 + $0x54] sm:$0xf]
    %v489 = vld [vmem:[#allocation5 + $0x58] sm:$0xf]
    %v490 = vld [vmem:[#allocation5 + $0x5c] sm:$0xf]
    %v491 = vld [vmem:[#allocation5 + $0x60] sm:$0xf]
    %v492 = vld [vmem:[#allocation5 + $0x64] sm:$0xf]
    %v493 = vld [vmem:[#allocation5 + $0x68] sm:$0xf]
    %v494 = vld [vmem:[#allocation5 + $0x6c] sm:$0xf]
    %v495 = vld [vmem:[#allocation5 + $0x70] sm:$0xf]
    %v496 = vld [vmem:[#allocation5 + $0x74] sm:$0xf]
    %v497 = vld [vmem:[#allocation5 + $0x78] sm:$0xf]
    %v498 = vld [vmem:[#allocation5 + $0x7c] sm:$0xf]
    %v499 = vld [vmem:[#allocation5 + $0x100] sm:$0xf]
    %v500 = vld [vmem:[#allocation5 + $0x104] sm:$0xf]
    %v501 = vld [vmem:[#allocation5 + $0x108] sm:$0xf]
    %v502 = vld [vmem:[#allocation5 + $0x10c] sm:$0xf]
    %v503 = vld [vmem:[#allocation5 + $0x110] sm:$0xf]
    %v504 = vld [vmem:[#allocation5 + $0x114] sm:$0xf]
    %v505 = vld [vmem:[#allocation5 + $0x118] sm:$0xf]
    %v506 = vld [vmem:[#allocation5 + $0x11c] sm:$0xf]
    %v507 = vld [vmem:[#allocation5 + $0x120] sm:$0xf]
    %v508 = vld [vmem:[#allocation5 + $0x124] sm:$0xf]
    %v509 = vld [vmem:[#allocation5 + $0x128] sm:$0xf]
    %v510 = vld [vmem:[#allocation5 + $0x12c] sm:$0xf]
    %v511 = vld [vmem:[#allocation5 + $0x130] sm:$0xf]
    %v512 = vld [vmem:[#allocation5 + $0x134] sm:$0xf]
    %v513 = vld [vmem:[#allocation5 + $0x138] sm:$0xf]
    %v514 = vld [vmem:[#allocation5 + $0x13c] sm:$0xf]
    %v515 = vpack.c.bf16 %v480, %v480
    %v516 = vpack.c.bf16 %v482, %v482
    %v533 = vunpack.c.l.b16 %v499
    %v534 = vunpack.c.l.b16 %v500
    %v535 = vunpack.c.l.b16 %v501
    %v536 = vunpack.c.l.b16 %v502
    %v537 = vunpack.c.l.b16 %v503
    %v538 = vunpack.c.l.b16 %v504
    %v539 = vunpack.c.l.b16 %v505
    %v540 = vunpack.c.l.b16 %v506
    %v541 = vunpack.c.l.b16 %v507
    %v542 = vunpack.c.l.b16 %v508
    %v543 = vunpack.c.l.b16 %v509
    %v544 = vunpack.c.l.b16 %v510
    %v545 = vunpack.c.l.b16 %v511
    %v546 = vunpack.c.l.b16 %v512
    %v547 = vunpack.c.l.b16 %v513
    %v548 = vunpack.c.l.b16 %v514
    %v549 = vpack.c.b16 %v534, %v533
    %v550 = vpack.c.b16 %v536, %v535
    %v551 = vpack.c.b16 %v538, %v537
    %v552 = vpack.c.b16 %v540, %v539
    %v553 = vpack.c.b16 %v542, %v541
    %v554 = vpack.c.b16 %v544, %v543
    %v555 = vpack.c.b16 %v546, %v545
    %v556 = vpack.c.b16 %v548, %v547
    %565 = vmatprep.subr.bf16.mxu0 0
    %566 = vmatpush1.bf16.msra.mxu0 %v549
    %567 = vmatprep.subr.bf16.mxu0 0
    %568 = vmatpush1.bf16.msra.mxu0 %v550
    %569 = vmatprep.subr.bf16.mxu0 0
    %570 = vmatpush1.bf16.msra.mxu0 %v551
    %571 = vmatprep.subr.bf16.mxu0 0
    %572 = vmatpush1.bf16.msra.mxu0 %v552
    %573 = vmatprep.subr.bf16.mxu0 0
    %574 = vmatpush1.bf16.msra.mxu0 %v553
    %575 = vmatprep.subr.bf16.mxu0 0
    %576 = vmatpush1.bf16.msra.mxu0 %v554
    %577 = vmatprep.subr.bf16.mxu0 0
    %578 = vmatpush1.bf16.msra.mxu0 %v555
    %579 = vmatprep.subr.bf16.mxu0 0
    %580 = vmatpush1.bf16.msra.mxu0 %v556
    %581 = vmatprep.subr.bf16.mxu0 0
    %582 = vmatpush1.bf16.msra.mxu0 0
    %583 = vmatprep.subr.bf16.mxu0 0
    %584 = vmatpush1.bf16.msra.mxu0 0
    %585 = vmatprep.subr.bf16.mxu0 0
    %586 = vmatpush1.bf16.msra.mxu0 0
    %587 = vmatprep.subr.bf16.mxu0 0
    %588 = vmatpush1.bf16.msra.mxu0 0
    %589 = vmatprep.subr.bf16.mxu0 0
    %590 = vmatpush1.bf16.msra.mxu0 0
    %591 = vmatprep.subr.bf16.mxu0 0
    %592 = vmatpush1.bf16.msra.mxu0 0
    %593 = vmatprep.subr.bf16.mxu0 0
    %594 = vmatpush1.bf16.msra.mxu0 0
    %595 = vmatprep.subr.bf16.mxu0 0
    %596 = vmatpush1.bf16.msra.mxu0 0
    %597 = vmatprep.mubr.bf16.mxu0 0
    %598 = vmatmul.mubr.bf16.gmra.mrb[0].mxu0 %v516
    %v599 = vpop.f32.mrb[0].mxu0
    %v600 = vadd.f32 0.0, %v599
    %v601 = vpop.f32.mrb[0].mxu0
    %v602 = vpop.f32.mrb[0].mxu0
    %v603 = vpop.f32.mrb[0].mxu0
    %604 = vdwg.mxu0
    %v621 = vunpack.c.l.b16 %v483
    %v622 = vunpack.c.l.b16 %v484
    %v623 = vunpack.c.l.b16 %v485
    %v624 = vunpack.c.l.b16 %v486
    %v625 = vunpack.c.l.b16 %v487
    %v626 = vunpack.c.l.b16 %v488
    %v627 = vunpack.c.l.b16 %v489
    %v628 = vunpack.c.l.b16 %v490
    %v629 = vunpack.c.l.b16 %v491
    %v630 = vunpack.c.l.b16 %v492
    %v631 = vunpack.c.l.b16 %v493
    %v632 = vunpack.c.l.b16 %v494
    %v633 = vunpack.c.l.b16 %v495
    %v634 = vunpack.c.l.b16 %v496
    %v635 = vunpack.c.l.b16 %v497
    %v636 = vunpack.c.l.b16 %v498
    %v637 = vpack.c.b16 %v622, %v621
    %v638 = vpack.c.b16 %v624, %v623
    %v639 = vpack.c.b16 %v626, %v625
    %v640 = vpack.c.b16 %v628, %v627
    %v641 = vpack.c.b16 %v630, %v629
    %v642 = vpack.c.b16 %v632, %v631
    %v643 = vpack.c.b16 %v634, %v633
    %v644 = vpack.c.b16 %v636, %v635
    %653 = vmatprep.subr.bf16.mxu0 0
    %654 = vmatpush1.bf16.msra.mxu0 %v637
    %655 = vmatprep.subr.bf16.mxu0 0
    %656 = vmatpush1.bf16.msra.mxu0 %v638
    %657 = vmatprep.subr.bf16.mxu0 0
    %658 = vmatpush1.bf16.msra.mxu0 %v639
    %659 = vmatprep.subr.bf16.mxu0 0
    %660 = vmatpush1.bf16.msra.mxu0 %v640
    %661 = vmatprep.subr.bf16.mxu0 0
    %662 = vmatpush1.bf16.msra.mxu0 %v641
    %663 = vmatprep.subr.bf16.mxu0 0
    %664 = vmatpush1.bf16.msra.mxu0 %v642
    %665 = vmatprep.subr.bf16.mxu0 0
    %666 = vmatpush1.bf16.msra.mxu0 %v643
    %667 = vmatprep.subr.bf16.mxu0 0
    %668 = vmatpush1.bf16.msra.mxu0 %v644
    %669 = vmatprep.subr.bf16.mxu0 0
    %670 = vmatpush1.bf16.msra.mxu0 0
    %671 = vmatprep.subr.bf16.mxu0 0
    %672 = vmatpush1.bf16.msra.mxu0 0
    %673 = vmatprep.subr.bf16.mxu0 0
    %674 = vmatpush1.bf16.msra.mxu0 0
    %675 = vmatprep.subr.bf16.mxu0 0
    %676 = vmatpush1.bf16.msra.mxu0 0
    %677 = vmatprep.subr.bf16.mxu0 0
    %678 = vmatpush1.bf16.msra.mxu0 0
    %679 = vmatprep.subr.bf16.mxu0 0
    %680 = vmatpush1.bf16.msra.mxu0 0
    %681 = vmatprep.subr.bf16.mxu0 0
    %682 = vmatpush1.bf16.msra.mxu0 0
    %683 = vmatprep.subr.bf16.mxu0 0
    %684 = vmatpush1.bf16.msra.mxu0 0
    %685 = vmatprep.mubr.bf16.mxu0 0
    %686 = vmatmul.mubr.bf16.gmra.mrb[0].mxu0 %v515
    %v687 = vpop.f32.mrb[0].mxu0
    %v688 = vadd.f32 %v600, %v687
    %v689 = vpop.f32.mrb[0].mxu0
    %v690 = vpop.f32.mrb[0].mxu0
    %v691 = vpop.f32.mrb[0].mxu0
    %692 = vdwg.mxu0
    %v693 = vadd.f32 %v475, %v688
    %v694 = vmul.f32 %v269, %v480
    %v695 = vsub.f32 %v694, %v165
    %v696 = vmul.f32 %v269, %v482
    %v697 = vsub.f32 %v696, %v268
    %v698 = vld [vmem:[#allocation5 + $0x80] sm:$0xf]
    %v699 = vld [vmem:[#allocation5 + $0x84] sm:$0xf]
    %v700 = vld [vmem:[#allocation5 + $0x88] sm:$0xf]
    %v701 = vld [vmem:[#allocation5 + $0x8c] sm:$0xf]
    %v702 = vld [vmem:[#allocation5 + $0x90] sm:$0xf]
    %v703 = vld [vmem:[#allocation5 + $0x94] sm:$0xf]
    %v704 = vld [vmem:[#allocation5 + $0x98] sm:$0xf]
    %v705 = vld [vmem:[#allocation5 + $0x9c] sm:$0xf]
    %v706 = vld [vmem:[#allocation5 + $0xa0] sm:$0xf]
    %v707 = vld [vmem:[#allocation5 + $0xa4] sm:$0xf]
    %v708 = vld [vmem:[#allocation5 + $0xa8] sm:$0xf]
    %v709 = vld [vmem:[#allocation5 + $0xac] sm:$0xf]
    %v710 = vld [vmem:[#allocation5 + $0xb0] sm:$0xf]
    %v711 = vld [vmem:[#allocation5 + $0xb4] sm:$0xf]
    %v712 = vld [vmem:[#allocation5 + $0xb8] sm:$0xf]
    %v713 = vld [vmem:[#allocation5 + $0xbc] sm:$0xf]
    %v714 = vld [vmem:[#allocation5 + $0x140] sm:$0xf]
    %v715 = vld [vmem:[#allocation5 + $0x144] sm:$0xf]
    %v716 = vld [vmem:[#allocation5 + $0x148] sm:$0xf]
    %v717 = vld [vmem:[#allocation5 + $0x14c] sm:$0xf]
    %v718 = vld [vmem:[#allocation5 + $0x150] sm:$0xf]
    %v719 = vld [vmem:[#allocation5 + $0x154] sm:$0xf]
    %v720 = vld [vmem:[#allocation5 + $0x158] sm:$0xf]
    %v721 = vld [vmem:[#allocation5 + $0x15c] sm:$0xf]
    %v722 = vld [vmem:[#allocation5 + $0x160] sm:$0xf]
    %v723 = vld [vmem:[#allocation5 + $0x164] sm:$0xf]
    %v724 = vld [vmem:[#allocation5 + $0x168] sm:$0xf]
    %v725 = vld [vmem:[#allocation5 + $0x16c] sm:$0xf]
    %v726 = vld [vmem:[#allocation5 + $0x170] sm:$0xf]
    %v727 = vld [vmem:[#allocation5 + $0x174] sm:$0xf]
    %v728 = vld [vmem:[#allocation5 + $0x178] sm:$0xf]
    %v729 = vld [vmem:[#allocation5 + $0x17c] sm:$0xf]
    %v730 = vpack.c.bf16 %v695, %v695
    %v731 = vpack.c.bf16 %v697, %v697
    %v748 = vunpack.c.l.b16 %v714
    %v749 = vunpack.c.l.b16 %v715
    %v750 = vunpack.c.l.b16 %v716
    %v751 = vunpack.c.l.b16 %v717
    %v752 = vunpack.c.l.b16 %v718
    %v753 = vunpack.c.l.b16 %v719
    %v754 = vunpack.c.l.b16 %v720
    %v755 = vunpack.c.l.b16 %v721
    %v756 = vunpack.c.l.b16 %v722
    %v757 = vunpack.c.l.b16 %v723
    %v758 = vunpack.c.l.b16 %v724
    %v759 = vunpack.c.l.b16 %v725
    %v760 = vunpack.c.l.b16 %v726
    %v761 = vunpack.c.l.b16 %v727
    %v762 = vunpack.c.l.b16 %v728
    %v763 = vunpack.c.l.b16 %v729
    %v764 = vpack.c.b16 %v749, %v748
    %v765 = vpack.c.b16 %v751, %v750
    %v766 = vpack.c.b16 %v753, %v752
    %v767 = vpack.c.b16 %v755, %v754
    %v768 = vpack.c.b16 %v757, %v756
    %v769 = vpack.c.b16 %v759, %v758
    %v770 = vpack.c.b16 %v761, %v760
    %v771 = vpack.c.b16 %v763, %v762
    %780 = vmatprep.subr.bf16.mxu0 0
    %781 = vmatpush1.bf16.msra.mxu0 %v764
    %782 = vmatprep.subr.bf16.mxu0 0
    %783 = vmatpush1.bf16.msra.mxu0 %v765
    %784 = vmatprep.subr.bf16.mxu0 0
    %785 = vmatpush1.bf16.msra.mxu0 %v766
    %786 = vmatprep.subr.bf16.mxu0 0
    %787 = vmatpush1.bf16.msra.mxu0 %v767
    %788 = vmatprep.subr.bf16.mxu0 0
    %789 = vmatpush1.bf16.msra.mxu0 %v768
    %790 = vmatprep.subr.bf16.mxu0 0
    %791 = vmatpush1.bf16.msra.mxu0 %v769
    %792 = vmatprep.subr.bf16.mxu0 0
    %793 = vmatpush1.bf16.msra.mxu0 %v770
    %794 = vmatprep.subr.bf16.mxu0 0
    %795 = vmatpush1.bf16.msra.mxu0 %v771
    %796 = vmatprep.subr.bf16.mxu0 0
    %797 = vmatpush1.bf16.msra.mxu0 0
    %798 = vmatprep.subr.bf16.mxu0 0
    %799 = vmatpush1.bf16.msra.mxu0 0
    %800 = vmatprep.subr.bf16.mxu0 0
    %801 = vmatpush1.bf16.msra.mxu0 0
    %802 = vmatprep.subr.bf16.mxu0 0
    %803 = vmatpush1.bf16.msra.mxu0 0
    %804 = vmatprep.subr.bf16.mxu0 0
    %805 = vmatpush1.bf16.msra.mxu0 0
    %806 = vmatprep.subr.bf16.mxu0 0
    %807 = vmatpush1.bf16.msra.mxu0 0
    %808 = vmatprep.subr.bf16.mxu0 0
    %809 = vmatpush1.bf16.msra.mxu0 0
    %810 = vmatprep.subr.bf16.mxu0 0
    %811 = vmatpush1.bf16.msra.mxu0 0
    %812 = vmatprep.mubr.bf16.mxu0 0
    %813 = vmatmul.mubr.bf16.gmra.mrb[0].mxu0 %v731
    %v814 = vpop.f32.mrb[0].mxu0
    %v815 = vadd.f32 0.0, %v814
    %v816 = vpop.f32.mrb[0].mxu0
    %v817 = vpop.f32.mrb[0].mxu0
    %v818 = vpop.f32.mrb[0].mxu0
    %819 = vdwg.mxu0
    %v836 = vunpack.c.l.b16 %v698
    %v837 = vunpack.c.l.b16 %v699
    %v838 = vunpack.c.l.b16 %v700
    %v839 = vunpack.c.l.b16 %v701
    %v840 = vunpack.c.l.b16 %v702
    %v841 = vunpack.c.l.b16 %v703
    %v842 = vunpack.c.l.b16 %v704
    %v843 = vunpack.c.l.b16 %v705
    %v844 = vunpack.c.l.b16 %v706
    %v845 = vunpack.c.l.b16 %v707
    %v846 = vunpack.c.l.b16 %v708
    %v847 = vunpack.c.l.b16 %v709
    %v848 = vunpack.c.l.b16 %v710
    %v849 = vunpack.c.l.b16 %v711
    %v850 = vunpack.c.l.b16 %v712
    %v851 = vunpack.c.l.b16 %v713
    %v852 = vpack.c.b16 %v837, %v836
    %v853 = vpack.c.b16 %v839, %v838
    %v854 = vpack.c.b16 %v841, %v840
    %v855 = vpack.c.b16 %v843, %v842
    %v856 = vpack.c.b16 %v845, %v844
    %v857 = vpack.c.b16 %v847, %v846
    %v858 = vpack.c.b16 %v849, %v848
    %v859 = vpack.c.b16 %v851, %v850
    %868 = vmatprep.subr.bf16.mxu0 0
    %869 = vmatpush1.bf16.msra.mxu0 %v852
    %870 = vmatprep.subr.bf16.mxu0 0
    %871 = vmatpush1.bf16.msra.mxu0 %v853
    %872 = vmatprep.subr.bf16.mxu0 0
    %873 = vmatpush1.bf16.msra.mxu0 %v854
    %874 = vmatprep.subr.bf16.mxu0 0
    %875 = vmatpush1.bf16.msra.mxu0 %v855
    %876 = vmatprep.subr.bf16.mxu0 0
    %877 = vmatpush1.bf16.msra.mxu0 %v856
    %878 = vmatprep.subr.bf16.mxu0 0
    %879 = vmatpush1.bf16.msra.mxu0 %v857
    %880 = vmatprep.subr.bf16.mxu0 0
    %881 = vmatpush1.bf16.msra.mxu0 %v858
    %882 = vmatprep.subr.bf16.mxu0 0
    %883 = vmatpush1.bf16.msra.mxu0 %v859
    %884 = vmatprep.subr.bf16.mxu0 0
    %885 = vmatpush1.bf16.msra.mxu0 0
    %886 = vmatprep.subr.bf16.mxu0 0
    %887 = vmatpush1.bf16.msra.mxu0 0
    %888 = vmatprep.subr.bf16.mxu0 0
    %889 = vmatpush1.bf16.msra.mxu0 0
    %890 = vmatprep.subr.bf16.mxu0 0
    %891 = vmatpush1.bf16.msra.mxu0 0
    %892 = vmatprep.subr.bf16.mxu0 0
    %893 = vmatpush1.bf16.msra.mxu0 0
    %894 = vmatprep.subr.bf16.mxu0 0
    %895 = vmatpush1.bf16.msra.mxu0 0
    %896 = vmatprep.subr.bf16.mxu0 0
    %897 = vmatpush1.bf16.msra.mxu0 0
    %898 = vmatprep.subr.bf16.mxu0 0
    %899 = vmatpush1.bf16.msra.mxu0 0
    %900 = vmatprep.mubr.bf16.mxu0 0
    %901 = vmatmul.mubr.bf16.gmra.mrb[0].mxu0 %v730
    %v902 = vpop.f32.mrb[0].mxu0
    %v903 = vadd.f32 %v815, %v902
    %v904 = vpop.f32.mrb[0].mxu0
    %v905 = vpop.f32.mrb[0].mxu0
    %v906 = vpop.f32.mrb[0].mxu0
    %907 = vdwg.mxu0
    %v908 = vadd.f32 %v693, %v903
    %v909 = vld [vmem:[%s2] sm:$0x1]
    %v911 = vlaneseq
    %v912 = vshrl.u32 %v911, 7
    %v913 = vsub.s32 0, %v912
    %v914 = vrot.slane %v909, %v913
    %v916 = vadd.f32 %v908, %v914
    %v917 = vand.u32 2147483647, %v916
    %vm918 = vcmp.le.f32.partialorder %v917, 0.7853982
    %vm919 = vcmp.lt.s32.totalorder %v916, 0
    %v920 = vand.u32 %v916, 2139095040
    %v921 = vshrl.u32 %v920, 23
    %v922 = vsub.s32 %v921, 127
    %v923 = vand.u32 2147483647, %v916
    %v924 = vand.u32 %v923, 8388607
    %v925 = vor.u32 %v924, 8388608
    %v926 = vsub.s32 0, %v925
    %v927 = vadd.s32 %v922, 1
    %vm928 = vcmp.gt.s32.totalorder %v927, 0
    %v929 = vsel %vm928, %v927, 0
    %v930 = vshrl.u32 %v929, 5
    %v931 = vand.u32 %v929, 31
    %v932 = vsub.s32 32, %v931
    %v933 = vshrl.u32 683565275, %v932
    %v934 = vshll.u32 683565275, %v931
    %v935 = vshrl.u32 2475754826, %v932
    %v936 = vor.u32 %v934, %v935
    %v937 = vshll.u32 2475754826, %v931
    %v938 = vshrl.u32 2131351028, %v932
    %v939 = vor.u32 %v937, %v938
    %v940 = vshll.u32 2131351028, %v931
    %v941 = vshrl.u32 2102212464, %v932
    %v942 = vor.u32 %v940, %v941
    %v943 = vshll.u32 2102212464, %v931
    %v944 = vshrl.u32 920167782, %v932
    %v945 = vor.u32 %v943, %v944
    %v946 = vshll.u32 920167782, %v931
    %v947 = vshrl.u32 1326507024, %v932
    %v948 = vor.u32 %v946, %v947
    %vm949 = vcmp.lt.s32.totalorder %v930, 1
    %vm950 = vcmp.lt.s32.totalorder %v930, 2
    %vm951 = vcmp.lt.s32.totalorder %v930, 3
    %vm952 = vcmp.lt.s32.totalorder %v930, 4
    %v953 = vsel %vm949, %v933, %v936
    %v954 = vsel %vm952, %v942, 2102212464
    %v955 = vsel %vm951, %v939, %v954
    %v956 = vsel %vm950, %v953, %v955
    %v957 = vsel %vm949, %v936, %v939
    %v958 = vsel %vm952, %v945, 920167782
    %v959 = vsel %vm951, %v942, %v958
    %v960 = vsel %vm950, %v957, %v959
    %v961 = vsel %vm949, %v939, %v942
    %v962 = vsel %vm952, %v948, 1326507024
    %v963 = vsel %vm951, %v945, %v962
    %v964 = vsel %vm950, %v961, %v963
    %v965 = vshll.u32 %v925, 8
    %v966 = vmul.u32.u64.compose %v965, %v964
    %v967 = vextract.low.u32 %v966
    %v968 = vextract.high.u32 %v966
    %v969 = vmul.u32.u64.compose %v965, %v960
    %v970 = vextract.low.u32 %v969
    %v971 = vextract.high.u32 %v969
    %v972 = vmul.u32 %v965, %v956
    %v973 = vadd.s32 %v968, %v970
    %vm974 = vc.u32 %v968, %v970
    %v975 = vadd.s32 %v971, 1
    %v976 = vsel %vm974, %v975, %v971
    %v977 = vadd.s32 %v972, %v976
    %v978 = vadd.s32 %v977, 536870912
    %v979 = vshrl.u32 %v978, 30
    %v980 = vshll.u32 %v979, 30
    %v981 = vsub.s32 %v977, %v980
    %vm982 = vcmp.lt.s32.totalorder %v981, 0
    %v983 = vsub.s32 0, %v981
    %v984 = vsel %vm982, %v983, %v981
    %v985 = vclz %v984
    %v986 = vsub.s32 %v985, 2
    %vm987 = vcmp.gt.s32.totalorder 0, %v986
    %v988 = vsel %vm987, 0, %v986
    %v989 = vsub.s32 32, %v988
    %v990 = vshll.u32 %v981, %v988
    %v991 = vshrl.u32 %v973, %v989
    %v992 = vor.u32 %v990, %v991
    %v993 = vsub.s32 4294967266, %v988
    %v994 = vadd.s32 %v993, 127
    %v995 = vshll.u32 %v994, 23
    %v996 = vor.u32 4788187, %v995
    %v997 = vand.u32 2147483647, %v996
    %v999 = vcvt.s32.f32 %v992
    %v1000 = vmul.f32 %v999, %v997
    %v1001 = vxor.u32 %v1000, 2147483648
    %v1002 = vsel %vm919, %v1001, %v1000
    %v1003 = vsub.s32 4, %v979
    %v1004 = vsel %vm919, %v1003, %v979
    %v1005 = vsel %vm918, %v916, %v1002
    %v1006 = vsel %vm918, 0, %v1004
    %v1007 = vcosq.f32.pop %v1005
    %v1008 = vsinq.f32.pop %v1005
    %vm1009 = vweird.f32 %v916
    %v1010 = vadd.s32 %v1006, 3
    %v1011 = vand.u32 %v1010, 3
    %vm1012 = vcmp.lt.s32.totalorder %v1011, 2
    %vm1013 = vcmp.eq.s32.totalorder %v1011, 0
    %v1014 = vxor.u32 %v1008, 2147483648
    %v1015 = vsel %vm1013, %v1007, %v1014
    %vm1016 = vcmp.eq.s32.totalorder %v1011, 2
    %v1017 = vxor.u32 %v1007, 2147483648
    %v1018 = vsel %vm1016, %v1017, %v1008
    %v1019 = vsel %vm1012, %v1015, %v1018
    %v1020 = vsel %vm1009, nan, %v1019
    %v1021 = vand.u32 2147483647, %v916
    %vm1022 = vcmp.le.f32.partialorder %v1021, 0.7853982
    %vm1023 = vcmp.lt.s32.totalorder %v916, 0
    %v1024 = vand.u32 %v916, 2139095040
    %v1025 = vshrl.u32 %v1024, 23
    %v1026 = vsub.s32 %v1025, 127
    %v1027 = vand.u32 2147483647, %v916
    %v1028 = vand.u32 %v1027, 8388607
    %v1029 = vor.u32 %v1028, 8388608
    %v1030 = vsub.s32 0, %v1029
    %v1031 = vadd.s32 %v1026, 1
    %vm1032 = vcmp.gt.s32.totalorder %v1031, 0
    %v1033 = vsel %vm1032, %v1031, 0
    %v1034 = vshrl.u32 %v1033, 5
    %v1035 = vand.u32 %v1033, 31
    %v1036 = vsub.s32 32, %v1035
    %v1037 = vshrl.u32 683565275, %v1036
    %v1038 = vshll.u32 683565275, %v1035
    %v1039 = vshrl.u32 2475754826, %v1036
    %v1040 = vor.u32 %v1038, %v1039
    %v1041 = vshll.u32 2475754826, %v1035
    %v1042 = vshrl.u32 2131351028, %v1036
    %v1043 = vor.u32 %v1041, %v1042
    %v1044 = vshll.u32 2131351028, %v1035
    %v1045 = vshrl.u32 2102212464, %v1036
    %v1046 = vor.u32 %v1044, %v1045
    %v1047 = vshll.u32 2102212464, %v1035
    %v1048 = vshrl.u32 920167782, %v1036
    %v1049 = vor.u32 %v1047, %v1048
    %v1050 = vshll.u32 920167782, %v1035
    %v1051 = vshrl.u32 1326507024, %v1036
    %v1052 = vor.u32 %v1050, %v1051
    %vm1053 = vcmp.lt.s32.totalorder %v1034, 1
    %vm1054 = vcmp.lt.s32.totalorder %v1034, 2
    %vm1055 = vcmp.lt.s32.totalorder %v1034, 3
    %vm1056 = vcmp.lt.s32.totalorder %v1034, 4
    %v1057 = vsel %vm1053, %v1037, %v1040
    %v1058 = vsel %vm1056, %v1046, 2102212464
    %v1059 = vsel %vm1055, %v1043, %v1058
    %v1060 = vsel %vm1054, %v1057, %v1059
    %v1061 = vsel %vm1053, %v1040, %v1043
    %v1062 = vsel %vm1056, %v1049, 920167782
    %v1063 = vsel %vm1055, %v1046, %v1062
    %v1064 = vsel %vm1054, %v1061, %v1063
    %v1065 = vsel %vm1053, %v1043, %v1046
    %v1066 = vsel %vm1056, %v1052, 1326507024
    %v1067 = vsel %vm1055, %v1049, %v1066
    %v1068 = vsel %vm1054, %v1065, %v1067
    %v1069 = vshll.u32 %v1029, 8
    %v1070 = vmul.u32.u64.compose %v1069, %v1068
    %v1071 = vextract.low.u32 %v1070
    %v1072 = vextract.high.u32 %v1070
    %v1073 = vmul.u32.u64.compose %v1069, %v1064
    %v1074 = vextract.low.u32 %v1073
    %v1075 = vextract.high.u32 %v1073
    %v1076 = vmul.u32 %v1069, %v1060
    %v1077 = vadd.s32 %v1072, %v1074
    %vm1078 = vc.u32 %v1072, %v1074
    %v1079 = vadd.s32 %v1075, 1
    %v1080 = vsel %vm1078, %v1079, %v1075
    %v1081 = vadd.s32 %v1076, %v1080
    %v1082 = vadd.s32 %v1081, 536870912
    %v1083 = vshrl.u32 %v1082, 30
    %v1084 = vshll.u32 %v1083, 30
    %v1085 = vsub.s32 %v1081, %v1084
    %vm1086 = vcmp.lt.s32.totalorder %v1085, 0
    %v1087 = vsub.s32 0, %v1085
    %v1088 = vsel %vm1086, %v1087, %v1085
    %v1089 = vclz %v1088
    %v1090 = vsub.s32 %v1089, 2
    %vm1091 = vcmp.gt.s32.totalorder 0, %v1090
    %v1092 = vsel %vm1091, 0, %v1090
    %v1093 = vsub.s32 32, %v1092
    %v1094 = vshll.u32 %v1085, %v1092
    %v1095 = vshrl.u32 %v1077, %v1093
    %v1096 = vor.u32 %v1094, %v1095
    %v1097 = vsub.s32 4294967266, %v1092
    %v1098 = vadd.s32 %v1097, 127
    %v1099 = vshll.u32 %v1098, 23
    %v1100 = vor.u32 4788187, %v1099
    %v1101 = vand.u32 2147483647, %v1100
    %v1103 = vcvt.s32.f32 %v1096
    %v1104 = vmul.f32 %v1103, %v1101
    %v1105 = vxor.u32 %v1104, 2147483648
    %v1106 = vsel %vm1023, %v1105, %v1104
    %v1107 = vsub.s32 4, %v1083
    %v1108 = vsel %vm1023, %v1107, %v1083
    %v1109 = vsel %vm1022, %v916, %v1106
    %v1110 = vsel %vm1022, 0, %v1108
    %v1111 = vcosq.f32.pop %v1109
    %v1112 = vsinq.f32.pop %v1109
    %vm1113 = vweird.f32 %v916
    %v1114 = vand.u32 %v1110, 3
    %vm1115 = vcmp.lt.s32.totalorder %v1114, 2
    %vm1116 = vcmp.eq.s32.totalorder %v1114, 0
    %v1117 = vxor.u32 %v1112, 2147483648
    %v1118 = vsel %vm1116, %v1111, %v1117
    %vm1119 = vcmp.eq.s32.totalorder %v1114, 2
    %v1120 = vxor.u32 %v1111, 2147483648
    %v1121 = vsel %vm1119, %v1120, %v1112
    %v1122 = vsel %vm1115, %v1118, %v1121
    %v1123 = vsel %vm1113, nan, %v1122
    %v1124 = vadd.f32 %v1123, %v1123
    %v1125 = vld [vmem:[#allocation7] sm:$0xf]
    %v1126 = vld [vmem:[#allocation7 + $0x4] sm:$0xf]
    %v1127 = vld [vmem:[#allocation7 + $0x8] sm:$0xf]
    %v1128 = vld [vmem:[#allocation7 + $0xc] sm:$0xf]
    %v1129 = vld [vmem:[#allocation7 + $0x10] sm:$0xf]
    %v1130 = vld [vmem:[#allocation7 + $0x14] sm:$0xf]
    %v1131 = vld [vmem:[#allocation7 + $0x18] sm:$0xf]
    %v1132 = vld [vmem:[#allocation7 + $0x1c] sm:$0xf]
    %v1133 = vld [vmem:[#allocation7 + $0x20] sm:$0xf]
    %v1134 = vld [vmem:[#allocation7 + $0x24] sm:$0xf]
    %v1135 = vld [vmem:[#allocation7 + $0x28] sm:$0xf]
    %v1136 = vld [vmem:[#allocation7 + $0x2c] sm:$0xf]
    %v1137 = vld [vmem:[#allocation7 + $0x30] sm:$0xf]
    %v1138 = vld [vmem:[#allocation7 + $0x34] sm:$0xf]
    %v1139 = vld [vmem:[#allocation7 + $0x38] sm:$0xf]
    %v1140 = vld [vmem:[#allocation7 + $0x3c] sm:$0xf]
    %v1141 = vld [vmem:[#allocation7 + $0xc0] sm:$0xf]
    %v1142 = vld [vmem:[#allocation7 + $0xc4] sm:$0xf]
    %v1143 = vld [vmem:[#allocation7 + $0xc8] sm:$0xf]
    %v1144 = vld [vmem:[#allocation7 + $0xcc] sm:$0xf]
    %v1145 = vld [vmem:[#allocation7 + $0xd0] sm:$0xf]
    %v1146 = vld [vmem:[#allocation7 + $0xd4] sm:$0xf]
    %v1147 = vld [vmem:[#allocation7 + $0xd8] sm:$0xf]
    %v1148 = vld [vmem:[#allocation7 + $0xdc] sm:$0xf]
    %v1149 = vld [vmem:[#allocation7 + $0xe0] sm:$0xf]
    %v1150 = vld [vmem:[#allocation7 + $0xe4] sm:$0xf]
    %v1151 = vld [vmem:[#allocation7 + $0xe8] sm:$0xf]
    %v1152 = vld [vmem:[#allocation7 + $0xec] sm:$0xf]
    %v1153 = vld [vmem:[#allocation7 + $0xf0] sm:$0xf]
    %v1154 = vld [vmem:[#allocation7 + $0xf4] sm:$0xf]
    %v1155 = vld [vmem:[#allocation7 + $0xf8] sm:$0xf]
    %v1156 = vld [vmem:[#allocation7 + $0xfc] sm:$0xf]
    %v1157 = vpack.c.bf16 %v1020, %v1020
    %v1158 = vpack.c.bf16 %v1123, %v1123
    %v1175 = vunpack.c.l.b16 %v1141
    %v1176 = vunpack.c.l.b16 %v1142
    %v1177 = vunpack.c.l.b16 %v1143
    %v1178 = vunpack.c.l.b16 %v1144
    %v1179 = vunpack.c.l.b16 %v1145
    %v1180 = vunpack.c.l.b16 %v1146
    %v1181 = vunpack.c.l.b16 %v1147
    %v1182 = vunpack.c.l.b16 %v1148
    %v1183 = vunpack.c.l.b16 %v1149
    %v1184 = vunpack.c.l.b16 %v1150
    %v1185 = vunpack.c.l.b16 %v1151
    %v1186 = vunpack.c.l.b16 %v1152
    %v1187 = vunpack.c.l.b16 %v1153
    %v1188 = vunpack.c.l.b16 %v1154
    %v1189 = vunpack.c.l.b16 %v1155
    %v1190 = vunpack.c.l.b16 %v1156
    %v1191 = vpack.c.b16 %v1176, %v1175
    %v1192 = vpack.c.b16 %v1178, %v1177
    %v1193 = vpack.c.b16 %v1180, %v1179
    %v1194 = vpack.c.b16 %v1182, %v1181
    %v1195 = vpack.c.b16 %v1184, %v1183
    %v1196 = vpack.c.b16 %v1186, %v1185
    %v1197 = vpack.c.b16 %v1188, %v1187
    %v1198 = vpack.c.b16 %v1190, %v1189
    %1207 = vmatprep.subr.bf16.mxu0 0
    %1208 = vmatpush1.bf16.msra.mxu0 %v1191
    %1209 = vmatprep.subr.bf16.mxu0 0
    %1210 = vmatpush1.bf16.msra.mxu0 %v1192
    %1211 = vmatprep.subr.bf16.mxu0 0
    %1212 = vmatpush1.bf16.msra.mxu0 %v1193
    %1213 = vmatprep.subr.bf16.mxu0 0
    %1214 = vmatpush1.bf16.msra.mxu0 %v1194
    %1215 = vmatprep.subr.bf16.mxu0 0
    %1216 = vmatpush1.bf16.msra.mxu0 %v1195
    %1217 = vmatprep.subr.bf16.mxu0 0
    %1218 = vmatpush1.bf16.msra.mxu0 %v1196
    %1219 = vmatprep.subr.bf16.mxu0 0
    %1220 = vmatpush1.bf16.msra.mxu0 %v1197
    %1221 = vmatprep.subr.bf16.mxu0 0
    %1222 = vmatpush1.bf16.msra.mxu0 %v1198
    %1223 = vmatprep.subr.bf16.mxu0 0
    %1224 = vmatpush1.bf16.msra.mxu0 0
    %1225 = vmatprep.subr.bf16.mxu0 0
    %1226 = vmatpush1.bf16.msra.mxu0 0
    %1227 = vmatprep.subr.bf16.mxu0 0
    %1228 = vmatpush1.bf16.msra.mxu0 0
    %1229 = vmatprep.subr.bf16.mxu0 0
    %1230 = vmatpush1.bf16.msra.mxu0 0
    %1231 = vmatprep.subr.bf16.mxu0 0
    %1232 = vmatpush1.bf16.msra.mxu0 0
    %1233 = vmatprep.subr.bf16.mxu0 0
    %1234 = vmatpush1.bf16.msra.mxu0 0
    %1235 = vmatprep.subr.bf16.mxu0 0
    %1236 = vmatpush1.bf16.msra.mxu0 0
    %1237 = vmatprep.subr.bf16.mxu0 0
    %1238 = vmatpush1.bf16.msra.mxu0 0
    %1239 = vmatprep.mubr.bf16.mxu0 0
    %1240 = vmatmul.mubr.bf16.gmra.mrb[0].mxu0 %v1158
    %v1241 = vpop.f32.mrb[0].mxu0
    %v1242 = vadd.f32 0.0, %v1241
    %v1243 = vpop.f32.mrb[0].mxu0
    %v1244 = vpop.f32.mrb[0].mxu0
    %v1245 = vpop.f32.mrb[0].mxu0
    %1246 = vdwg.mxu0
    %v1263 = vunpack.c.l.b16 %v1125
    %v1264 = vunpack.c.l.b16 %v1126
    %v1265 = vunpack.c.l.b16 %v1127
    %v1266 = vunpack.c.l.b16 %v1128
    %v1267 = vunpack.c.l.b16 %v1129
    %v1268 = vunpack.c.l.b16 %v1130
    %v1269 = vunpack.c.l.b16 %v1131
    %v1270 = vunpack.c.l.b16 %v1132
    %v1271 = vunpack.c.l.b16 %v1133
    %v1272 = vunpack.c.l.b16 %v1134
    %v1273 = vunpack.c.l.b16 %v1135
    %v1274 = vunpack.c.l.b16 %v1136
    %v1275 = vunpack.c.l.b16 %v1137
    %v1276 = vunpack.c.l.b16 %v1138
    %v1277 = vunpack.c.l.b16 %v1139
    %v1278 = vunpack.c.l.b16 %v1140
    %v1279 = vpack.c.b16 %v1264, %v1263
    %v1280 = vpack.c.b16 %v1266, %v1265
    %v1281 = vpack.c.b16 %v1268, %v1267
    %v1282 = vpack.c.b16 %v1270, %v1269
    %v1283 = vpack.c.b16 %v1272, %v1271
    %v1284 = vpack.c.b16 %v1274, %v1273
    %v1285 = vpack.c.b16 %v1276, %v1275
    %v1286 = vpack.c.b16 %v1278, %v1277
    %1295 = vmatprep.subr.bf16.mxu0 0
    %1296 = vmatpush1.bf16.msra.mxu0 %v1279
    %1297 = vmatprep.subr.bf16.mxu0 0
    %1298 = vmatpush1.bf16.msra.mxu0 %v1280
    %1299 = vmatprep.subr.bf16.mxu0 0
    %1300 = vmatpush1.bf16.msra.mxu0 %v1281
    %1301 = vmatprep.subr.bf16.mxu0 0
    %1302 = vmatpush1.bf16.msra.mxu0 %v1282
    %1303 = vmatprep.subr.bf16.mxu0 0
    %1304 = vmatpush1.bf16.msra.mxu0 %v1283
    %1305 = vmatprep.subr.bf16.mxu0 0
    %1306 = vmatpush1.bf16.msra.mxu0 %v1284
    %1307 = vmatprep.subr.bf16.mxu0 0
    %1308 = vmatpush1.bf16.msra.mxu0 %v1285
    %1309 = vmatprep.subr.bf16.mxu0 0
    %1310 = vmatpush1.bf16.msra.mxu0 %v1286
    %1311 = vmatprep.subr.bf16.mxu0 0
    %1312 = vmatpush1.bf16.msra.mxu0 0
    %1313 = vmatprep.subr.bf16.mxu0 0
    %1314 = vmatpush1.bf16.msra.mxu0 0
    %1315 = vmatprep.subr.bf16.mxu0 0
    %1316 = vmatpush1.bf16.msra.mxu0 0
    %1317 = vmatprep.subr.bf16.mxu0 0
    %1318 = vmatpush1.bf16.msra.mxu0 0
    %1319 = vmatprep.subr.bf16.mxu0 0
    %1320 = vmatpush1.bf16.msra.mxu0 0
    %1321 = vmatprep.subr.bf16.mxu0 0
    %1322 = vmatpush1.bf16.msra.mxu0 0
    %1323 = vmatprep.subr.bf16.mxu0 0
    %1324 = vmatpush1.bf16.msra.mxu0 0
    %1325 = vmatprep.subr.bf16.mxu0 0
    %1326 = vmatpush1.bf16.msra.mxu0 0
    %1327 = vmatprep.mubr.bf16.mxu0 0
    %1328 = vmatmul.mubr.bf16.gmra.mrb[0].mxu0 %v1157
    %v1329 = vpop.f32.mrb[0].mxu0
    %v1330 = vadd.f32 %v1242, %v1329
    %v1331 = vpop.f32.mrb[0].mxu0
    %v1332 = vpop.f32.mrb[0].mxu0
    %v1333 = vpop.f32.mrb[0].mxu0
    %1334 = vdwg.mxu0
    %v1335 = vmul.f32 %v1124, %v1020
    %v1336 = vmul.f32 %v1124, %v1123
    %v1337 = vsub.f32 %v1336, 1.0
    %v1338 = vld [vmem:[#allocation7 + $0x40] sm:$0xf]
    %v1339 = vld [vmem:[#allocation7 + $0x44] sm:$0xf]
    %v1340 = vld [vmem:[#allocation7 + $0x48] sm:$0xf]
    %v1341 = vld [vmem:[#allocation7 + $0x4c] sm:$0xf]
    %v1342 = vld [vmem:[#allocation7 + $0x50] sm:$0xf]
    %v1343 = vld [vmem:[#allocation7 + $0x54] sm:$0xf]
    %v1344 = vld [vmem:[#allocation7 + $0x58] sm:$0xf]
    %v1345 = vld [vmem:[#allocation7 + $0x5c] sm:$0xf]
    %v1346 = vld [vmem:[#allocation7 + $0x60] sm:$0xf]
    %v1347 = vld [vmem:[#allocation7 + $0x64] sm:$0xf]
    %v1348 = vld [vmem:[#allocation7 + $0x68] sm:$0xf]
    %v1349 = vld [vmem:[#allocation7 + $0x6c] sm:$0xf]
    %v1350 = vld [vmem:[#allocation7 + $0x70] sm:$0xf]
    %v1351 = vld [vmem:[#allocation7 + $0x74] sm:$0xf]
    %v1352 = vld [vmem:[#allocation7 + $0x78] sm:$0xf]
    %v1353 = vld [vmem:[#allocation7 + $0x7c] sm:$0xf]
    %v1354 = vld [vmem:[#allocation7 + $0x100] sm:$0xf]
    %v1355 = vld [vmem:[#allocation7 + $0x104] sm:$0xf]
    %v1356 = vld [vmem:[#allocation7 + $0x108] sm:$0xf]
    %v1357 = vld [vmem:[#allocation7 + $0x10c] sm:$0xf]
    %v1358 = vld [vmem:[#allocation7 + $0x110] sm:$0xf]
    %v1359 = vld [vmem:[#allocation7 + $0x114] sm:$0xf]
    %v1360 = vld [vmem:[#allocation7 + $0x118] sm:$0xf]
    %v1361 = vld [vmem:[#allocation7 + $0x11c] sm:$0xf]
    %v1362 = vld [vmem:[#allocation7 + $0x120] sm:$0xf]
    %v1363 = vld [vmem:[#allocation7 + $0x124] sm:$0xf]
    %v1364 = vld [vmem:[#allocation7 + $0x128] sm:$0xf]
    %v1365 = vld [vmem:[#allocation7 + $0x12c] sm:$0xf]
    %v1366 = vld [vmem:[#allocation7 + $0x130] sm:$0xf]
    %v1367 = vld [vmem:[#allocation7 + $0x134] sm:$0xf]
    %v1368 = vld [vmem:[#allocation7 + $0x138] sm:$0xf]
    %v1369 = vld [vmem:[#allocation7 + $0x13c] sm:$0xf]
    %v1370 = vpack.c.bf16 %v1335, %v1335
    %v1371 = vpack.c.bf16 %v1337, %v1337
    %v1388 = vunpack.c.l.b16 %v1354
    %v1389 = vunpack.c.l.b16 %v1355
    %v1390 = vunpack.c.l.b16 %v1356
    %v1391 = vunpack.c.l.b16 %v1357
    %v1392 = vunpack.c.l.b16 %v1358
    %v1393 = vunpack.c.l.b16 %v1359
    %v1394 = vunpack.c.l.b16 %v1360
    %v1395 = vunpack.c.l.b16 %v1361
    %v1396 = vunpack.c.l.b16 %v1362
    %v1397 = vunpack.c.l.b16 %v1363
    %v1398 = vunpack.c.l.b16 %v1364
    %v1399 = vunpack.c.l.b16 %v1365
    %v1400 = vunpack.c.l.b16 %v1366
    %v1401 = vunpack.c.l.b16 %v1367
    %v1402 = vunpack.c.l.b16 %v1368
    %v1403 = vunpack.c.l.b16 %v1369
    %v1404 = vpack.c.b16 %v1389, %v1388
    %v1405 = vpack.c.b16 %v1391, %v1390
    %v1406 = vpack.c.b16 %v1393, %v1392
    %v1407 = vpack.c.b16 %v1395, %v1394
    %v1408 = vpack.c.b16 %v1397, %v1396
    %v1409 = vpack.c.b16 %v1399, %v1398
    %v1410 = vpack.c.b16 %v1401, %v1400
    %v1411 = vpack.c.b16 %v1403, %v1402
    %1420 = vmatprep.subr.bf16.mxu0 0
    %1421 = vmatpush1.bf16.msra.mxu0 %v1404
    %1422 = vmatprep.subr.bf16.mxu0 0
    %1423 = vmatpush1.bf16.msra.mxu0 %v1405
    %1424 = vmatprep.subr.bf16.mxu0 0
    %1425 = vmatpush1.bf16.msra.mxu0 %v1406
    %1426 = vmatprep.subr.bf16.mxu0 0
    %1427 = vmatpush1.bf16.msra.mxu0 %v1407
    %1428 = vmatprep.subr.bf16.mxu0 0
    %1429 = vmatpush1.bf16.msra.mxu0 %v1408
    %1430 = vmatprep.subr.bf16.mxu0 0
    %1431 = vmatpush1.bf16.msra.mxu0 %v1409
    %1432 = vmatprep.subr.bf16.mxu0 0
    %1433 = vmatpush1.bf16.msra.mxu0 %v1410
    %1434 = vmatprep.subr.bf16.mxu0 0
    %1435 = vmatpush1.bf16.msra.mxu0 %v1411
    %1436 = vmatprep.subr.bf16.mxu0 0
    %1437 = vmatpush1.bf16.msra.mxu0 0
    %1438 = vmatprep.subr.bf16.mxu0 0
    %1439 = vmatpush1.bf16.msra.mxu0 0
    %1440 = vmatprep.subr.bf16.mxu0 0
    %1441 = vmatpush1.bf16.msra.mxu0 0
    %1442 = vmatprep.subr.bf16.mxu0 0
    %1443 = vmatpush1.bf16.msra.mxu0 0
    %1444 = vmatprep.subr.bf16.mxu0 0
    %1445 = vmatpush1.bf16.msra.mxu0 0
    %1446 = vmatprep.subr.bf16.mxu0 0
    %1447 = vmatpush1.bf16.msra.mxu0 0
    %1448 = vmatprep.subr.bf16.mxu0 0
    %1449 = vmatpush1.bf16.msra.mxu0 0
    %1450 = vmatprep.subr.bf16.mxu0 0
    %1451 = vmatpush1.bf16.msra.mxu0 0
    %1452 = vmatprep.mubr.bf16.mxu0 0
    %1453 = vmatmul.mubr.bf16.gmra.mrb[0].mxu0 %v1371
    %v1454 = vpop.f32.mrb[0].mxu0
    %v1455 = vadd.f32 0.0, %v1454
    %v1456 = vpop.f32.mrb[0].mxu0
    %v1457 = vpop.f32.mrb[0].mxu0
    %v1458 = vpop.f32.mrb[0].mxu0
    %1459 = vdwg.mxu0
    %v1476 = vunpack.c.l.b16 %v1338
    %v1477 = vunpack.c.l.b16 %v1339
    %v1478 = vunpack.c.l.b16 %v1340
    %v1479 = vunpack.c.l.b16 %v1341
    %v1480 = vunpack.c.l.b16 %v1342
    %v1481 = vunpack.c.l.b16 %v1343
    %v1482 = vunpack.c.l.b16 %v1344
    %v1483 = vunpack.c.l.b16 %v1345
    %v1484 = vunpack.c.l.b16 %v1346
    %v1485 = vunpack.c.l.b16 %v1347
    %v1486 = vunpack.c.l.b16 %v1348
    %v1487 = vunpack.c.l.b16 %v1349
    %v1488 = vunpack.c.l.b16 %v1350
    %v1489 = vunpack.c.l.b16 %v1351
    %v1490 = vunpack.c.l.b16 %v1352
    %v1491 = vunpack.c.l.b16 %v1353
    %v1492 = vpack.c.b16 %v1477, %v1476
    %v1493 = vpack.c.b16 %v1479, %v1478
    %v1494 = vpack.c.b16 %v1481, %v1480
    %v1495 = vpack.c.b16 %v1483, %v1482
    %v1496 = vpack.c.b16 %v1485, %v1484
    %v1497 = vpack.c.b16 %v1487, %v1486
    %v1498 = vpack.c.b16 %v1489, %v1488
    %v1499 = vpack.c.b16 %v1491, %v1490
    %1508 = vmatprep.subr.bf16.mxu0 0
    %1509 = vmatpush1.bf16.msra.mxu0 %v1492
    %1510 = vmatprep.subr.bf16.mxu0 0
    %1511 = vmatpush1.bf16.msra.mxu0 %v1493
    %1512 = vmatprep.subr.bf16.mxu0 0
    %1513 = vmatpush1.bf16.msra.mxu0 %v1494
    %1514 = vmatprep.subr.bf16.mxu0 0
    %1515 = vmatpush1.bf16.msra.mxu0 %v1495
    %1516 = vmatprep.subr.bf16.mxu0 0
    %1517 = vmatpush1.bf16.msra.mxu0 %v1496
    %1518 = vmatprep.subr.bf16.mxu0 0
    %1519 = vmatpush1.bf16.msra.mxu0 %v1497
    %1520 = vmatprep.subr.bf16.mxu0 0
    %1521 = vmatpush1.bf16.msra.mxu0 %v1498
    %1522 = vmatprep.subr.bf16.mxu0 0
    %1523 = vmatpush1.bf16.msra.mxu0 %v1499
    %1524 = vmatprep.subr.bf16.mxu0 0
    %1525 = vmatpush1.bf16.msra.mxu0 0
    %1526 = vmatprep.subr.bf16.mxu0 0
    %1527 = vmatpush1.bf16.msra.mxu0 0
    %1528 = vmatprep.subr.bf16.mxu0 0
    %1529 = vmatpush1.bf16.msra.mxu0 0
    %1530 = vmatprep.subr.bf16.mxu0 0
    %1531 = vmatpush1.bf16.msra.mxu0 0
    %1532 = vmatprep.subr.bf16.mxu0 0
    %1533 = vmatpush1.bf16.msra.mxu0 0
    %1534 = vmatprep.subr.bf16.mxu0 0
    %1535 = vmatpush1.bf16.msra.mxu0 0
    %1536 = vmatprep.subr.bf16.mxu0 0
    %1537 = vmatpush1.bf16.msra.mxu0 0
    %1538 = vmatprep.subr.bf16.mxu0 0
    %1539 = vmatpush1.bf16.msra.mxu0 0
    %1540 = vmatprep.mubr.bf16.mxu0 0
    %1541 = vmatmul.mubr.bf16.gmra.mrb[0].mxu0 %v1370
    %v1542 = vpop.f32.mrb[0].mxu0
    %v1543 = vadd.f32 %v1455, %v1542
    %v1544 = vpop.f32.mrb[0].mxu0
    %v1545 = vpop.f32.mrb[0].mxu0
    %v1546 = vpop.f32.mrb[0].mxu0
    %1547 = vdwg.mxu0
    %v1548 = vadd.f32 %v1330, %v1543
    %v1549 = vmul.f32 %v1124, %v1335
    %v1550 = vsub.f32 %v1549, %v1020
    %v1551 = vmul.f32 %v1124, %v1337
    %v1552 = vsub.f32 %v1551, %v1123
    %v1553 = vld [vmem:[#allocation7 + $0x80] sm:$0xf]
    %v1554 = vld [vmem:[#allocation7 + $0x84] sm:$0xf]
    %v1555 = vld [vmem:[#allocation7 + $0x88] sm:$0xf]
    %v1556 = vld [vmem:[#allocation7 + $0x8c] sm:$0xf]
    %v1557 = vld [vmem:[#allocation7 + $0x90] sm:$0xf]
    %v1558 = vld [vmem:[#allocation7 + $0x94] sm:$0xf]
    %v1559 = vld [vmem:[#allocation7 + $0x98] sm:$0xf]
    %v1560 = vld [vmem:[#allocation7 + $0x9c] sm:$0xf]
    %v1561 = vld [vmem:[#allocation7 + $0xa0] sm:$0xf]
    %v1562 = vld [vmem:[#allocation7 + $0xa4] sm:$0xf]
    %v1563 = vld [vmem:[#allocation7 + $0xa8] sm:$0xf]
    %v1564 = vld [vmem:[#allocation7 + $0xac] sm:$0xf]
    %v1565 = vld [vmem:[#allocation7 + $0xb0] sm:$0xf]
    %v1566 = vld [vmem:[#allocation7 + $0xb4] sm:$0xf]
    %v1567 = vld [vmem:[#allocation7 + $0xb8] sm:$0xf]
    %v1568 = vld [vmem:[#allocation7 + $0xbc] sm:$0xf]
    %v1569 = vld [vmem:[#allocation7 + $0x140] sm:$0xf]
    %v1570 = vld [vmem:[#allocation7 + $0x144] sm:$0xf]
    %v1571 = vld [vmem:[#allocation7 + $0x148] sm:$0xf]
    %v1572 = vld [vmem:[#allocation7 + $0x14c] sm:$0xf]
    %v1573 = vld [vmem:[#allocation7 + $0x150] sm:$0xf]
    %v1574 = vld [vmem:[#allocation7 + $0x154] sm:$0xf]
    %v1575 = vld [vmem:[#allocation7 + $0x158] sm:$0xf]
    %v1576 = vld [vmem:[#allocation7 + $0x15c] sm:$0xf]
    %v1577 = vld [vmem:[#allocation7 + $0x160] sm:$0xf]
    %v1578 = vld [vmem:[#allocation7 + $0x164] sm:$0xf]
    %v1579 = vld [vmem:[#allocation7 + $0x168] sm:$0xf]
    %v1580 = vld [vmem:[#allocation7 + $0x16c] sm:$0xf]
    %v1581 = vld [vmem:[#allocation7 + $0x170] sm:$0xf]
    %v1582 = vld [vmem:[#allocation7 + $0x174] sm:$0xf]
    %v1583 = vld [vmem:[#allocation7 + $0x178] sm:$0xf]
    %v1584 = vld [vmem:[#allocation7 + $0x17c] sm:$0xf]
    %v1585 = vpack.c.bf16 %v1550, %v1550
    %v1586 = vpack.c.bf16 %v1552, %v1552
    %v1603 = vunpack.c.l.b16 %v1569
    %v1604 = vunpack.c.l.b16 %v1570
    %v1605 = vunpack.c.l.b16 %v1571
    %v1606 = vunpack.c.l.b16 %v1572
    %v1607 = vunpack.c.l.b16 %v1573
    %v1608 = vunpack.c.l.b16 %v1574
    %v1609 = vunpack.c.l.b16 %v1575
    %v1610 = vunpack.c.l.b16 %v1576
    %v1611 = vunpack.c.l.b16 %v1577
    %v1612 = vunpack.c.l.b16 %v1578
    %v1613 = vunpack.c.l.b16 %v1579
    %v1614 = vunpack.c.l.b16 %v1580
    %v1615 = vunpack.c.l.b16 %v1581
    %v1616 = vunpack.c.l.b16 %v1582
    %v1617 = vunpack.c.l.b16 %v1583
    %v1618 = vunpack.c.l.b16 %v1584
    %v1619 = vpack.c.b16 %v1604, %v1603
    %v1620 = vpack.c.b16 %v1606, %v1605
    %v1621 = vpack.c.b16 %v1608, %v1607
    %v1622 = vpack.c.b16 %v1610, %v1609
    %v1623 = vpack.c.b16 %v1612, %v1611
    %v1624 = vpack.c.b16 %v1614, %v1613
    %v1625 = vpack.c.b16 %v1616, %v1615
    %v1626 = vpack.c.b16 %v1618, %v1617
    %1635 = vmatprep.subr.bf16.mxu0 0
    %1636 = vmatpush1.bf16.msra.mxu0 %v1619
    %1637 = vmatprep.subr.bf16.mxu0 0
    %1638 = vmatpush1.bf16.msra.mxu0 %v1620
    %1639 = vmatprep.subr.bf16.mxu0 0
    %1640 = vmatpush1.bf16.msra.mxu0 %v1621
    %1641 = vmatprep.subr.bf16.mxu0 0
    %1642 = vmatpush1.bf16.msra.mxu0 %v1622
    %1643 = vmatprep.subr.bf16.mxu0 0
    %1644 = vmatpush1.bf16.msra.mxu0 %v1623
    %1645 = vmatprep.subr.bf16.mxu0 0
    %1646 = vmatpush1.bf16.msra.mxu0 %v1624
    %1647 = vmatprep.subr.bf16.mxu0 0
    %1648 = vmatpush1.bf16.msra.mxu0 %v1625
    %1649 = vmatprep.subr.bf16.mxu0 0
    %1650 = vmatpush1.bf16.msra.mxu0 %v1626
    %1651 = vmatprep.subr.bf16.mxu0 0
    %1652 = vmatpush1.bf16.msra.mxu0 0
    %1653 = vmatprep.subr.bf16.mxu0 0
    %1654 = vmatpush1.bf16.msra.mxu0 0
    %1655 = vmatprep.subr.bf16.mxu0 0
    %1656 = vmatpush1.bf16.msra.mxu0 0
    %1657 = vmatprep.subr.bf16.mxu0 0
    %1658 = vmatpush1.bf16.msra.mxu0 0
    %1659 = vmatprep.subr.bf16.mxu0 0
    %1660 = vmatpush1.bf16.msra.mxu0 0
    %1661 = vmatprep.subr.bf16.mxu0 0
    %1662 = vmatpush1.bf16.msra.mxu0 0
    %1663 = vmatprep.subr.bf16.mxu0 0
    %1664 = vmatpush1.bf16.msra.mxu0 0
    %1665 = vmatprep.subr.bf16.mxu0 0
    %1666 = vmatpush1.bf16.msra.mxu0 0
    %1667 = vmatprep.mubr.bf16.mxu0 0
    %1668 = vmatmul.mubr.bf16.gmra.mrb[0].mxu0 %v1586
    %v1669 = vpop.f32.mrb[0].mxu0
    %v1670 = vadd.f32 0.0, %v1669
    %v1671 = vpop.f32.mrb[0].mxu0
    %v1672 = vpop.f32.mrb[0].mxu0
    %v1673 = vpop.f32.mrb[0].mxu0
    %1674 = vdwg.mxu0
    %v1691 = vunpack.c.l.b16 %v1553
    %v1692 = vunpack.c.l.b16 %v1554
    %v1693 = vunpack.c.l.b16 %v1555
    %v1694 = vunpack.c.l.b16 %v1556
    %v1695 = vunpack.c.l.b16 %v1557
    %v1696 = vunpack.c.l.b16 %v1558
    %v1697 = vunpack.c.l.b16 %v1559
    %v1698 = vunpack.c.l.b16 %v1560
    %v1699 = vunpack.c.l.b16 %v1561
    %v1700 = vunpack.c.l.b16 %v1562
    %v1701 = vunpack.c.l.b16 %v1563
    %v1702 = vunpack.c.l.b16 %v1564
    %v1703 = vunpack.c.l.b16 %v1565
    %v1704 = vunpack.c.l.b16 %v1566
    %v1705 = vunpack.c.l.b16 %v1567
    %v1706 = vunpack.c.l.b16 %v1568
    %v1707 = vpack.c.b16 %v1692, %v1691
    %v1708 = vpack.c.b16 %v1694, %v1693
    %v1709 = vpack.c.b16 %v1696, %v1695
    %v1710 = vpack.c.b16 %v1698, %v1697
    %v1711 = vpack.c.b16 %v1700, %v1699
    %v1712 = vpack.c.b16 %v1702, %v1701
    %v1713 = vpack.c.b16 %v1704, %v1703
    %v1714 = vpack.c.b16 %v1706, %v1705
    %1723 = vmatprep.subr.bf16.mxu0 0
    %1724 = vmatpush1.bf16.msra.mxu0 %v1707
    %1725 = vmatprep.subr.bf16.mxu0 0
    %1726 = vmatpush1.bf16.msra.mxu0 %v1708
    %1727 = vmatprep.subr.bf16.mxu0 0
    %1728 = vmatpush1.bf16.msra.mxu0 %v1709
    %1729 = vmatprep.subr.bf16.mxu0 0
    %1730 = vmatpush1.bf16.msra.mxu0 %v1710
    %1731 = vmatprep.subr.bf16.mxu0 0
    %1732 = vmatpush1.bf16.msra.mxu0 %v1711
    %1733 = vmatprep.subr.bf16.mxu0 0
    %1734 = vmatpush1.bf16.msra.mxu0 %v1712
    %1735 = vmatprep.subr.bf16.mxu0 0
    %1736 = vmatpush1.bf16.msra.mxu0 %v1713
    %1737 = vmatprep.subr.bf16.mxu0 0
    %1738 = vmatpush1.bf16.msra.mxu0 %v1714
    %1739 = vmatprep.subr.bf16.mxu0 0
    %1740 = vmatpush1.bf16.msra.mxu0 0
    %1741 = vmatprep.subr.bf16.mxu0 0
    %1742 = vmatpush1.bf16.msra.mxu0 0
    %1743 = vmatprep.subr.bf16.mxu0 0
    %1744 = vmatpush1.bf16.msra.mxu0 0
    %1745 = vmatprep.subr.bf16.mxu0 0
    %1746 = vmatpush1.bf16.msra.mxu0 0
    %1747 = vmatprep.subr.bf16.mxu0 0
    %1748 = vmatpush1.bf16.msra.mxu0 0
    %1749 = vmatprep.subr.bf16.mxu0 0
    %1750 = vmatpush1.bf16.msra.mxu0 0
    %1751 = vmatprep.subr.bf16.mxu0 0
    %1752 = vmatpush1.bf16.msra.mxu0 0
    %1753 = vmatprep.subr.bf16.mxu0 0
    %1754 = vmatpush1.bf16.msra.mxu0 0
    %1755 = vmatprep.mubr.bf16.mxu0 0
    %1756 = vmatmul.mubr.bf16.gmra.mrb[0].mxu0 %v1585
    %v1757 = vpop.f32.mrb[0].mxu0
    %v1758 = vadd.f32 %v1670, %v1757
    %v1759 = vpop.f32.mrb[0].mxu0
    %v1760 = vpop.f32.mrb[0].mxu0
    %v1761 = vpop.f32.mrb[0].mxu0
    %1762 = vdwg.mxu0
    %v1763 = vadd.f32 %v1548, %v1758
    %v1764 = vld [vmem:[%s4] sm:$0x1]
    %v1766 = vlaneseq
    %v1767 = vshrl.u32 %v1766, 7
    %v1768 = vsub.s32 0, %v1767
    %v1769 = vrot.slane %v1764, %v1768
    %v1771 = vadd.f32 %v1763, %v1769
    %1772 = vst [vmem:[#allocation8] sm:$0xff] %v1771
    // Predicated region
    $region34: #{tpu_custom_call.1} parent=1 // pred_check
      _
    $region35: #{tpu_custom_call.1} parent=1 // pred_check_branch
      %1774 = sbr.rel (0) target = $region37
    $region36: #{tpu_custom_call.1} parent=1 // pred_region
      %s1776 = ssub.s32 128, 128
      %1777 = vsyncadd [#allocation4], %s1776
      %s1779 = sshll.u32 [#allocation8], 4
      %s1780 = int_to_ptr.vmem [resolvable:$true] %s1779
      %1782 = dma.vmem_to_hbm [thread:$0]  %s1780, 128, %s5, [#allocation4]
    $region37: #{tpu_custom_call.1} parent=1 // pred_fallthru
      _
    // Predicated region
    $region38: #{tpu_custom_call.1} parent=1 // pred_check
      _
    $region39: #{tpu_custom_call.1} parent=1 // pred_check_branch
      %1784 = sbr.rel (0) target = $region41
    $region40: #{tpu_custom_call.1} parent=1 // pred_region
      %1785 = dma.done [#allocation4], 128
    $region41: #{tpu_custom_call.1} parent=1 // pred_fallthru
      _
    %1786 = vsyncpa [#allocation3], 1
    %1787 = vsyncpa [#allocation6], 1
    %1788 = vsyncpa [#allocation4], 1

// kernel: tpu_custom_call.1
$region0: #{tpu_custom_call.1}
  #allocation0 [shape = 'u32[]', space=smem, size = 0x4, offset = 0x4, fixed_abs, tag = 'smem constant byte address 0x4 - core index']
  #allocation1 [shape = 'u32[144,128]{1,0:T(1,128)}', space=vmem, size = 0x12000, scoped, tag = 'internal scratch']
  %s0 = inlined_call_operand.hbm [shape: f32[8,128], index: 0, kind: input, shape index: {}]
  %s1 = inlined_call_operand.hbm [shape: bf16[768,128], index: 1, kind: input, shape index: {}]
  %s2 = inlined_call_operand.vmem [shape: f32[1,128], index: 2, kind: input, shape index: {}]
  %s3 = inlined_call_operand.hbm [shape: bf16[768,128], index: 3, kind: input, shape index: {}]
  %s4 = inlined_call_operand.vmem [shape: f32[1,128], index: 4, kind: input, shape index: {}]
  %s5 = inlined_call_operand.hbm [shape: f32[8,128], index: 5, kind: output, shape index: {}]
  %s6 = sld [smem:[#allocation0]]
  $region42: #{tpu_custom_call.1} parent=0
    _
  %s8 = ssub.s32 1, %s6
  %s9 = scalar_select 0, %s8, %s6
  $region1: #{tpu_custom_call.1} parent=0
    #allocation2 [shape = 'u8[4096]{0}', space=vmem, size = 0x1000, scoped, tag = 'input window, operand 0, single buffered']
    #allocation3 [shape = 's32[1]{0}', space=sflag, size = 0x4, scoped, tag = 'scoped memory for tpu_custom_call.1']
    #allocation4 [shape = 's32[1]{0}', space=sflag, size = 0x4, scoped, tag = 'scoped memory for tpu_custom_call.1']
    #allocation5 [shape = 'u8[196608]{0}', space=vmem, size = 0x30000, scoped, tag = 'input window, operand 1, single buffered']
    #allocation6 [shape = 's32[1]{0}', space=sflag, size = 0x4, scoped, tag = 'scoped memory for tpu_custom_call.1']
    #allocation7 [shape = 'u8[196608]{0}', space=vmem, size = 0x30000, scoped, tag = 'input window, operand 3, single buffered']
    #allocation8 [shape = 'u8[4096]{0}', space=vmem, size = 0x1000, scoped, tag = 'output window, operand 0, single buffered']
    %10 = vsyncpa [#allocation3], 0
    %11 = vsyncpa [#allocation6], 0
    %12 = vsyncpa [#allocation4], 0
    // Predicated region
    $region2: #{tpu_custom_call.1} parent=1 // pred_check
      _
    $region3: #{tpu_custom_call.1} parent=1 // pred_check_branch
      %14 = sbr.rel (0) target = $region5
    $region4: #{tpu_custom_call.1} parent=1 // pred_region
      %s16 = ssub.s32 128, 128
      %17 = vsyncadd [#allocation3], %s16
      %s19 = sshll.u32 [#allocation2], 4
      %s20 = int_to_ptr.vmem [resolvable:$true] %s19
      %22 = dma.hbm_to_vmem [thread:$0]  %s0, 128, %s20, [#allocation3]
    $region5: #{tpu_custom_call.1} parent=1 // pred_fallthru
      _
    // Predicated region
    $region6: #{tpu_custom_call.1} parent=1 // pred_check
      _
    $region7: #{tpu_custom_call.1} parent=1 // pred_check_branch
      %24 = sbr.rel (0) target = $region9
    $region8: #{tpu_custom_call.1} parent=1 // pred_region
      %s26 = ssub.s32 6144, 6144
      %27 = vsyncadd [#allocation6], %s26
      %s28 = sshll.u32 [#allocation5], 4
      %s29 = int_to_ptr.vmem [resolvable:$true] %s28
      %34 = dma.hbm_to_vmem [thread:$0]  %s1, 6144, %s29, [#allocation6], 64, 64, 4
    $region9: #{tpu_custom_call.1} parent=1 // pred_fallthru
      _
    // Predicated region
    $region10: #{tpu_custom_call.1} parent=1 // pred_check
      _
    $region11: #{tpu_custom_call.1} parent=1 // pred_check_branch
      %36 = sbr.rel (0) target = $region13
    $region12: #{tpu_custom_call.1} parent=1 // pred_region
      _
    $region13: #{tpu_custom_call.1} parent=1 // pred_fallthru
      _
    // Predicated region
    $region14: #{tpu_custom_call.1} parent=1 // pred_check
      _
    $region15: #{tpu_custom_call.1} parent=1 // pred_check_branch
      %38 = sbr.rel (0) target = $region17
    $region16: #{tpu_custom_call.1} parent=1 // pred_region
      %s40 = ssub.s32 6144, 6144
      %41 = vsyncadd [#allocation6], %s40
      %s42 = sshll.u32 [#allocation7], 4
      %s43 = int_to_ptr.vmem [resolvable:$true] %s42
      %48 = dma.hbm_to_vmem [thread:$0]  %s3, 6144, %s43, [#allocation6], 64, 64, 4
    $region17: #{tpu_custom_call.1} parent=1 // pred_fallthru
      _
    // Predicated region
    $region18: #{tpu_custom_call.1} parent=1 // pred_check
      _
    $region19: #{tpu_custom_call.1} parent=1 // pred_check_branch
      %50 = sbr.rel (0) target = $region21
    $region20: #{tpu_custom_call.1} parent=1 // pred_region
      _
    $region21: #{tpu_custom_call.1} parent=1 // pred_fallthru
      _
    // Predicated region
    $region22: #{tpu_custom_call.1} parent=1 // pred_check
      _
    $region23: #{tpu_custom_call.1} parent=1 // pred_check_branch
      %52 = sbr.rel (0) target = $region25
    $region24: #{tpu_custom_call.1} parent=1 // pred_region
      %53 = dma.done [#allocation3], 128
    $region25: #{tpu_custom_call.1} parent=1 // pred_fallthru
      _
    // Predicated region
    $region26: #{tpu_custom_call.1} parent=1 // pred_check
      _
    $region27: #{tpu_custom_call.1} parent=1 // pred_check_branch
      %55 = sbr.rel (0) target = $region29
    $region28: #{tpu_custom_call.1} parent=1 // pred_region
      %56 = dma.done [#allocation6], 6144
    $region29: #{tpu_custom_call.1} parent=1 // pred_fallthru
      _
    // Predicated region
    $region30: #{tpu_custom_call.1} parent=1 // pred_check
      _
    $region31: #{tpu_custom_call.1} parent=1 // pred_check_branch
      %58 = sbr.rel (0) target = $region33
    $region32: #{tpu_custom_call.1} parent=1 // pred_region
      %59 = dma.done [#allocation6], 6144
    $region33: #{tpu_custom_call.1} parent=1 // pred_fallthru
      _
    %v61 = vld [vmem:[#allocation2] sm:$0xff]
    %v62 = vand.u32 2147483647, %v61
    %vm63 = vcmp.le.f32.partialorder %v62, 0.7853982
    %vm64 = vcmp.lt.s32.totalorder %v61, 0
    %v65 = vand.u32 %v61, 2139095040
    %v66 = vshrl.u32 %v65, 23
    %v67 = vsub.s32 %v66, 127
    %v68 = vand.u32 2147483647, %v61
    %v69 = vand.u32 %v68, 8388607
    %v70 = vor.u32 %v69, 8388608
    %v71 = vsub.s32 0, %v70
    %v72 = vadd.s32 %v67, 1
    %vm73 = vcmp.gt.s32.totalorder %v72, 0
    %v74 = vsel %vm73, %v72, 0
    %v75 = vshrl.u32 %v74, 5
    %v76 = vand.u32 %v74, 31
    %v77 = vsub.s32 32, %v76
    %v78 = vshrl.u32 683565275, %v77
    %v79 = vshll.u32 683565275, %v76
    %v80 = vshrl.u32 2475754826, %v77
    %v81 = vor.u32 %v79, %v80
    %v82 = vshll.u32 2475754826, %v76
    %v83 = vshrl.u32 2131351028, %v77
    %v84 = vor.u32 %v82, %v83
    %v85 = vshll.u32 2131351028, %v76
    %v86 = vshrl.u32 2102212464, %v77
    %v87 = vor.u32 %v85, %v86
    %v88 = vshll.u32 2102212464, %v76
    %v89 = vshrl.u32 920167782, %v77
    %v90 = vor.u32 %v88, %v89
    %v91 = vshll.u32 920167782, %v76
    %v92 = vshrl.u32 1326507024, %v77
    %v93 = vor.u32 %v91, %v92
    %vm94 = vcmp.lt.s32.totalorder %v75, 1
    %vm95 = vcmp.lt.s32.totalorder %v75, 2
    %vm96 = vcmp.lt.s32.totalorder %v75, 3
    %vm97 = vcmp.lt.s32.totalorder %v75, 4
    %v98 = vsel %vm94, %v78, %v81
    %v99 = vsel %vm97, %v87, 2102212464
    %v100 = vsel %vm96, %v84, %v99
    %v101 = vsel %vm95, %v98, %v100
    %v102 = vsel %vm94, %v81, %v84
    %v103 = vsel %vm97, %v90, 920167782
    %v104 = vsel %vm96, %v87, %v103
    %v105 = vsel %vm95, %v102, %v104
    %v106 = vsel %vm94, %v84, %v87
    %v107 = vsel %vm97, %v93, 1326507024
    %v108 = vsel %vm96, %v90, %v107
    %v109 = vsel %vm95, %v106, %v108
    %v110 = vshll.u32 %v70, 8
    %v111 = vmul.u32.u64.compose %v110, %v109
    %v112 = vextract.low.u32 %v111
    %v113 = vextract.high.u32 %v111
    %v114 = vmul.u32.u64.compose %v110, %v105
    %v115 = vextract.low.u32 %v114
    %v116 = vextract.high.u32 %v114
    %v117 = vmul.u32 %v110, %v101
    %v118 = vadd.s32 %v113, %v115
    %vm119 = vc.u32 %v113, %v115
    %v120 = vadd.s32 %v116, 1
    %v121 = vsel %vm119, %v120, %v116
    %v122 = vadd.s32 %v117, %v121
    %v123 = vadd.s32 %v122, 536870912
    %v124 = vshrl.u32 %v123, 30
    %v125 = vshll.u32 %v124, 30
    %v126 = vsub.s32 %v122, %v125
    %vm127 = vcmp.lt.s32.totalorder %v126, 0
    %v128 = vsub.s32 0, %v126
    %v129 = vsel %vm127, %v128, %v126
    %v130 = vclz %v129
    %v131 = vsub.s32 %v130, 2
    %vm132 = vcmp.gt.s32.totalorder 0, %v131
    %v133 = vsel %vm132, 0, %v131
    %v134 = vsub.s32 32, %v133
    %v135 = vshll.u32 %v126, %v133
    %v136 = vshrl.u32 %v118, %v134
    %v137 = vor.u32 %v135, %v136
    %v138 = vsub.s32 4294967266, %v133
    %v139 = vadd.s32 %v138, 127
    %v140 = vshll.u32 %v139, 23
    %v141 = vor.u32 4788187, %v140
    %v142 = vand.u32 2147483647, %v141
    %v144 = vcvt.s32.f32 %v137
    %v145 = vmul.f32 %v144, %v142
    %v146 = vxor.u32 %v145, 2147483648
    %v147 = vsel %vm64, %v146, %v145
    %v148 = vsub.s32 4, %v124
    %v149 = vsel %vm64, %v148, %v124
    %v150 = vsel %vm63, %v61, %v147
    %v151 = vsel %vm63, 0, %v149
    %v152 = vcosq.f32.pop %v150
    %v153 = vsinq.f32.pop %v150
    %vm154 = vweird.f32 %v61
    %v155 = vadd.s32 %v151, 3
    %v156 = vand.u32 %v155, 3
    %vm157 = vcmp.lt.s32.totalorder %v156, 2
    %vm158 = vcmp.eq.s32.totalorder %v156, 0
    %v159 = vxor.u32 %v153, 2147483648
    %v160 = vsel %vm158, %v152, %v159
    %vm161 = vcmp.eq.s32.totalorder %v156, 2
    %v162 = vxor.u32 %v152, 2147483648
    %v163 = vsel %vm161, %v162, %v153
    %v164 = vsel %vm157, %v160, %v163
    %v165 = vsel %vm154, nan, %v164
    %v166 = vand.u32 2147483647, %v61
    %vm167 = vcmp.le.f32.partialorder %v166, 0.7853982
    %vm168 = vcmp.lt.s32.totalorder %v61, 0
    %v169 = vand.u32 %v61, 2139095040
    %v170 = vshrl.u32 %v169, 23
    %v171 = vsub.s32 %v170, 127
    %v172 = vand.u32 2147483647, %v61
    %v173 = vand.u32 %v172, 8388607
    %v174 = vor.u32 %v173, 8388608
    %v175 = vsub.s32 0, %v174
    %v176 = vadd.s32 %v171, 1
    %vm177 = vcmp.gt.s32.totalorder %v176, 0
    %v178 = vsel %vm177, %v176, 0
    %v179 = vshrl.u32 %v178, 5
    %v180 = vand.u32 %v178, 31
    %v181 = vsub.s32 32, %v180
    %v182 = vshrl.u32 683565275, %v181
    %v183 = vshll.u32 683565275, %v180
    %v184 = vshrl.u32 2475754826, %v181
    %v185 = vor.u32 %v183, %v184
    %v186 = vshll.u32 2475754826, %v180
    %v187 = vshrl.u32 2131351028, %v181
    %v188 = vor.u32 %v186, %v187
    %v189 = vshll.u32 2131351028, %v180
    %v190 = vshrl.u32 2102212464, %v181
    %v191 = vor.u32 %v189, %v190
    %v192 = vshll.u32 2102212464, %v180
    %v193 = vshrl.u32 920167782, %v181
    %v194 = vor.u32 %v192, %v193
    %v195 = vshll.u32 920167782, %v180
    %v196 = vshrl.u32 1326507024, %v181
    %v197 = vor.u32 %v195, %v196
    %vm198 = vcmp.lt.s32.totalorder %v179, 1
    %vm199 = vcmp.lt.s32.totalorder %v179, 2
    %vm200 = vcmp.lt.s32.totalorder %v179, 3
    %vm201 = vcmp.lt.s32.totalorder %v179, 4
    %v202 = vsel %vm198, %v182, %v185
    %v203 = vsel %vm201, %v191, 2102212464
    %v204 = vsel %vm200, %v188, %v203
    %v205 = vsel %vm199, %v202, %v204
    %v206 = vsel %vm198, %v185, %v188
    %v207 = vsel %vm201, %v194, 920167782
    %v208 = vsel %vm200, %v191, %v207
    %v209 = vsel %vm199, %v206, %v208
    %v210 = vsel %vm198, %v188, %v191
    %v211 = vsel %vm201, %v197, 1326507024
    %v212 = vsel %vm200, %v194, %v211
    %v213 = vsel %vm199, %v210, %v212
    %v214 = vshll.u32 %v174, 8
    %v215 = vmul.u32.u64.compose %v214, %v213
    %v216 = vextract.low.u32 %v215
    %v217 = vextract.high.u32 %v215
    %v218 = vmul.u32.u64.compose %v214, %v209
    %v219 = vextract.low.u32 %v218
    %v220 = vextract.high.u32 %v218
    %v221 = vmul.u32 %v214, %v205
    %v222 = vadd.s32 %v217, %v219
    %vm223 = vc.u32 %v217, %v219
    %v224 = vadd.s32 %v220, 1
    %v225 = vsel %vm223, %v224, %v220
    %v226 = vadd.s32 %v221, %v225
    %v227 = vadd.s32 %v226, 536870912
    %v228 = vshrl.u32 %v227, 30
    %v229 = vshll.u32 %v228, 30
    %v230 = vsub.s32 %v226, %v229
    %vm231 = vcmp.lt.s32.totalorder %v230, 0
    %v232 = vsub.s32 0, %v230
    %v233 = vsel %vm231, %v232, %v230
    %v234 = vclz %v233
    %v235 = vsub.s32 %v234, 2
    %vm236 = vcmp.gt.s32.totalorder 0, %v235
    %v237 = vsel %vm236, 0, %v235
    %v238 = vsub.s32 32, %v237
    %v239 = vshll.u32 %v230, %v237
    %v240 = vshrl.u32 %v222, %v238
    %v241 = vor.u32 %v239, %v240
    %v242 = vsub.s32 4294967266, %v237
    %v243 = vadd.s32 %v242, 127
    %v244 = vshll.u32 %v243, 23
    %v245 = vor.u32 4788187, %v244
    %v246 = vand.u32 2147483647, %v245
    %v248 = vcvt.s32.f32 %v241
    %v249 = vmul.f32 %v248, %v246
    %v250 = vxor.u32 %v249, 2147483648
    %v251 = vsel %vm168, %v250, %v249
    %v252 = vsub.s32 4, %v228
    %v253 = vsel %vm168, %v252, %v228
    %v254 = vsel %vm167, %v61, %v251
    %v255 = vsel %vm167, 0, %v253
    %v256 = vcosq.f32.pop %v254
    %v257 = vsinq.f32.pop %v254
    %vm258 = vweird.f32 %v61
    %v259 = vand.u32 %v255, 3
    %vm260 = vcmp.lt.s32.totalorder %v259, 2
    %vm261 = vcmp.eq.s32.totalorder %v259, 0
    %v262 = vxor.u32 %v257, 2147483648
    %v263 = vsel %vm261, %v256, %v262
    %vm264 = vcmp.eq.s32.totalorder %v259, 2
    %v265 = vxor.u32 %v256, 2147483648
    %v266 = vsel %vm264, %v265, %v257
    %v267 = vsel %vm260, %v263, %v266
    %v268 = vsel %vm258, nan, %v267
    %v269 = vadd.f32 %v268, %v268
    %v270 = vld [vmem:[#allocation5] sm:$0xf]
    %v271 = vld [vmem:[#allocation5 + $0x4] sm:$0xf]
    %v272 = vld [vmem:[#allocation5 + $0x8] sm:$0xf]
    %v273 = vld [vmem:[#allocation5 + $0xc] sm:$0xf]
    %v274 = vld [vmem:[#allocation5 + $0x10] sm:$0xf]
    %v275 = vld [vmem:[#allocation5 + $0x14] sm:$0xf]
    %v276 = vld [vmem:[#allocation5 + $0x18] sm:$0xf]
    %v277 = vld [vmem:[#allocation5 + $0x1c] sm:$0xf]
    %v278 = vld [vmem:[#allocation5 + $0x20] sm:$0xf]
    %v279 = vld [vmem:[#allocation5 + $0x24] sm:$0xf]
    %v280 = vld [vmem:[#allocation5 + $0x28] sm:$0xf]
    %v281 = vld [vmem:[#allocation5 + $0x2c] sm:$0xf]
    %v282 = vld [vmem:[#allocation5 + $0x30] sm:$0xf]
    %v283 = vld [vmem:[#allocation5 + $0x34] sm:$0xf]
    %v284 = vld [vmem:[#allocation5 + $0x38] sm:$0xf]
    %v285 = vld [vmem:[#allocation5 + $0x3c] sm:$0xf]
    %v286 = vld [vmem:[#allocation5 + $0xc0] sm:$0xf]
    %v287 = vld [vmem:[#allocation5 + $0xc4] sm:$0xf]
    %v288 = vld [vmem:[#allocation5 + $0xc8] sm:$0xf]
    %v289 = vld [vmem:[#allocation5 + $0xcc] sm:$0xf]
    %v290 = vld [vmem:[#allocation5 + $0xd0] sm:$0xf]
    %v291 = vld [vmem:[#allocation5 + $0xd4] sm:$0xf]
    %v292 = vld [vmem:[#allocation5 + $0xd8] sm:$0xf]
    %v293 = vld [vmem:[#allocation5 + $0xdc] sm:$0xf]
    %v294 = vld [vmem:[#allocation5 + $0xe0] sm:$0xf]
    %v295 = vld [vmem:[#allocation5 + $0xe4] sm:$0xf]
    %v296 = vld [vmem:[#allocation5 + $0xe8] sm:$0xf]
    %v297 = vld [vmem:[#allocation5 + $0xec] sm:$0xf]
    %v298 = vld [vmem:[#allocation5 + $0xf0] sm:$0xf]
    %v299 = vld [vmem:[#allocation5 + $0xf4] sm:$0xf]
    %v300 = vld [vmem:[#allocation5 + $0xf8] sm:$0xf]
    %v301 = vld [vmem:[#allocation5 + $0xfc] sm:$0xf]
    %v302 = vpack.c.bf16 %v165, %v165
    %v303 = vpack.c.bf16 %v268, %v268
    %v320 = vunpack.c.l.b16 %v286
    %v321 = vunpack.c.l.b16 %v287
    %v322 = vunpack.c.l.b16 %v288
    %v323 = vunpack.c.l.b16 %v289
    %v324 = vunpack.c.l.b16 %v290
    %v325 = vunpack.c.l.b16 %v291
    %v326 = vunpack.c.l.b16 %v292
    %v327 = vunpack.c.l.b16 %v293
    %v328 = vunpack.c.l.b16 %v294
    %v329 = vunpack.c.l.b16 %v295
    %v330 = vunpack.c.l.b16 %v296
    %v331 = vunpack.c.l.b16 %v297
    %v332 = vunpack.c.l.b16 %v298
    %v333 = vunpack.c.l.b16 %v299
    %v334 = vunpack.c.l.b16 %v300
    %v335 = vunpack.c.l.b16 %v301
    %v336 = vpack.c.b16 %v321, %v320
    %v337 = vpack.c.b16 %v323, %v322
    %v338 = vpack.c.b16 %v325, %v324
    %v339 = vpack.c.b16 %v327, %v326
    %v340 = vpack.c.b16 %v329, %v328
    %v341 = vpack.c.b16 %v331, %v330
    %v342 = vpack.c.b16 %v333, %v332
    %v343 = vpack.c.b16 %v335, %v334
    %352 = vmatprep.subr.bf16.mxu0 0
    %353 = vmatpush1.bf16.msra.mxu0 %v336
    %354 = vmatprep.subr.bf16.mxu0 0
    %355 = vmatpush1.bf16.msra.mxu0 %v337
    %356 = vmatprep.subr.bf16.mxu0 0
    %357 = vmatpush1.bf16.msra.mxu0 %v338
    %358 = vmatprep.subr.bf16.mxu0 0
    %359 = vmatpush1.bf16.msra.mxu0 %v339
    %360 = vmatprep.subr.bf16.mxu0 0
    %361 = vmatpush1.bf16.msra.mxu0 %v340
    %362 = vmatprep.subr.bf16.mxu0 0
    %363 = vmatpush1.bf16.msra.mxu0 %v341
    %364 = vmatprep.subr.bf16.mxu0 0
    %365 = vmatpush1.bf16.msra.mxu0 %v342
    %366 = vmatprep.subr.bf16.mxu0 0
    %367 = vmatpush1.bf16.msra.mxu0 %v343
    %368 = vmatprep.subr.bf16.mxu0 0
    %369 = vmatpush1.bf16.msra.mxu0 0
    %370 = vmatprep.subr.bf16.mxu0 0
    %371 = vmatpush1.bf16.msra.mxu0 0
    %372 = vmatprep.subr.bf16.mxu0 0
    %373 = vmatpush1.bf16.msra.mxu0 0
    %374 = vmatprep.subr.bf16.mxu0 0
    %375 = vmatpush1.bf16.msra.mxu0 0
    %376 = vmatprep.subr.bf16.mxu0 0
    %377 = vmatpush1.bf16.msra.mxu0 0
    %378 = vmatprep.subr.bf16.mxu0 0
    %379 = vmatpush1.bf16.msra.mxu0 0
    %380 = vmatprep.subr.bf16.mxu0 0
    %381 = vmatpush1.bf16.msra.mxu0 0
    %382 = vmatprep.subr.bf16.mxu0 0
    %383 = vmatpush1.bf16.msra.mxu0 0
    %384 = vmatprep.mubr.bf16.mxu0 0
    %385 = vmatmul.mubr.bf16.gmra.mrb[0].mxu0 %v303
    %v386 = vpop.f32.mrb[0].mxu0
    %v387 = vadd.f32 0.0, %v386
    %v388 = vpop.f32.mrb[0].mxu0
    %v389 = vpop.f32.mrb[0].mxu0
    %v390 = vpop.f32.mrb[0].mxu0
    %391 = vdwg.mxu0
    %v408 = vunpack.c.l.b16 %v270
    %v409 = vunpack.c.l.b16 %v271
    %v410 = vunpack.c.l.b16 %v272
    %v411 = vunpack.c.l.b16 %v273
    %v412 = vunpack.c.l.b16 %v274
    %v413 = vunpack.c.l.b16 %v275
    %v414 = vunpack.c.l.b16 %v276
    %v415 = vunpack.c.l.b16 %v277
    %v416 = vunpack.c.l.b16 %v278
    %v417 = vunpack.c.l.b16 %v279
    %v418 = vunpack.c.l.b16 %v280
    %v419 = vunpack.c.l.b16 %v281
    %v420 = vunpack.c.l.b16 %v282
    %v421 = vunpack.c.l.b16 %v283
    %v422 = vunpack.c.l.b16 %v284
    %v423 = vunpack.c.l.b16 %v285
    %v424 = vpack.c.b16 %v409, %v408
    %v425 = vpack.c.b16 %v411, %v410
    %v426 = vpack.c.b16 %v413, %v412
    %v427 = vpack.c.b16 %v415, %v414
    %v428 = vpack.c.b16 %v417, %v416
    %v429 = vpack.c.b16 %v419, %v418
    %v430 = vpack.c.b16 %v421, %v420
    %v431 = vpack.c.b16 %v423, %v422
    %440 = vmatprep.subr.bf16.mxu0 0
    %441 = vmatpush1.bf16.msra.mxu0 %v424
    %442 = vmatprep.subr.bf16.mxu0 0
    %443 = vmatpush1.bf16.msra.mxu0 %v425
    %444 = vmatprep.subr.bf16.mxu0 0
    %445 = vmatpush1.bf16.msra.mxu0 %v426
    %446 = vmatprep.subr.bf16.mxu0 0
    %447 = vmatpush1.bf16.msra.mxu0 %v427
    %448 = vmatprep.subr.bf16.mxu0 0
    %449 = vmatpush1.bf16.msra.mxu0 %v428
    %450 = vmatprep.subr.bf16.mxu0 0
    %451 = vmatpush1.bf16.msra.mxu0 %v429
    %452 = vmatprep.subr.bf16.mxu0 0
    %453 = vmatpush1.bf16.msra.mxu0 %v430
    %454 = vmatprep.subr.bf16.mxu0 0
    %455 = vmatpush1.bf16.msra.mxu0 %v431
    %456 = vmatprep.subr.bf16.mxu0 0
    %457 = vmatpush1.bf16.msra.mxu0 0
    %458 = vmatprep.subr.bf16.mxu0 0
    %459 = vmatpush1.bf16.msra.mxu0 0
    %460 = vmatprep.subr.bf16.mxu0 0
    %461 = vmatpush1.bf16.msra.mxu0 0
    %462 = vmatprep.subr.bf16.mxu0 0
    %463 = vmatpush1.bf16.msra.mxu0 0
    %464 = vmatprep.subr.bf16.mxu0 0
    %465 = vmatpush1.bf16.msra.mxu0 0
    %466 = vmatprep.subr.bf16.mxu0 0
    %467 = vmatpush1.bf16.msra.mxu0 0
    %468 = vmatprep.subr.bf16.mxu0 0
    %469 = vmatpush1.bf16.msra.mxu0 0
    %470 = vmatprep.subr.bf16.mxu0 0
    %471 = vmatpush1.bf16.msra.mxu0 0
    %472 = vmatprep.mubr.bf16.mxu0 0
    %473 = vmatmul.mubr.bf16.gmra.mrb[0].mxu0 %v302
    %v474 = vpop.f32.mrb[0].mxu0
    %v475 = vadd.f32 %v387, %v474
    %v476 = vpop.f32.mrb[0].mxu0
    %v477 = vpop.f32.mrb[0].mxu0
    %v478 = vpop.f32.mrb[0].mxu0
    %479 = vdwg.mxu0
    %v480 = vmul.f32 %v269, %v165
    %v481 = vmul.f32 %v269, %v268
    %v482 = vsub.f32 %v481, 1.0
    %v483 = vld [vmem:[#allocation5 + $0x40] sm:$0xf]
    %v484 = vld [vmem:[#allocation5 + $0x44] sm:$0xf]
    %v485 = vld [vmem:[#allocation5 + $0x48] sm:$0xf]
    %v486 = vld [vmem:[#allocation5 + $0x4c] sm:$0xf]
    %v487 = vld [vmem:[#allocation5 + $0x50] sm:$0xf]
    %v488 = vld [vmem:[#allocation5 + $0x54] sm:$0xf]
    %v489 = vld [vmem:[#allocation5 + $0x58] sm:$0xf]
    %v490 = vld [vmem:[#allocation5 + $0x5c] sm:$0xf]
    %v491 = vld [vmem:[#allocation5 + $0x60] sm:$0xf]
    %v492 = vld [vmem:[#allocation5 + $0x64] sm:$0xf]
    %v493 = vld [vmem:[#allocation5 + $0x68] sm:$0xf]
    %v494 = vld [vmem:[#allocation5 + $0x6c] sm:$0xf]
    %v495 = vld [vmem:[#allocation5 + $0x70] sm:$0xf]
    %v496 = vld [vmem:[#allocation5 + $0x74] sm:$0xf]
    %v497 = vld [vmem:[#allocation5 + $0x78] sm:$0xf]
    %v498 = vld [vmem:[#allocation5 + $0x7c] sm:$0xf]
    %v499 = vld [vmem:[#allocation5 + $0x100] sm:$0xf]
    %v500 = vld [vmem:[#allocation5 + $0x104] sm:$0xf]
    %v501 = vld [vmem:[#allocation5 + $0x108] sm:$0xf]
    %v502 = vld [vmem:[#allocation5 + $0x10c] sm:$0xf]
    %v503 = vld [vmem:[#allocation5 + $0x110] sm:$0xf]
    %v504 = vld [vmem:[#allocation5 + $0x114] sm:$0xf]
    %v505 = vld [vmem:[#allocation5 + $0x118] sm:$0xf]
    %v506 = vld [vmem:[#allocation5 + $0x11c] sm:$0xf]
    %v507 = vld [vmem:[#allocation5 + $0x120] sm:$0xf]
    %v508 = vld [vmem:[#allocation5 + $0x124] sm:$0xf]
    %v509 = vld [vmem:[#allocation5 + $0x128] sm:$0xf]
    %v510 = vld [vmem:[#allocation5 + $0x12c] sm:$0xf]
    %v511 = vld [vmem:[#allocation5 + $0x130] sm:$0xf]
    %v512 = vld [vmem:[#allocation5 + $0x134] sm:$0xf]
    %v513 = vld [vmem:[#allocation5 + $0x138] sm:$0xf]
    %v514 = vld [vmem:[#allocation5 + $0x13c] sm:$0xf]
    %v515 = vpack.c.bf16 %v480, %v480
    %v516 = vpack.c.bf16 %v482, %v482
    %v533 = vunpack.c.l.b16 %v499
    %v534 = vunpack.c.l.b16 %v500
    %v535 = vunpack.c.l.b16 %v501
    %v536 = vunpack.c.l.b16 %v502
    %v537 = vunpack.c.l.b16 %v503
    %v538 = vunpack.c.l.b16 %v504
    %v539 = vunpack.c.l.b16 %v505
    %v540 = vunpack.c.l.b16 %v506
    %v541 = vunpack.c.l.b16 %v507
    %v542 = vunpack.c.l.b16 %v508
    %v543 = vunpack.c.l.b16 %v509
    %v544 = vunpack.c.l.b16 %v510
    %v545 = vunpack.c.l.b16 %v511
    %v546 = vunpack.c.l.b16 %v512
    %v547 = vunpack.c.l.b16 %v513
    %v548 = vunpack.c.l.b16 %v514
    %v549 = vpack.c.b16 %v534, %v533
    %v550 = vpack.c.b16 %v536, %v535
    %v551 = vpack.c.b16 %v538, %v537
    %v552 = vpack.c.b16 %v540, %v539
    %v553 = vpack.c.b16 %v542, %v541
    %v554 = vpack.c.b16 %v544, %v543
    %v555 = vpack.c.b16 %v546, %v545
    %v556 = vpack.c.b16 %v548, %v547
    %565 = vmatprep.subr.bf16.mxu0 0
    %566 = vmatpush1.bf16.msra.mxu0 %v549
    %567 = vmatprep.subr.bf16.mxu0 0
    %568 = vmatpush1.bf16.msra.mxu0 %v550
    %569 = vmatprep.subr.bf16.mxu0 0
    %570 = vmatpush1.bf16.msra.mxu0 %v551
    %571 = vmatprep.subr.bf16.mxu0 0
    %572 = vmatpush1.bf16.msra.mxu0 %v552
    %573 = vmatprep.subr.bf16.mxu0 0
    %574 = vmatpush1.bf16.msra.mxu0 %v553
    %575 = vmatprep.subr.bf16.mxu0 0
    %576 = vmatpush1.bf16.msra.mxu0 %v554
    %577 = vmatprep.subr.bf16.mxu0 0
    %578 = vmatpush1.bf16.msra.mxu0 %v555
    %579 = vmatprep.subr.bf16.mxu0 0
    %580 = vmatpush1.bf16.msra.mxu0 %v556
    %581 = vmatprep.subr.bf16.mxu0 0
    %582 = vmatpush1.bf16.msra.mxu0 0
    %583 = vmatprep.subr.bf16.mxu0 0
    %584 = vmatpush1.bf16.msra.mxu0 0
    %585 = vmatprep.subr.bf16.mxu0 0
    %586 = vmatpush1.bf16.msra.mxu0 0
    %587 = vmatprep.subr.bf16.mxu0 0
    %588 = vmatpush1.bf16.msra.mxu0 0
    %589 = vmatprep.subr.bf16.mxu0 0
    %590 = vmatpush1.bf16.msra.mxu0 0
    %591 = vmatprep.subr.bf16.mxu0 0
    %592 = vmatpush1.bf16.msra.mxu0 0
    %593 = vmatprep.subr.bf16.mxu0 0
    %594 = vmatpush1.bf16.msra.mxu0 0
    %595 = vmatprep.subr.bf16.mxu0 0
    %596 = vmatpush1.bf16.msra.mxu0 0
    %597 = vmatprep.mubr.bf16.mxu0 0
    %598 = vmatmul.mubr.bf16.gmra.mrb[0].mxu0 %v516
    %v599 = vpop.f32.mrb[0].mxu0
    %v600 = vadd.f32 0.0, %v599
    %v601 = vpop.f32.mrb[0].mxu0
    %v602 = vpop.f32.mrb[0].mxu0
    %v603 = vpop.f32.mrb[0].mxu0
    %604 = vdwg.mxu0
    %v621 = vunpack.c.l.b16 %v483
    %v622 = vunpack.c.l.b16 %v484
    %v623 = vunpack.c.l.b16 %v485
    %v624 = vunpack.c.l.b16 %v486
    %v625 = vunpack.c.l.b16 %v487
    %v626 = vunpack.c.l.b16 %v488
    %v627 = vunpack.c.l.b16 %v489
    %v628 = vunpack.c.l.b16 %v490
    %v629 = vunpack.c.l.b16 %v491
    %v630 = vunpack.c.l.b16 %v492
    %v631 = vunpack.c.l.b16 %v493
    %v632 = vunpack.c.l.b16 %v494
    %v633 = vunpack.c.l.b16 %v495
    %v634 = vunpack.c.l.b16 %v496
    %v635 = vunpack.c.l.b16 %v497
    %v636 = vunpack.c.l.b16 %v498
    %v637 = vpack.c.b16 %v622, %v621
    %v638 = vpack.c.b16 %v624, %v623
    %v639 = vpack.c.b16 %v626, %v625
    %v640 = vpack.c.b16 %v628, %v627
    %v641 = vpack.c.b16 %v630, %v629
    %v642 = vpack.c.b16 %v632, %v631
    %v643 = vpack.c.b16 %v634, %v633
    %v644 = vpack.c.b16 %v636, %v635
    %653 = vmatprep.subr.bf16.mxu0 0
    %654 = vmatpush1.bf16.msra.mxu0 %v637
    %655 = vmatprep.subr.bf16.mxu0 0
    %656 = vmatpush1.bf16.msra.mxu0 %v638
    %657 = vmatprep.subr.bf16.mxu0 0
    %658 = vmatpush1.bf16.msra.mxu0 %v639
    %659 = vmatprep.subr.bf16.mxu0 0
    %660 = vmatpush1.bf16.msra.mxu0 %v640
    %661 = vmatprep.subr.bf16.mxu0 0
    %662 = vmatpush1.bf16.msra.mxu0 %v641
    %663 = vmatprep.subr.bf16.mxu0 0
    %664 = vmatpush1.bf16.msra.mxu0 %v642
    %665 = vmatprep.subr.bf16.mxu0 0
    %666 = vmatpush1.bf16.msra.mxu0 %v643
    %667 = vmatprep.subr.bf16.mxu0 0
    %668 = vmatpush1.bf16.msra.mxu0 %v644
    %669 = vmatprep.subr.bf16.mxu0 0
    %670 = vmatpush1.bf16.msra.mxu0 0
    %671 = vmatprep.subr.bf16.mxu0 0
    %672 = vmatpush1.bf16.msra.mxu0 0
    %673 = vmatprep.subr.bf16.mxu0 0
    %674 = vmatpush1.bf16.msra.mxu0 0
    %675 = vmatprep.subr.bf16.mxu0 0
    %676 = vmatpush1.bf16.msra.mxu0 0
    %677 = vmatprep.subr.bf16.mxu0 0
    %678 = vmatpush1.bf16.msra.mxu0 0
    %679 = vmatprep.subr.bf16.mxu0 0
    %680 = vmatpush1.bf16.msra.mxu0 0
    %681 = vmatprep.subr.bf16.mxu0 0
    %682 = vmatpush1.bf16.msra.mxu0 0
    %683 = vmatprep.subr.bf16.mxu0 0
    %684 = vmatpush1.bf16.msra.mxu0 0
    %685 = vmatprep.mubr.bf16.mxu0 0
    %686 = vmatmul.mubr.bf16.gmra.mrb[0].mxu0 %v515
    %v687 = vpop.f32.mrb[0].mxu0
    %v688 = vadd.f32 %v600, %v687
    %v689 = vpop.f32.mrb[0].mxu0
    %v690 = vpop.f32.mrb[0].mxu0
    %v691 = vpop.f32.mrb[0].mxu0
    %692 = vdwg.mxu0
    %v693 = vadd.f32 %v475, %v688
    %v694 = vmul.f32 %v269, %v480
    %v695 = vsub.f32 %v694, %v165
    %v696 = vmul.f32 %v269, %v482
    %v697 = vsub.f32 %v696, %v268
    %v698 = vld [vmem:[#allocation5 + $0x80] sm:$0xf]
    %v699 = vld [vmem:[#allocation5 + $0x84] sm:$0xf]
    %v700 = vld [vmem:[#allocation5 + $0x88] sm:$0xf]
    %v701 = vld [vmem:[#allocation5 + $0x8c] sm:$0xf]
    %v702 = vld [vmem:[#allocation5 + $0x90] sm:$0xf]
    %v703 = vld [vmem:[#allocation5 + $0x94] sm:$0xf]
    %v704 = vld [vmem:[#allocation5 + $0x98] sm:$0xf]
    %v705 = vld [vmem:[#allocation5 + $0x9c] sm:$0xf]
    %v706 = vld [vmem:[#allocation5 + $0xa0] sm:$0xf]
    %v707 = vld [vmem:[#allocation5 + $0xa4] sm:$0xf]
    %v708 = vld [vmem:[#allocation5 + $0xa8] sm:$0xf]
    %v709 = vld [vmem:[#allocation5 + $0xac] sm:$0xf]
    %v710 = vld [vmem:[#allocation5 + $0xb0] sm:$0xf]
    %v711 = vld [vmem:[#allocation5 + $0xb4] sm:$0xf]
    %v712 = vld [vmem:[#allocation5 + $0xb8] sm:$0xf]
    %v713 = vld [vmem:[#allocation5 + $0xbc] sm:$0xf]
    %v714 = vld [vmem:[#allocation5 + $0x140] sm:$0xf]
    %v715 = vld [vmem:[#allocation5 + $0x144] sm:$0xf]
    %v716 = vld [vmem:[#allocation5 + $0x148] sm:$0xf]
    %v717 = vld [vmem:[#allocation5 + $0x14c] sm:$0xf]
    %v718 = vld [vmem:[#allocation5 + $0x150] sm:$0xf]
    %v719 = vld [vmem:[#allocation5 + $0x154] sm:$0xf]
    %v720 = vld [vmem:[#allocation5 + $0x158] sm:$0xf]
    %v721 = vld [vmem:[#allocation5 + $0x15c] sm:$0xf]
    %v722 = vld [vmem:[#allocation5 + $0x160] sm:$0xf]
    %v723 = vld [vmem:[#allocation5 + $0x164] sm:$0xf]
    %v724 = vld [vmem:[#allocation5 + $0x168] sm:$0xf]
    %v725 = vld [vmem:[#allocation5 + $0x16c] sm:$0xf]
    %v726 = vld [vmem:[#allocation5 + $0x170] sm:$0xf]
    %v727 = vld [vmem:[#allocation5 + $0x174] sm:$0xf]
    %v728 = vld [vmem:[#allocation5 + $0x178] sm:$0xf]
    %v729 = vld [vmem:[#allocation5 + $0x17c] sm:$0xf]
    %v730 = vpack.c.bf16 %v695, %v695
    %v731 = vpack.c.bf16 %v697, %v697
    %v748 = vunpack.c.l.b16 %v714
    %v749 = vunpack.c.l.b16 %v715
    %v750 = vunpack.c.l.b16 %v716
    %v751 = vunpack.c.l.b16 %v717
    %v752 = vunpack.c.l.b16 %v718
    %v753 = vunpack.c.l.b16 %v719
    %v754 = vunpack.c.l.b16 %v720
    %v755 = vunpack.c.l.b16 %v721
    %v756 = vunpack.c.l.b16 %v722
    %v757 = vunpack.c.l.b16 %v723
    %v758 = vunpack.c.l.b16 %v724
    %v759 = vunpack.c.l.b16 %v725
    %v760 = vunpack.c.l.b16 %v726
    %v761 = vunpack.c.l.b16 %v727
    %v762 = vunpack.c.l.b16 %v728
    %v763 = vunpack.c.l.b16 %v729
    %v764 = vpack.c.b16 %v749, %v748
    %v765 = vpack.c.b16 %v751, %v750
    %v766 = vpack.c.b16 %v753, %v752
    %v767 = vpack.c.b16 %v755, %v754
    %v768 = vpack.c.b16 %v757, %v756
    %v769 = vpack.c.b16 %v759, %v758
    %v770 = vpack.c.b16 %v761, %v760
    %v771 = vpack.c.b16 %v763, %v762
    %780 = vmatprep.subr.bf16.mxu0 0
    %781 = vmatpush1.bf16.msra.mxu0 %v764
    %782 = vmatprep.subr.bf16.mxu0 0
    %783 = vmatpush1.bf16.msra.mxu0 %v765
    %784 = vmatprep.subr.bf16.mxu0 0
    %785 = vmatpush1.bf16.msra.mxu0 %v766
    %786 = vmatprep.subr.bf16.mxu0 0
    %787 = vmatpush1.bf16.msra.mxu0 %v767
    %788 = vmatprep.subr.bf16.mxu0 0
    %789 = vmatpush1.bf16.msra.mxu0 %v768
    %790 = vmatprep.subr.bf16.mxu0 0
    %791 = vmatpush1.bf16.msra.mxu0 %v769
    %792 = vmatprep.subr.bf16.mxu0 0
    %793 = vmatpush1.bf16.msra.mxu0 %v770
    %794 = vmatprep.subr.bf16.mxu0 0
    %795 = vmatpush1.bf16.msra.mxu0 %v771
    %796 = vmatprep.subr.bf16.mxu0 0
    %797 = vmatpush1.bf16.msra.mxu0 0
    %798 = vmatprep.subr.bf16.mxu0 0
    %799 = vmatpush1.bf16.msra.mxu0 0
    %800 = vmatprep.subr.bf16.mxu0 0
    %801 = vmatpush1.bf16.msra.mxu0 0
    %802 = vmatprep.subr.bf16.mxu0 0
    %803 = vmatpush1.bf16.msra.mxu0 0
    %804 = vmatprep.subr.bf16.mxu0 0
    %805 = vmatpush1.bf16.msra.mxu0 0
    %806 = vmatprep.subr.bf16.mxu0 0
    %807 = vmatpush1.bf16.msra.mxu0 0
    %808 = vmatprep.subr.bf16.mxu0 0
    %809 = vmatpush1.bf16.msra.mxu0 0
    %810 = vmatprep.subr.bf16.mxu0 0
    %811 = vmatpush1.bf16.msra.mxu0 0
    %812 = vmatprep.mubr.bf16.mxu0 0
    %813 = vmatmul.mubr.bf16.gmra.mrb[0].mxu0 %v731
    %v814 = vpop.f32.mrb[0].mxu0
    %v815 = vadd.f32 0.0, %v814
    %v816 = vpop.f32.mrb[0].mxu0
    %v817 = vpop.f32.mrb[0].mxu0
    %v818 = vpop.f32.mrb[0].mxu0
    %819 = vdwg.mxu0
    %v836 = vunpack.c.l.b16 %v698
    %v837 = vunpack.c.l.b16 %v699
    %v838 = vunpack.c.l.b16 %v700
    %v839 = vunpack.c.l.b16 %v701
    %v840 = vunpack.c.l.b16 %v702
    %v841 = vunpack.c.l.b16 %v703
    %v842 = vunpack.c.l.b16 %v704
    %v843 = vunpack.c.l.b16 %v705
    %v844 = vunpack.c.l.b16 %v706
    %v845 = vunpack.c.l.b16 %v707
    %v846 = vunpack.c.l.b16 %v708
    %v847 = vunpack.c.l.b16 %v709
    %v848 = vunpack.c.l.b16 %v710
    %v849 = vunpack.c.l.b16 %v711
    %v850 = vunpack.c.l.b16 %v712
    %v851 = vunpack.c.l.b16 %v713
    %v852 = vpack.c.b16 %v837, %v836
    %v853 = vpack.c.b16 %v839, %v838
    %v854 = vpack.c.b16 %v841, %v840
    %v855 = vpack.c.b16 %v843, %v842
    %v856 = vpack.c.b16 %v845, %v844
    %v857 = vpack.c.b16 %v847, %v846
    %v858 = vpack.c.b16 %v849, %v848
    %v859 = vpack.c.b16 %v851, %v850
    %868 = vmatprep.subr.bf16.mxu0 0
    %869 = vmatpush1.bf16.msra.mxu0 %v852
    %870 = vmatprep.subr.bf16.mxu0 0
    %871 = vmatpush1.bf16.msra.mxu0 %v853
    %872 = vmatprep.subr.bf16.mxu0 0
    %873 = vmatpush1.bf16.msra.mxu0 %v854
    %874 = vmatprep.subr.bf16.mxu0 0
    %875 = vmatpush1.bf16.msra.mxu0 %v855
    %876 = vmatprep.subr.bf16.mxu0 0
    %877 = vmatpush1.bf16.msra.mxu0 %v856
    %878 = vmatprep.subr.bf16.mxu0 0
    %879 = vmatpush1.bf16.msra.mxu0 %v857
    %880 = vmatprep.subr.bf16.mxu0 0
    %881 = vmatpush1.bf16.msra.mxu0 %v858
    %882 = vmatprep.subr.bf16.mxu0 0
    %883 = vmatpush1.bf16.msra.mxu0 %v859
    %884 = vmatprep.subr.bf16.mxu0 0
    %885 = vmatpush1.bf16.msra.mxu0 0
    %886 = vmatprep.subr.bf16.mxu0 0
    %887 = vmatpush1.bf16.msra.mxu0 0
    %888 = vmatprep.subr.bf16.mxu0 0
    %889 = vmatpush1.bf16.msra.mxu0 0
    %890 = vmatprep.subr.bf16.mxu0 0
    %891 = vmatpush1.bf16.msra.mxu0 0
    %892 = vmatprep.subr.bf16.mxu0 0
    %893 = vmatpush1.bf16.msra.mxu0 0
    %894 = vmatprep.subr.bf16.mxu0 0
    %895 = vmatpush1.bf16.msra.mxu0 0
    %896 = vmatprep.subr.bf16.mxu0 0
    %897 = vmatpush1.bf16.msra.mxu0 0
    %898 = vmatprep.subr.bf16.mxu0 0
    %899 = vmatpush1.bf16.msra.mxu0 0
    %900 = vmatprep.mubr.bf16.mxu0 0
    %901 = vmatmul.mubr.bf16.gmra.mrb[0].mxu0 %v730
    %v902 = vpop.f32.mrb[0].mxu0
    %v903 = vadd.f32 %v815, %v902
    %v904 = vpop.f32.mrb[0].mxu0
    %v905 = vpop.f32.mrb[0].mxu0
    %v906 = vpop.f32.mrb[0].mxu0
    %907 = vdwg.mxu0
    %v908 = vadd.f32 %v693, %v903
    %v909 = vld [vmem:[%s2] sm:$0x1]
    %v911 = vlaneseq
    %v912 = vshrl.u32 %v911, 7
    %v913 = vsub.s32 0, %v912
    %v914 = vrot.slane %v909, %v913
    %v916 = vadd.f32 %v908, %v914
    %v917 = vand.u32 2147483647, %v916
    %vm918 = vcmp.le.f32.partialorder %v917, 0.7853982
    %vm919 = vcmp.lt.s32.totalorder %v916, 0
    %v920 = vand.u32 %v916, 2139095040
    %v921 = vshrl.u32 %v920, 23
    %v922 = vsub.s32 %v921, 127
    %v923 = vand.u32 2147483647, %v916
    %v924 = vand.u32 %v923, 8388607
    %v925 = vor.u32 %v924, 8388608
    %v926 = vsub.s32 0, %v925
    %v927 = vadd.s32 %v922, 1
    %vm928 = vcmp.gt.s32.totalorder %v927, 0
    %v929 = vsel %vm928, %v927, 0
    %v930 = vshrl.u32 %v929, 5
    %v931 = vand.u32 %v929, 31
    %v932 = vsub.s32 32, %v931
    %v933 = vshrl.u32 683565275, %v932
    %v934 = vshll.u32 683565275, %v931
    %v935 = vshrl.u32 2475754826, %v932
    %v936 = vor.u32 %v934, %v935
    %v937 = vshll.u32 2475754826, %v931
    %v938 = vshrl.u32 2131351028, %v932
    %v939 = vor.u32 %v937, %v938
    %v940 = vshll.u32 2131351028, %v931
    %v941 = vshrl.u32 2102212464, %v932
    %v942 = vor.u32 %v940, %v941
    %v943 = vshll.u32 2102212464, %v931
    %v944 = vshrl.u32 920167782, %v932
    %v945 = vor.u32 %v943, %v944
    %v946 = vshll.u32 920167782, %v931
    %v947 = vshrl.u32 1326507024, %v932
    %v948 = vor.u32 %v946, %v947
    %vm949 = vcmp.lt.s32.totalorder %v930, 1
    %vm950 = vcmp.lt.s32.totalorder %v930, 2
    %vm951 = vcmp.lt.s32.totalorder %v930, 3
    %vm952 = vcmp.lt.s32.totalorder %v930, 4
    %v953 = vsel %vm949, %v933, %v936
    %v954 = vsel %vm952, %v942, 2102212464
    %v955 = vsel %vm951, %v939, %v954
    %v956 = vsel %vm950, %v953, %v955
    %v957 = vsel %vm949, %v936, %v939
    %v958 = vsel %vm952, %v945, 920167782
    %v959 = vsel %vm951, %v942, %v958
    %v960 = vsel %vm950, %v957, %v959
    %v961 = vsel %vm949, %v939, %v942
    %v962 = vsel %vm952, %v948, 1326507024
    %v963 = vsel %vm951, %v945, %v962
    %v964 = vsel %vm950, %v961, %v963
    %v965 = vshll.u32 %v925, 8
    %v966 = vmul.u32.u64.compose %v965, %v964
    %v967 = vextract.low.u32 %v966
    %v968 = vextract.high.u32 %v966
    %v969 = vmul.u32.u64.compose %v965, %v960
    %v970 = vextract.low.u32 %v969
    %v971 = vextract.high.u32 %v969
    %v972 = vmul.u32 %v965, %v956
    %v973 = vadd.s32 %v968, %v970
    %vm974 = vc.u32 %v968, %v970
    %v975 = vadd.s32 %v971, 1
    %v976 = vsel %vm974, %v975, %v971
    %v977 = vadd.s32 %v972, %v976
    %v978 = vadd.s32 %v977, 536870912
    %v979 = vshrl.u32 %v978, 30
    %v980 = vshll.u32 %v979, 30
    %v981 = vsub.s32 %v977, %v980
    %vm982 = vcmp.lt.s32.totalorder %v981, 0
    %v983 = vsub.s32 0, %v981
    %v984 = vsel %vm982, %v983, %v981
    %v985 = vclz %v984
    %v986 = vsub.s32 %v985, 2
    %vm987 = vcmp.gt.s32.totalorder 0, %v986
    %v988 = vsel %vm987, 0, %v986
    %v989 = vsub.s32 32, %v988
    %v990 = vshll.u32 %v981, %v988
    %v991 = vshrl.u32 %v973, %v989
    %v992 = vor.u32 %v990, %v991
    %v993 = vsub.s32 4294967266, %v988
    %v994 = vadd.s32 %v993, 127
    %v995 = vshll.u32 %v994, 23
    %v996 = vor.u32 4788187, %v995
    %v997 = vand.u32 2147483647, %v996
    %v999 = vcvt.s32.f32 %v992
    %v1000 = vmul.f32 %v999, %v997
    %v1001 = vxor.u32 %v1000, 2147483648
    %v1002 = vsel %vm919, %v1001, %v1000
    %v1003 = vsub.s32 4, %v979
    %v1004 = vsel %vm919, %v1003, %v979
    %v1005 = vsel %vm918, %v916, %v1002
    %v1006 = vsel %vm918, 0, %v1004
    %v1007 = vcosq.f32.pop %v1005
    %v1008 = vsinq.f32.pop %v1005
    %vm1009 = vweird.f32 %v916
    %v1010 = vadd.s32 %v1006, 3
    %v1011 = vand.u32 %v1010, 3
    %vm1012 = vcmp.lt.s32.totalorder %v1011, 2
    %vm1013 = vcmp.eq.s32.totalorder %v1011, 0
    %v1014 = vxor.u32 %v1008, 2147483648
    %v1015 = vsel %vm1013, %v1007, %v1014
    %vm1016 = vcmp.eq.s32.totalorder %v1011, 2
    %v1017 = vxor.u32 %v1007, 2147483648
    %v1018 = vsel %vm1016, %v1017, %v1008
    %v1019 = vsel %vm1012, %v1015, %v1018
    %v1020 = vsel %vm1009, nan, %v1019
    %v1021 = vand.u32 2147483647, %v916
    %vm1022 = vcmp.le.f32.partialorder %v1021, 0.7853982
    %vm1023 = vcmp.lt.s32.totalorder %v916, 0
    %v1024 = vand.u32 %v916, 2139095040
    %v1025 = vshrl.u32 %v1024, 23
    %v1026 = vsub.s32 %v1025, 127
    %v1027 = vand.u32 2147483647, %v916
    %v1028 = vand.u32 %v1027, 8388607
    %v1029 = vor.u32 %v1028, 8388608
    %v1030 = vsub.s32 0, %v1029
    %v1031 = vadd.s32 %v1026, 1
    %vm1032 = vcmp.gt.s32.totalorder %v1031, 0
    %v1033 = vsel %vm1032, %v1031, 0
    %v1034 = vshrl.u32 %v1033, 5
    %v1035 = vand.u32 %v1033, 31
    %v1036 = vsub.s32 32, %v1035
    %v1037 = vshrl.u32 683565275, %v1036
    %v1038 = vshll.u32 683565275, %v1035
    %v1039 = vshrl.u32 2475754826, %v1036
    %v1040 = vor.u32 %v1038, %v1039
    %v1041 = vshll.u32 2475754826, %v1035
    %v1042 = vshrl.u32 2131351028, %v1036
    %v1043 = vor.u32 %v1041, %v1042
    %v1044 = vshll.u32 2131351028, %v1035
    %v1045 = vshrl.u32 2102212464, %v1036
    %v1046 = vor.u32 %v1044, %v1045
    %v1047 = vshll.u32 2102212464, %v1035
    %v1048 = vshrl.u32 920167782, %v1036
    %v1049 = vor.u32 %v1047, %v1048
    %v1050 = vshll.u32 920167782, %v1035
    %v1051 = vshrl.u32 1326507024, %v1036
    %v1052 = vor.u32 %v1050, %v1051
    %vm1053 = vcmp.lt.s32.totalorder %v1034, 1
    %vm1054 = vcmp.lt.s32.totalorder %v1034, 2
    %vm1055 = vcmp.lt.s32.totalorder %v1034, 3
    %vm1056 = vcmp.lt.s32.totalorder %v1034, 4
    %v1057 = vsel %vm1053, %v1037, %v1040
    %v1058 = vsel %vm1056, %v1046, 2102212464
    %v1059 = vsel %vm1055, %v1043, %v1058
    %v1060 = vsel %vm1054, %v1057, %v1059
    %v1061 = vsel %vm1053, %v1040, %v1043
    %v1062 = vsel %vm1056, %v1049, 920167782
    %v1063 = vsel %vm1055, %v1046, %v1062
    %v1064 = vsel %vm1054, %v1061, %v1063
    %v1065 = vsel %vm1053, %v1043, %v1046
    %v1066 = vsel %vm1056, %v1052, 1326507024
    %v1067 = vsel %vm1055, %v1049, %v1066
    %v1068 = vsel %vm1054, %v1065, %v1067
    %v1069 = vshll.u32 %v1029, 8
    %v1070 = vmul.u32.u64.compose %v1069, %v1068
    %v1071 = vextract.low.u32 %v1070
    %v1072 = vextract.high.u32 %v1070
    %v1073 = vmul.u32.u64.compose %v1069, %v1064
    %v1074 = vextract.low.u32 %v1073
    %v1075 = vextract.high.u32 %v1073
    %v1076 = vmul.u32 %v1069, %v1060
    %v1077 = vadd.s32 %v1072, %v1074
    %vm1078 = vc.u32 %v1072, %v1074
    %v1079 = vadd.s32 %v1075, 1
    %v1080 = vsel %vm1078, %v1079, %v1075
    %v1081 = vadd.s32 %v1076, %v1080
    %v1082 = vadd.s32 %v1081, 536870912
    %v1083 = vshrl.u32 %v1082, 30
    %v1084 = vshll.u32 %v1083, 30
    %v1085 = vsub.s32 %v1081, %v1084
    %vm1086 = vcmp.lt.s32.totalorder %v1085, 0
    %v1087 = vsub.s32 0, %v1085
    %v1088 = vsel %vm1086, %v1087, %v1085
    %v1089 = vclz %v1088
    %v1090 = vsub.s32 %v1089, 2
    %vm1091 = vcmp.gt.s32.totalorder 0, %v1090
    %v1092 = vsel %vm1091, 0, %v1090
    %v1093 = vsub.s32 32, %v1092
    %v1094 = vshll.u32 %v1085, %v1092
    %v1095 = vshrl.u32 %v1077, %v1093
    %v1096 = vor.u32 %v1094, %v1095
    %v1097 = vsub.s32 4294967266, %v1092
    %v1098 = vadd.s32 %v1097, 127
    %v1099 = vshll.u32 %v1098, 23
    %v1100 = vor.u32 4788187, %v1099
    %v1101 = vand.u32 2147483647, %v1100
    %v1103 = vcvt.s32.f32 %v1096
    %v1104 = vmul.f32 %v1103, %v1101
    %v1105 = vxor.u32 %v1104, 2147483648
    %v1106 = vsel %vm1023, %v1105, %v1104
    %v1107 = vsub.s32 4, %v1083
    %v1108 = vsel %vm1023, %v1107, %v1083
    %v1109 = vsel %vm1022, %v916, %v1106
    %v1110 = vsel %vm1022, 0, %v1108
    %v1111 = vcosq.f32.pop %v1109
    %v1112 = vsinq.f32.pop %v1109
    %vm1113 = vweird.f32 %v916
    %v1114 = vand.u32 %v1110, 3
    %vm1115 = vcmp.lt.s32.totalorder %v1114, 2
    %vm1116 = vcmp.eq.s32.totalorder %v1114, 0
    %v1117 = vxor.u32 %v1112, 2147483648
    %v1118 = vsel %vm1116, %v1111, %v1117
    %vm1119 = vcmp.eq.s32.totalorder %v1114, 2
    %v1120 = vxor.u32 %v1111, 2147483648
    %v1121 = vsel %vm1119, %v1120, %v1112
    %v1122 = vsel %vm1115, %v1118, %v1121
    %v1123 = vsel %vm1113, nan, %v1122
    %v1124 = vadd.f32 %v1123, %v1123
    %v1125 = vld [vmem:[#allocation7] sm:$0xf]
    %v1126 = vld [vmem:[#allocation7 + $0x4] sm:$0xf]
    %v1127 = vld [vmem:[#allocation7 + $0x8] sm:$0xf]
    %v1128 = vld [vmem:[#allocation7 + $0xc] sm:$0xf]
    %v1129 = vld [vmem:[#allocation7 + $0x10] sm:$0xf]
    %v1130 = vld [vmem:[#allocation7 + $0x14] sm:$0xf]
    %v1131 = vld [vmem:[#allocation7 + $0x18] sm:$0xf]
    %v1132 = vld [vmem:[#allocation7 + $0x1c] sm:$0xf]
    %v1133 = vld [vmem:[#allocation7 + $0x20] sm:$0xf]
    %v1134 = vld [vmem:[#allocation7 + $0x24] sm:$0xf]
    %v1135 = vld [vmem:[#allocation7 + $0x28] sm:$0xf]
    %v1136 = vld [vmem:[#allocation7 + $0x2c] sm:$0xf]
    %v1137 = vld [vmem:[#allocation7 + $0x30] sm:$0xf]
    %v1138 = vld [vmem:[#allocation7 + $0x34] sm:$0xf]
    %v1139 = vld [vmem:[#allocation7 + $0x38] sm:$0xf]
    %v1140 = vld [vmem:[#allocation7 + $0x3c] sm:$0xf]
    %v1141 = vld [vmem:[#allocation7 + $0xc0] sm:$0xf]
    %v1142 = vld [vmem:[#allocation7 + $0xc4] sm:$0xf]
    %v1143 = vld [vmem:[#allocation7 + $0xc8] sm:$0xf]
    %v1144 = vld [vmem:[#allocation7 + $0xcc] sm:$0xf]
    %v1145 = vld [vmem:[#allocation7 + $0xd0] sm:$0xf]
    %v1146 = vld [vmem:[#allocation7 + $0xd4] sm:$0xf]
    %v1147 = vld [vmem:[#allocation7 + $0xd8] sm:$0xf]
    %v1148 = vld [vmem:[#allocation7 + $0xdc] sm:$0xf]
    %v1149 = vld [vmem:[#allocation7 + $0xe0] sm:$0xf]
    %v1150 = vld [vmem:[#allocation7 + $0xe4] sm:$0xf]
    %v1151 = vld [vmem:[#allocation7 + $0xe8] sm:$0xf]
    %v1152 = vld [vmem:[#allocation7 + $0xec] sm:$0xf]
    %v1153 = vld [vmem:[#allocation7 + $0xf0] sm:$0xf]
    %v1154 = vld [vmem:[#allocation7 + $0xf4] sm:$0xf]
    %v1155 = vld [vmem:[#allocation7 + $0xf8] sm:$0xf]
    %v1156 = vld [vmem:[#allocation7 + $0xfc] sm:$0xf]
    %v1157 = vpack.c.bf16 %v1020, %v1020
    %v1158 = vpack.c.bf16 %v1123, %v1123
    %v1175 = vunpack.c.l.b16 %v1141
    %v1176 = vunpack.c.l.b16 %v1142
    %v1177 = vunpack.c.l.b16 %v1143
    %v1178 = vunpack.c.l.b16 %v1144
    %v1179 = vunpack.c.l.b16 %v1145
    %v1180 = vunpack.c.l.b16 %v1146
    %v1181 = vunpack.c.l.b16 %v1147
    %v1182 = vunpack.c.l.b16 %v1148
    %v1183 = vunpack.c.l.b16 %v1149
    %v1184 = vunpack.c.l.b16 %v1150
    %v1185 = vunpack.c.l.b16 %v1151
    %v1186 = vunpack.c.l.b16 %v1152
    %v1187 = vunpack.c.l.b16 %v1153
    %v1188 = vunpack.c.l.b16 %v1154
    %v1189 = vunpack.c.l.b16 %v1155
    %v1190 = vunpack.c.l.b16 %v1156
    %v1191 = vpack.c.b16 %v1176, %v1175
    %v1192 = vpack.c.b16 %v1178, %v1177
    %v1193 = vpack.c.b16 %v1180, %v1179
    %v1194 = vpack.c.b16 %v1182, %v1181
    %v1195 = vpack.c.b16 %v1184, %v1183
    %v1196 = vpack.c.b16 %v1186, %v1185
    %v1197 = vpack.c.b16 %v1188, %v1187
    %v1198 = vpack.c.b16 %v1190, %v1189
    %1207 = vmatprep.subr.bf16.mxu0 0
    %1208 = vmatpush1.bf16.msra.mxu0 %v1191
    %1209 = vmatprep.subr.bf16.mxu0 0
    %1210 = vmatpush1.bf16.msra.mxu0 %v1192
    %1211 = vmatprep.subr.bf16.mxu0 0
    %1212 = vmatpush1.bf16.msra.mxu0 %v1193
    %1213 = vmatprep.subr.bf16.mxu0 0
    %1214 = vmatpush1.bf16.msra.mxu0 %v1194
    %1215 = vmatprep.subr.bf16.mxu0 0
    %1216 = vmatpush1.bf16.msra.mxu0 %v1195
    %1217 = vmatprep.subr.bf16.mxu0 0
    %1218 = vmatpush1.bf16.msra.mxu0 %v1196
    %1219 = vmatprep.subr.bf16.mxu0 0
    %1220 = vmatpush1.bf16.msra.mxu0 %v1197
    %1221 = vmatprep.subr.bf16.mxu0 0
    %1222 = vmatpush1.bf16.msra.mxu0 %v1198
    %1223 = vmatprep.subr.bf16.mxu0 0
    %1224 = vmatpush1.bf16.msra.mxu0 0
    %1225 = vmatprep.subr.bf16.mxu0 0
    %1226 = vmatpush1.bf16.msra.mxu0 0
    %1227 = vmatprep.subr.bf16.mxu0 0
    %1228 = vmatpush1.bf16.msra.mxu0 0
    %1229 = vmatprep.subr.bf16.mxu0 0
    %1230 = vmatpush1.bf16.msra.mxu0 0
    %1231 = vmatprep.subr.bf16.mxu0 0
    %1232 = vmatpush1.bf16.msra.mxu0 0
    %1233 = vmatprep.subr.bf16.mxu0 0
    %1234 = vmatpush1.bf16.msra.mxu0 0
    %1235 = vmatprep.subr.bf16.mxu0 0
    %1236 = vmatpush1.bf16.msra.mxu0 0
    %1237 = vmatprep.subr.bf16.mxu0 0
    %1238 = vmatpush1.bf16.msra.mxu0 0
    %1239 = vmatprep.mubr.bf16.mxu0 0
    %1240 = vmatmul.mubr.bf16.gmra.mrb[0].mxu0 %v1158
    %v1241 = vpop.f32.mrb[0].mxu0
    %v1242 = vadd.f32 0.0, %v1241
    %v1243 = vpop.f32.mrb[0].mxu0
    %v1244 = vpop.f32.mrb[0].mxu0
    %v1245 = vpop.f32.mrb[0].mxu0
    %1246 = vdwg.mxu0
    %v1263 = vunpack.c.l.b16 %v1125
    %v1264 = vunpack.c.l.b16 %v1126
    %v1265 = vunpack.c.l.b16 %v1127
    %v1266 = vunpack.c.l.b16 %v1128
    %v1267 = vunpack.c.l.b16 %v1129
    %v1268 = vunpack.c.l.b16 %v1130
    %v1269 = vunpack.c.l.b16 %v1131
    %v1270 = vunpack.c.l.b16 %v1132
    %v1271 = vunpack.c.l.b16 %v1133
    %v1272 = vunpack.c.l.b16 %v1134
    %v1273 = vunpack.c.l.b16 %v1135
    %v1274 = vunpack.c.l.b16 %v1136
    %v1275 = vunpack.c.l.b16 %v1137
    %v1276 = vunpack.c.l.b16 %v1138
    %v1277 = vunpack.c.l.b16 %v1139
    %v1278 = vunpack.c.l.b16 %v1140
    %v1279 = vpack.c.b16 %v1264, %v1263
    %v1280 = vpack.c.b16 %v1266, %v1265
    %v1281 = vpack.c.b16 %v1268, %v1267
    %v1282 = vpack.c.b16 %v1270, %v1269
    %v1283 = vpack.c.b16 %v1272, %v1271
    %v1284 = vpack.c.b16 %v1274, %v1273
    %v1285 = vpack.c.b16 %v1276, %v1275
    %v1286 = vpack.c.b16 %v1278, %v1277
    %1295 = vmatprep.subr.bf16.mxu0 0
    %1296 = vmatpush1.bf16.msra.mxu0 %v1279
    %1297 = vmatprep.subr.bf16.mxu0 0
    %1298 = vmatpush1.bf16.msra.mxu0 %v1280
    %1299 = vmatprep.subr.bf16.mxu0 0
    %1300 = vmatpush1.bf16.msra.mxu0 %v1281
    %1301 = vmatprep.subr.bf16.mxu0 0
    %1302 = vmatpush1.bf16.msra.mxu0 %v1282
    %1303 = vmatprep.subr.bf16.mxu0 0
    %1304 = vmatpush1.bf16.msra.mxu0 %v1283
    %1305 = vmatprep.subr.bf16.mxu0 0
    %1306 = vmatpush1.bf16.msra.mxu0 %v1284
    %1307 = vmatprep.subr.bf16.mxu0 0
    %1308 = vmatpush1.bf16.msra.mxu0 %v1285
    %1309 = vmatprep.subr.bf16.mxu0 0
    %1310 = vmatpush1.bf16.msra.mxu0 %v1286
    %1311 = vmatprep.subr.bf16.mxu0 0
    %1312 = vmatpush1.bf16.msra.mxu0 0
    %1313 = vmatprep.subr.bf16.mxu0 0
    %1314 = vmatpush1.bf16.msra.mxu0 0
    %1315 = vmatprep.subr.bf16.mxu0 0
    %1316 = vmatpush1.bf16.msra.mxu0 0
    %1317 = vmatprep.subr.bf16.mxu0 0
    %1318 = vmatpush1.bf16.msra.mxu0 0
    %1319 = vmatprep.subr.bf16.mxu0 0
    %1320 = vmatpush1.bf16.msra.mxu0 0
    %1321 = vmatprep.subr.bf16.mxu0 0
    %1322 = vmatpush1.bf16.msra.mxu0 0
    %1323 = vmatprep.subr.bf16.mxu0 0
    %1324 = vmatpush1.bf16.msra.mxu0 0
    %1325 = vmatprep.subr.bf16.mxu0 0
    %1326 = vmatpush1.bf16.msra.mxu0 0
    %1327 = vmatprep.mubr.bf16.mxu0 0
    %1328 = vmatmul.mubr.bf16.gmra.mrb[0].mxu0 %v1157
    %v1329 = vpop.f32.mrb[0].mxu0
    %v1330 = vadd.f32 %v1242, %v1329
    %v1331 = vpop.f32.mrb[0].mxu0
    %v1332 = vpop.f32.mrb[0].mxu0
    %v1333 = vpop.f32.mrb[0].mxu0
    %1334 = vdwg.mxu0
    %v1335 = vmul.f32 %v1124, %v1020
    %v1336 = vmul.f32 %v1124, %v1123
    %v1337 = vsub.f32 %v1336, 1.0
    %v1338 = vld [vmem:[#allocation7 + $0x40] sm:$0xf]
    %v1339 = vld [vmem:[#allocation7 + $0x44] sm:$0xf]
    %v1340 = vld [vmem:[#allocation7 + $0x48] sm:$0xf]
    %v1341 = vld [vmem:[#allocation7 + $0x4c] sm:$0xf]
    %v1342 = vld [vmem:[#allocation7 + $0x50] sm:$0xf]
    %v1343 = vld [vmem:[#allocation7 + $0x54] sm:$0xf]
    %v1344 = vld [vmem:[#allocation7 + $0x58] sm:$0xf]
    %v1345 = vld [vmem:[#allocation7 + $0x5c] sm:$0xf]
    %v1346 = vld [vmem:[#allocation7 + $0x60] sm:$0xf]
    %v1347 = vld [vmem:[#allocation7 + $0x64] sm:$0xf]
    %v1348 = vld [vmem:[#allocation7 + $0x68] sm:$0xf]
    %v1349 = vld [vmem:[#allocation7 + $0x6c] sm:$0xf]
    %v1350 = vld [vmem:[#allocation7 + $0x70] sm:$0xf]
    %v1351 = vld [vmem:[#allocation7 + $0x74] sm:$0xf]
    %v1352 = vld [vmem:[#allocation7 + $0x78] sm:$0xf]
    %v1353 = vld [vmem:[#allocation7 + $0x7c] sm:$0xf]
    %v1354 = vld [vmem:[#allocation7 + $0x100] sm:$0xf]
    %v1355 = vld [vmem:[#allocation7 + $0x104] sm:$0xf]
    %v1356 = vld [vmem:[#allocation7 + $0x108] sm:$0xf]
    %v1357 = vld [vmem:[#allocation7 + $0x10c] sm:$0xf]
    %v1358 = vld [vmem:[#allocation7 + $0x110] sm:$0xf]
    %v1359 = vld [vmem:[#allocation7 + $0x114] sm:$0xf]
    %v1360 = vld [vmem:[#allocation7 + $0x118] sm:$0xf]
    %v1361 = vld [vmem:[#allocation7 + $0x11c] sm:$0xf]
    %v1362 = vld [vmem:[#allocation7 + $0x120] sm:$0xf]
    %v1363 = vld [vmem:[#allocation7 + $0x124] sm:$0xf]
    %v1364 = vld [vmem:[#allocation7 + $0x128] sm:$0xf]
    %v1365 = vld [vmem:[#allocation7 + $0x12c] sm:$0xf]
    %v1366 = vld [vmem:[#allocation7 + $0x130] sm:$0xf]
    %v1367 = vld [vmem:[#allocation7 + $0x134] sm:$0xf]
    %v1368 = vld [vmem:[#allocation7 + $0x138] sm:$0xf]
    %v1369 = vld [vmem:[#allocation7 + $0x13c] sm:$0xf]
    %v1370 = vpack.c.bf16 %v1335, %v1335
    %v1371 = vpack.c.bf16 %v1337, %v1337
    %v1388 = vunpack.c.l.b16 %v1354
    %v1389 = vunpack.c.l.b16 %v1355
    %v1390 = vunpack.c.l.b16 %v1356
    %v1391 = vunpack.c.l.b16 %v1357
    %v1392 = vunpack.c.l.b16 %v1358
    %v1393 = vunpack.c.l.b16 %v1359
    %v1394 = vunpack.c.l.b16 %v1360
    %v1395 = vunpack.c.l.b16 %v1361
    %v1396 = vunpack.c.l.b16 %v1362
    %v1397 = vunpack.c.l.b16 %v1363
    %v1398 = vunpack.c.l.b16 %v1364
    %v1399 = vunpack.c.l.b16 %v1365
    %v1400 = vunpack.c.l.b16 %v1366
    %v1401 = vunpack.c.l.b16 %v1367
    %v1402 = vunpack.c.l.b16 %v1368
    %v1403 = vunpack.c.l.b16 %v1369
    %v1404 = vpack.c.b16 %v1389, %v1388
    %v1405 = vpack.c.b16 %v1391, %v1390
    %v1406 = vpack.c.b16 %v1393, %v1392
    %v1407 = vpack.c.b16 %v1395, %v1394
    %v1408 = vpack.c.b16 %v1397, %v1396
    %v1409 = vpack.c.b16 %v1399, %v1398
    %v1410 = vpack.c.b16 %v1401, %v1400
    %v1411 = vpack.c.b16 %v1403, %v1402
    %1420 = vmatprep.subr.bf16.mxu0 0
    %1421 = vmatpush1.bf16.msra.mxu0 %v1404
    %1422 = vmatprep.subr.bf16.mxu0 0
    %1423 = vmatpush1.bf16.msra.mxu0 %v1405
    %1424 = vmatprep.subr.bf16.mxu0 0
    %1425 = vmatpush1.bf16.msra.mxu0 %v1406
    %1426 = vmatprep.subr.bf16.mxu0 0
    %1427 = vmatpush1.bf16.msra.mxu0 %v1407
    %1428 = vmatprep.subr.bf16.mxu0 0
    %1429 = vmatpush1.bf16.msra.mxu0 %v1408
    %1430 = vmatprep.subr.bf16.mxu0 0
    %1431 = vmatpush1.bf16.msra.mxu0 %v1409
    %1432 = vmatprep.subr.bf16.mxu0 0
    %1433 = vmatpush1.bf16.msra.mxu0 %v1410
    %1434 = vmatprep.subr.bf16.mxu0 0
    %1435 = vmatpush1.bf16.msra.mxu0 %v1411
    %1436 = vmatprep.subr.bf16.mxu0 0
    %1437 = vmatpush1.bf16.msra.mxu0 0
    %1438 = vmatprep.subr.bf16.mxu0 0
    %1439 = vmatpush1.bf16.msra.mxu0 0
    %1440 = vmatprep.subr.bf16.mxu0 0
    %1441 = vmatpush1.bf16.msra.mxu0 0
    %1442 = vmatprep.subr.bf16.mxu0 0
    %1443 = vmatpush1.bf16.msra.mxu0 0
    %1444 = vmatprep.subr.bf16.mxu0 0
    %1445 = vmatpush1.bf16.msra.mxu0 0
    %1446 = vmatprep.subr.bf16.mxu0 0
    %1447 = vmatpush1.bf16.msra.mxu0 0
    %1448 = vmatprep.subr.bf16.mxu0 0
    %1449 = vmatpush1.bf16.msra.mxu0 0
    %1450 = vmatprep.subr.bf16.mxu0 0
    %1451 = vmatpush1.bf16.msra.mxu0 0
    %1452 = vmatprep.mubr.bf16.mxu0 0
    %1453 = vmatmul.mubr.bf16.gmra.mrb[0].mxu0 %v1371
    %v1454 = vpop.f32.mrb[0].mxu0
    %v1455 = vadd.f32 0.0, %v1454
    %v1456 = vpop.f32.mrb[0].mxu0
    %v1457 = vpop.f32.mrb[0].mxu0
    %v1458 = vpop.f32.mrb[0].mxu0
    %1459 = vdwg.mxu0
    %v1476 = vunpack.c.l.b16 %v1338
    %v1477 = vunpack.c.l.b16 %v1339
    %v1478 = vunpack.c.l.b16 %v1340
    %v1479 = vunpack.c.l.b16 %v1341
    %v1480 = vunpack.c.l.b16 %v1342
    %v1481 = vunpack.c.l.b16 %v1343
    %v1482 = vunpack.c.l.b16 %v1344
    %v1483 = vunpack.c.l.b16 %v1345
    %v1484 = vunpack.c.l.b16 %v1346
    %v1485 = vunpack.c.l.b16 %v1347
    %v1486 = vunpack.c.l.b16 %v1348
    %v1487 = vunpack.c.l.b16 %v1349
    %v1488 = vunpack.c.l.b16 %v1350
    %v1489 = vunpack.c.l.b16 %v1351
    %v1490 = vunpack.c.l.b16 %v1352
    %v1491 = vunpack.c.l.b16 %v1353
    %v1492 = vpack.c.b16 %v1477, %v1476
    %v1493 = vpack.c.b16 %v1479, %v1478
    %v1494 = vpack.c.b16 %v1481, %v1480
    %v1495 = vpack.c.b16 %v1483, %v1482
    %v1496 = vpack.c.b16 %v1485, %v1484
    %v1497 = vpack.c.b16 %v1487, %v1486
    %v1498 = vpack.c.b16 %v1489, %v1488
    %v1499 = vpack.c.b16 %v1491, %v1490
    %1508 = vmatprep.subr.bf16.mxu0 0
    %1509 = vmatpush1.bf16.msra.mxu0 %v1492
    %1510 = vmatprep.subr.bf16.mxu0 0
    %1511 = vmatpush1.bf16.msra.mxu0 %v1493
    %1512 = vmatprep.subr.bf16.mxu0 0
    %1513 = vmatpush1.bf16.msra.mxu0 %v1494
    %1514 = vmatprep.subr.bf16.mxu0 0
    %1515 = vmatpush1.bf16.msra.mxu0 %v1495
    %1516 = vmatprep.subr.bf16.mxu0 0
    %1517 = vmatpush1.bf16.msra.mxu0 %v1496
    %1518 = vmatprep.subr.bf16.mxu0 0
    %1519 = vmatpush1.bf16.msra.mxu0 %v1497
    %1520 = vmatprep.subr.bf16.mxu0 0
    %1521 = vmatpush1.bf16.msra.mxu0 %v1498
    %1522 = vmatprep.subr.bf16.mxu0 0
    %1523 = vmatpush1.bf16.msra.mxu0 %v1499
    %1524 = vmatprep.subr.bf16.mxu0 0
    %1525 = vmatpush1.bf16.msra.mxu0 0
    %1526 = vmatprep.subr.bf16.mxu0 0
    %1527 = vmatpush1.bf16.msra.mxu0 0
    %1528 = vmatprep.subr.bf16.mxu0 0
    %1529 = vmatpush1.bf16.msra.mxu0 0
    %1530 = vmatprep.subr.bf16.mxu0 0
    %1531 = vmatpush1.bf16.msra.mxu0 0
    %1532 = vmatprep.subr.bf16.mxu0 0
    %1533 = vmatpush1.bf16.msra.mxu0 0
    %1534 = vmatprep.subr.bf16.mxu0 0
    %1535 = vmatpush1.bf16.msra.mxu0 0
    %1536 = vmatprep.subr.bf16.mxu0 0
    %1537 = vmatpush1.bf16.msra.mxu0 0
    %1538 = vmatprep.subr.bf16.mxu0 0
    %1539 = vmatpush1.bf16.msra.mxu0 0
    %1540 = vmatprep.mubr.bf16.mxu0 0
    %1541 = vmatmul.mubr.bf16.gmra.mrb[0].mxu0 %v1370
    %v1542 = vpop.f32.mrb[0].mxu0
    %v1543 = vadd.f32 %v1455, %v1542
    %v1544 = vpop.f32.mrb[0].mxu0
    %v1545 = vpop.f32.mrb[0].mxu0
    %v1546 = vpop.f32.mrb[0].mxu0
    %1547 = vdwg.mxu0
    %v1548 = vadd.f32 %v1330, %v1543
    %v1549 = vmul.f32 %v1124, %v1335
    %v1550 = vsub.f32 %v1549, %v1020
    %v1551 = vmul.f32 %v1124, %v1337
    %v1552 = vsub.f32 %v1551, %v1123
    %v1553 = vld [vmem:[#allocation7 + $0x80] sm:$0xf]
    %v1554 = vld [vmem:[#allocation7 + $0x84] sm:$0xf]
    %v1555 = vld [vmem:[#allocation7 + $0x88] sm:$0xf]
    %v1556 = vld [vmem:[#allocation7 + $0x8c] sm:$0xf]
    %v1557 = vld [vmem:[#allocation7 + $0x90] sm:$0xf]
    %v1558 = vld [vmem:[#allocation7 + $0x94] sm:$0xf]
    %v1559 = vld [vmem:[#allocation7 + $0x98] sm:$0xf]
    %v1560 = vld [vmem:[#allocation7 + $0x9c] sm:$0xf]
    %v1561 = vld [vmem:[#allocation7 + $0xa0] sm:$0xf]
    %v1562 = vld [vmem:[#allocation7 + $0xa4] sm:$0xf]
    %v1563 = vld [vmem:[#allocation7 + $0xa8] sm:$0xf]
    %v1564 = vld [vmem:[#allocation7 + $0xac] sm:$0xf]
    %v1565 = vld [vmem:[#allocation7 + $0xb0] sm:$0xf]
    %v1566 = vld [vmem:[#allocation7 + $0xb4] sm:$0xf]
    %v1567 = vld [vmem:[#allocation7 + $0xb8] sm:$0xf]
    %v1568 = vld [vmem:[#allocation7 + $0xbc] sm:$0xf]
    %v1569 = vld [vmem:[#allocation7 + $0x140] sm:$0xf]
    %v1570 = vld [vmem:[#allocation7 + $0x144] sm:$0xf]
    %v1571 = vld [vmem:[#allocation7 + $0x148] sm:$0xf]
    %v1572 = vld [vmem:[#allocation7 + $0x14c] sm:$0xf]
    %v1573 = vld [vmem:[#allocation7 + $0x150] sm:$0xf]
    %v1574 = vld [vmem:[#allocation7 + $0x154] sm:$0xf]
    %v1575 = vld [vmem:[#allocation7 + $0x158] sm:$0xf]
    %v1576 = vld [vmem:[#allocation7 + $0x15c] sm:$0xf]
    %v1577 = vld [vmem:[#allocation7 + $0x160] sm:$0xf]
    %v1578 = vld [vmem:[#allocation7 + $0x164] sm:$0xf]
    %v1579 = vld [vmem:[#allocation7 + $0x168] sm:$0xf]
    %v1580 = vld [vmem:[#allocation7 + $0x16c] sm:$0xf]
    %v1581 = vld [vmem:[#allocation7 + $0x170] sm:$0xf]
    %v1582 = vld [vmem:[#allocation7 + $0x174] sm:$0xf]
    %v1583 = vld [vmem:[#allocation7 + $0x178] sm:$0xf]
    %v1584 = vld [vmem:[#allocation7 + $0x17c] sm:$0xf]
    %v1585 = vpack.c.bf16 %v1550, %v1550
    %v1586 = vpack.c.bf16 %v1552, %v1552
    %v1603 = vunpack.c.l.b16 %v1569
    %v1604 = vunpack.c.l.b16 %v1570
    %v1605 = vunpack.c.l.b16 %v1571
    %v1606 = vunpack.c.l.b16 %v1572
    %v1607 = vunpack.c.l.b16 %v1573
    %v1608 = vunpack.c.l.b16 %v1574
    %v1609 = vunpack.c.l.b16 %v1575
    %v1610 = vunpack.c.l.b16 %v1576
    %v1611 = vunpack.c.l.b16 %v1577
    %v1612 = vunpack.c.l.b16 %v1578
    %v1613 = vunpack.c.l.b16 %v1579
    %v1614 = vunpack.c.l.b16 %v1580
    %v1615 = vunpack.c.l.b16 %v1581
    %v1616 = vunpack.c.l.b16 %v1582
    %v1617 = vunpack.c.l.b16 %v1583
    %v1618 = vunpack.c.l.b16 %v1584
    %v1619 = vpack.c.b16 %v1604, %v1603
    %v1620 = vpack.c.b16 %v1606, %v1605
    %v1621 = vpack.c.b16 %v1608, %v1607
    %v1622 = vpack.c.b16 %v1610, %v1609
    %v1623 = vpack.c.b16 %v1612, %v1611
    %v1624 = vpack.c.b16 %v1614, %v1613
    %v1625 = vpack.c.b16 %v1616, %v1615
    %v1626 = vpack.c.b16 %v1618, %v1617
    %1635 = vmatprep.subr.bf16.mxu0 0
    %1636 = vmatpush1.bf16.msra.mxu0 %v1619
    %1637 = vmatprep.subr.bf16.mxu0 0
    %1638 = vmatpush1.bf16.msra.mxu0 %v1620
    %1639 = vmatprep.subr.bf16.mxu0 0
    %1640 = vmatpush1.bf16.msra.mxu0 %v1621
    %1641 = vmatprep.subr.bf16.mxu0 0
    %1642 = vmatpush1.bf16.msra.mxu0 %v1622
    %1643 = vmatprep.subr.bf16.mxu0 0
    %1644 = vmatpush1.bf16.msra.mxu0 %v1623
    %1645 = vmatprep.subr.bf16.mxu0 0
    %1646 = vmatpush1.bf16.msra.mxu0 %v1624
    %1647 = vmatprep.subr.bf16.mxu0 0
    %1648 = vmatpush1.bf16.msra.mxu0 %v1625
    %1649 = vmatprep.subr.bf16.mxu0 0
    %1650 = vmatpush1.bf16.msra.mxu0 %v1626
    %1651 = vmatprep.subr.bf16.mxu0 0
    %1652 = vmatpush1.bf16.msra.mxu0 0
    %1653 = vmatprep.subr.bf16.mxu0 0
    %1654 = vmatpush1.bf16.msra.mxu0 0
    %1655 = vmatprep.subr.bf16.mxu0 0
    %1656 = vmatpush1.bf16.msra.mxu0 0
    %1657 = vmatprep.subr.bf16.mxu0 0
    %1658 = vmatpush1.bf16.msra.mxu0 0
    %1659 = vmatprep.subr.bf16.mxu0 0
    %1660 = vmatpush1.bf16.msra.mxu0 0
    %1661 = vmatprep.subr.bf16.mxu0 0
    %1662 = vmatpush1.bf16.msra.mxu0 0
    %1663 = vmatprep.subr.bf16.mxu0 0
    %1664 = vmatpush1.bf16.msra.mxu0 0
    %1665 = vmatprep.subr.bf16.mxu0 0
    %1666 = vmatpush1.bf16.msra.mxu0 0
    %1667 = vmatprep.mubr.bf16.mxu0 0
    %1668 = vmatmul.mubr.bf16.gmra.mrb[0].mxu0 %v1586
    %v1669 = vpop.f32.mrb[0].mxu0
    %v1670 = vadd.f32 0.0, %v1669
    %v1671 = vpop.f32.mrb[0].mxu0
    %v1672 = vpop.f32.mrb[0].mxu0
    %v1673 = vpop.f32.mrb[0].mxu0
    %1674 = vdwg.mxu0
    %v1691 = vunpack.c.l.b16 %v1553
    %v1692 = vunpack.c.l.b16 %v1554
    %v1693 = vunpack.c.l.b16 %v1555
    %v1694 = vunpack.c.l.b16 %v1556
    %v1695 = vunpack.c.l.b16 %v1557
    %v1696 = vunpack.c.l.b16 %v1558
    %v1697 = vunpack.c.l.b16 %v1559
    %v1698 = vunpack.c.l.b16 %v1560
    %v1699 = vunpack.c.l.b16 %v1561
    %v1700 = vunpack.c.l.b16 %v1562
    %v1701 = vunpack.c.l.b16 %v1563
    %v1702 = vunpack.c.l.b16 %v1564
    %v1703 = vunpack.c.l.b16 %v1565
    %v1704 = vunpack.c.l.b16 %v1566
    %v1705 = vunpack.c.l.b16 %v1567
    %v1706 = vunpack.c.l.b16 %v1568
    %v1707 = vpack.c.b16 %v1692, %v1691
    %v1708 = vpack.c.b16 %v1694, %v1693
    %v1709 = vpack.c.b16 %v1696, %v1695
    %v1710 = vpack.c.b16 %v1698, %v1697
    %v1711 = vpack.c.b16 %v1700, %v1699
    %v1712 = vpack.c.b16 %v1702, %v1701
    %v1713 = vpack.c.b16 %v1704, %v1703
    %v1714 = vpack.c.b16 %v1706, %v1705
    %1723 = vmatprep.subr.bf16.mxu0 0
    %1724 = vmatpush1.bf16.msra.mxu0 %v1707
    %1725 = vmatprep.subr.bf16.mxu0 0
    %1726 = vmatpush1.bf16.msra.mxu0 %v1708
    %1727 = vmatprep.subr.bf16.mxu0 0
    %1728 = vmatpush1.bf16.msra.mxu0 %v1709
    %1729 = vmatprep.subr.bf16.mxu0 0
    %1730 = vmatpush1.bf16.msra.mxu0 %v1710
    %1731 = vmatprep.subr.bf16.mxu0 0
    %1732 = vmatpush1.bf16.msra.mxu0 %v1711
    %1733 = vmatprep.subr.bf16.mxu0 0
    %1734 = vmatpush1.bf16.msra.mxu0 %v1712
    %1735 = vmatprep.subr.bf16.mxu0 0
    %1736 = vmatpush1.bf16.msra.mxu0 %v1713
    %1737 = vmatprep.subr.bf16.mxu0 0
    %1738 = vmatpush1.bf16.msra.mxu0 %v1714
    %1739 = vmatprep.subr.bf16.mxu0 0
    %1740 = vmatpush1.bf16.msra.mxu0 0
    %1741 = vmatprep.subr.bf16.mxu0 0
    %1742 = vmatpush1.bf16.msra.mxu0 0
    %1743 = vmatprep.subr.bf16.mxu0 0
    %1744 = vmatpush1.bf16.msra.mxu0 0
    %1745 = vmatprep.subr.bf16.mxu0 0
    %1746 = vmatpush1.bf16.msra.mxu0 0
    %1747 = vmatprep.subr.bf16.mxu0 0
    %1748 = vmatpush1.bf16.msra.mxu0 0
    %1749 = vmatprep.subr.bf16.mxu0 0
    %1750 = vmatpush1.bf16.msra.mxu0 0
    %1751 = vmatprep.subr.bf16.mxu0 0
    %1752 = vmatpush1.bf16.msra.mxu0 0
    %1753 = vmatprep.subr.bf16.mxu0 0
    %1754 = vmatpush1.bf16.msra.mxu0 0
    %1755 = vmatprep.mubr.bf16.mxu0 0
    %1756 = vmatmul.mubr.bf16.gmra.mrb[0].mxu0 %v1585
    %v1757 = vpop.f32.mrb[0].mxu0
    %v1758 = vadd.f32 %v1670, %v1757
    %v1759 = vpop.f32.mrb[0].mxu0
    %v1760 = vpop.f32.mrb[0].mxu0
    %v1761 = vpop.f32.mrb[0].mxu0
    %1762 = vdwg.mxu0
    %v1763 = vadd.f32 %v1548, %v1758
    %v1764 = vld [vmem:[%s4] sm:$0x1]
    %v1766 = vlaneseq
    %v1767 = vshrl.u32 %v1766, 7
    %v1768 = vsub.s32 0, %v1767
    %v1769 = vrot.slane %v1764, %v1768
    %v1771 = vadd.f32 %v1763, %v1769
    %1772 = vst [vmem:[#allocation8] sm:$0xff] %v1771
    // Predicated region
    $region34: #{tpu_custom_call.1} parent=1 // pred_check
      _
    $region35: #{tpu_custom_call.1} parent=1 // pred_check_branch
      %1774 = sbr.rel (0) target = $region37
    $region36: #{tpu_custom_call.1} parent=1 // pred_region
      %s1776 = ssub.s32 128, 128
      %1777 = vsyncadd [#allocation4], %s1776
      %s1779 = sshll.u32 [#allocation8], 4
      %s1780 = int_to_ptr.vmem [resolvable:$true] %s1779
      %1782 = dma.vmem_to_hbm [thread:$0]  %s1780, 128, %s5, [#allocation4]
    $region37: #{tpu_custom_call.1} parent=1 // pred_fallthru
      _
    // Predicated region
    $region38: #{tpu_custom_call.1} parent=1 // pred_check
      _
    $region39: #{tpu_custom_call.1} parent=1 // pred_check_branch
      %1784 = sbr.rel (0) target = $region41
    $region40: #{tpu_custom_call.1} parent=1 // pred_region
      %1785 = dma.done [#allocation4], 128
    $region41: #{tpu_custom_call.1} parent=1 // pred_fallthru
      _
    %1786 = vsyncpa [#allocation3], 1
    %1787 = vsyncpa [#allocation6], 1
    %1788 = vsyncpa [#allocation4], 1

</llo_original>
